<compile_context>
chip_gen: v7x
topology: tpu7x:2x2x1
jax: 0.10.0
libtpu: 0.0.40
codegen_flags: <defaults>
</compile_context>

<pallas_src>
import functools

import jax
import jax.numpy as jnp
from jax.experimental import pallas as pl
from jax.experimental.pallas import tpu as pltpu

HIDDEN = 2048  # fixed by the module definition
LANE = 128
SUBLANE = 8


def _round_up(x, m):
    return ((x + m - 1) // m) * m


def ffn_kernel(x_ref, w1_ref, b1_ref, w2_ref, b2_ref, o_ref):
    # First linear + ReLU: bf16 operands on the MXU, f32 accumulation.
    x = x_ref[...].astype(jnp.bfloat16)
    h = jnp.dot(x, w1_ref[...], preferred_element_type=jnp.float32)
    h = h + b1_ref[...]                       # (tm, H) + (1, H) broadcast, f32
    h = jnp.maximum(h, 0.0)                   # ReLU
    # Second linear.
    y = jnp.dot(h.astype(jnp.bfloat16), w2_ref[...],
                preferred_element_type=jnp.float32)
    y = y + b2_ref[...]                       # (tm, out_p) + (1, out_p) broadcast, f32
    o_ref[...] = y.astype(o_ref.dtype)


def _vmem_limit_bytes(tm, inp_dim, out_dim_p, weight_bufs):
    w_bytes = weight_bufs * (inp_dim * HIDDEN + HIDDEN * out_dim_p) * 2   # bf16 weights
    b_bytes = weight_bufs * (HIDDEN + out_dim_p) * 4                      # f32 biases
    x_bytes = 2 * tm * inp_dim * 4                                        # double-buffered x tile
    o_bytes = 2 * tm * out_dim_p * 4                                      # double-buffered out tile
    h_bytes = tm * HIDDEN * (4 + 2)                                       # f32 hidden + bf16 copy
    need = w_bytes + b_bytes + x_bytes + o_bytes + h_bytes
    # 2x headroom, never below 16 MiB, never above v7x's 64 MiB physical VMEM.
    return int(min(64 * 1024 * 1024, max(2 * need, 16 * 1024 * 1024)))


@functools.partial(jax.jit, static_argnames=("tm", "single_buffer_weights"))
def ffn_forward(x, w1, b1, w2, b2, *, tm=256, single_buffer_weights=True):
    """x: (..., inp_dim) -> (..., out_dim), matching nn.Linear->ReLU->nn.Linear."""
    orig_shape = x.shape
    inp_dim = orig_shape[-1]
    out_dim = w2.shape[1]
    x2 = x.reshape(-1, inp_dim)
    m = x2.shape[0]

    # Row tile: big enough to feed the MXU, but never larger than the (8-aligned) row count.
    tm_eff = min(tm, _round_up(m, SUBLANE))
    grid = (pl.cdiv(m, tm_eff),)

    # Lane-dense output: zero-pad W2 / b2 columns up to a multiple of 128.
    out_dim_p = _round_up(out_dim, LANE)
    pad_n = out_dim_p - out_dim

    # bf16 weights (MXU-native); biases stay f32 for exact bias add.
    w1b = w1.astype(jnp.bfloat16)
    w2b = w2.astype(jnp.bfloat16)
    b1f = b1.reshape(1, HIDDEN).astype(jnp.float32)
    b2f = b2.reshape(1, out_dim).astype(jnp.float32)
    if pad_n:
        w2b = jnp.pad(w2b, ((0, 0), (0, pad_n)))
        b2f = jnp.pad(b2f, ((0, 0), (0, pad_n)))

    # Resident operands (constant block index) need only a single buffer.
    weight_pipeline = dict(pipeline_mode=pl.Buffered(1)) if single_buffer_weights else {}

    in_specs = [
        pl.BlockSpec((tm_eff, inp_dim), lambda i: (i, 0)),                       # x tile
        pl.BlockSpec((inp_dim, HIDDEN), lambda i: (0, 0), **weight_pipeline),    # W1 (resident)
        pl.BlockSpec((1, HIDDEN), lambda i: (0, 0), **weight_pipeline),          # b1
        pl.BlockSpec((HIDDEN, out_dim_p), lambda i: (0, 0), **weight_pipeline),  # W2 (resident)
        pl.BlockSpec((1, out_dim_p), lambda i: (0, 0), **weight_pipeline),       # b2
    ]

    flops = 2 * m * (inp_dim * HIDDEN + HIDDEN * out_dim_p)
    bytes_accessed = (m * inp_dim * x2.dtype.itemsize
                      + (inp_dim * HIDDEN + HIDDEN * out_dim_p) * 2      # bf16 weights
                      + (HIDDEN + out_dim_p) * 4                          # f32 biases
                      + m * out_dim_p * jnp.dtype(x.dtype).itemsize)      # output

    out = pl.pallas_call(
        ffn_kernel,
        out_shape=jax.ShapeDtypeStruct((m, out_dim_p), x.dtype),
        grid_spec=pltpu.PrefetchScalarGridSpec(
            num_scalar_prefetch=0,
            grid=grid,
            in_specs=in_specs,
            out_specs=pl.BlockSpec((tm_eff, out_dim_p), lambda i: (i, 0)),
        ),
        compiler_params=pltpu.CompilerParams(
            dimension_semantics=("parallel",),
            vmem_limit_bytes=_vmem_limit_bytes(
                tm_eff, inp_dim, out_dim_p, 1 if single_buffer_weights else 2),
        ),
        cost_estimate=pl.CostEstimate(
            flops=flops, transcendentals=0, bytes_accessed=bytes_accessed),
    )(x2, w1b, b1f, w2b, b2f)

    if pad_n:
        out = out[:, :out_dim]
    return out.reshape(*orig_shape[:-1], out_dim)


def init_params(key, inp_dim, output_dim, dtype=jnp.float32):
    """Deterministic init mimicking PyTorch nn.Linear (U[-1/sqrt(fan_in), 1/sqrt(fan_in)])."""
    k1, k2, k3, k4 = jax.random.split(key, 4)
    lim1 = 1.0 / jnp.sqrt(jnp.asarray(inp_dim, dtype))
    lim2 = 1.0 / jnp.sqrt(jnp.asarray(HIDDEN, dtype))
    w1 = jax.random.uniform(k1, (inp_dim, HIDDEN), dtype, -lim1, lim1)
    b1 = jax.random.uniform(k2, (1, HIDDEN), dtype, -lim1, lim1)
    w2 = jax.random.uniform(k3, (HIDDEN, output_dim), dtype, -lim2, lim2)
    b2 = jax.random.uniform(k4, (1, output_dim), dtype, -lim2, lim2)
    return w1, b1, w2, b2


if __name__ == "__main__":
    key = jax.random.PRNGKey(0)
    kx, kp = jax.random.split(key)

    batch, seq, inp_dim, output_dim = 2, 8, 32, 32
    x = jax.random.normal(kx, (batch, seq, inp_dim), jnp.float32)
    w1, b1, w2, b2 = init_params(kp, inp_dim, output_dim)

    try:
        out = jax.block_until_ready(ffn_forward(x, w1, b1, w2, b2))
    except Exception:
        # Fallback for JAX builds that reject pipeline_mode=pl.Buffered(1):
        # default double-buffered resident weights (identical math).
        out = jax.block_until_ready(
            ffn_forward(x, w1, b1, w2, b2, single_buffer_weights=False))

    # Reference in plain JAX with the same mixed precision (bf16 operands, f32 accumulation).
    x2 = x.reshape(-1, inp_dim).astype(jnp.bfloat16)
    h = jnp.maximum(
        jnp.dot(x2, w1.astype(jnp.bfloat16), preferred_element_type=jnp.float32) + b1, 0.0)
    ref = jnp.dot(h.astype(jnp.bfloat16), w2.astype(jnp.bfloat16),
                  preferred_element_type=jnp.float32) + b2
    ref = ref.reshape(batch, seq, output_dim)

    assert out.shape == (batch, seq, output_dim)
    assert out.dtype == x.dtype
    assert jnp.allclose(out, ref, atol=1e-2, rtol=1e-2), float(jnp.max(jnp.abs(out - ref)))

    print("KERNEL_OK")
</pallas_src>

<mosaic_0001>
module attributes {stable_mosaic.version = 11 : i64} {
  func.func @ffn_kernel(%arg0: i32, %arg1: memref<16x32xf32, #tpu.memory_space<vmem>>, %arg2: memref<32x2048xbf16, #tpu.memory_space<vmem>>, %arg3: memref<1x2048xf32, #tpu.memory_space<vmem>>, %arg4: memref<2048x128xbf16, #tpu.memory_space<vmem>>, %arg5: memref<1x128xf32, #tpu.memory_space<vmem>>, %arg6: memref<16x128xf32, #tpu.memory_space<vmem>>) attributes {dimension_semantics = [#tpu.dimension_semantics<parallel>], iteration_bounds = array<i64: 1>, scalar_prefetch = 0 : i64, scratch_operands = 0 : i64, tpu.core_type = #tpu.core_type<tc>, window_params = [{transform_indices = @transform_0, window_bounds = array<i64: 16, 32>}, {pipeline_mode = #tpu.pipeline_mode<synchronous>, transform_indices = @transform_1, window_bounds = array<i64: 32, 2048>}, {pipeline_mode = #tpu.pipeline_mode<synchronous>, transform_indices = @transform_2, window_bounds = array<i64: 1, 2048>}, {pipeline_mode = #tpu.pipeline_mode<synchronous>, transform_indices = @transform_3, window_bounds = array<i64: 2048, 128>}, {pipeline_mode = #tpu.pipeline_mode<synchronous>, transform_indices = @transform_4, window_bounds = array<i64: 1, 128>}, {transform_indices = @transform_5, window_bounds = array<i64: 16, 128>}]} {
    %c0 = arith.constant 0 : index
    %c0_0 = arith.constant 0 : index
    %0 = vector.load %arg1[%c0, %c0_0] : memref<16x32xf32, #tpu.memory_space<vmem>>, vector<16x32xf32>
    %1 = arith.truncf %0 : vector<16x32xf32> to vector<16x32xbf16>
    %c0_1 = arith.constant 0 : index
    %c0_2 = arith.constant 0 : index
    %2 = vector.load %arg2[%c0_1, %c0_2] : memref<32x2048xbf16, #tpu.memory_space<vmem>>, vector<32x2048xbf16>
    %cst = arith.constant dense<0.000000e+00> : vector<16x2048xf32>
    %3 = tpu.matmul %1, %2, %cst {dimension_numbers = #tpu.dot_dimension_numbers<[1], [0], [0], [1], [0, 0, 1, 1], [], []>} : vector<16x32xbf16>, vector<32x2048xbf16>, vector<16x2048xf32> -> vector<16x2048xf32>
    %c0_3 = arith.constant 0 : index
    %c0_4 = arith.constant 0 : index
    %4 = vector.load %arg3[%c0_3, %c0_4] : memref<1x2048xf32, #tpu.memory_space<vmem>>, vector<1x2048xf32>
    %5 = vector.broadcast %4 : vector<1x2048xf32> to vector<16x2048xf32>
    %6 = arith.addf %3, %5 : vector<16x2048xf32>
    %cst_5 = arith.constant 0.000000e+00 : f32
    %7 = vector.broadcast %cst_5 : f32 to vector<16x2048xf32>
    %8 = arith.maximumf %6, %7 : vector<16x2048xf32>
    %9 = arith.truncf %8 : vector<16x2048xf32> to vector<16x2048xbf16>
    %c0_6 = arith.constant 0 : index
    %c0_7 = arith.constant 0 : index
    %10 = vector.load %arg4[%c0_6, %c0_7] : memref<2048x128xbf16, #tpu.memory_space<vmem>>, vector<2048x128xbf16>
    %cst_8 = arith.constant dense<0.000000e+00> : vector<16x128xf32>
    %11 = tpu.matmul %9, %10, %cst_8 {dimension_numbers = #tpu.dot_dimension_numbers<[1], [0], [0], [1], [0, 0, 1, 1], [], []>} : vector<16x2048xbf16>, vector<2048x128xbf16>, vector<16x128xf32> -> vector<16x128xf32>
    %c0_9 = arith.constant 0 : index
    %c0_10 = arith.constant 0 : index
    %12 = vector.load %arg5[%c0_9, %c0_10] : memref<1x128xf32, #tpu.memory_space<vmem>>, vector<1x128xf32>
    %13 = vector.broadcast %12 : vector<1x128xf32> to vector<16x128xf32>
    %14 = arith.addf %11, %13 : vector<16x128xf32>
    %c0_11 = arith.constant 0 : index
    %c0_12 = arith.constant 0 : index
    %15 = vector.load %arg6[%c0_11, %c0_12] : memref<16x128xf32, #tpu.memory_space<vmem>>, vector<16x128xf32>
    tpu.vector_store %arg6[%c0_11, %c0_12], %14 {strides = array<i32>} : memref<16x128xf32, #tpu.memory_space<vmem>>, vector<16x128xf32>,
    return
  }
  func.func @transform_0(%arg0: i32) -> (i32, i32) {
    %c0_i32 = arith.constant 0 : i32
    %c0_i32_0 = arith.constant 0 : i32
    return %arg0, %c0_i32 : i32, i32
  }
  func.func @transform_1(%arg0: i32) -> (i32, i32) {
    %c0_i32 = arith.constant 0 : i32
    %c0_i32_0 = arith.constant 0 : i32
    %c0_i32_1 = arith.constant 0 : i32
    return %c0_i32, %c0_i32_0 : i32, i32
  }
  func.func @transform_2(%arg0: i32) -> (i32, i32) {
    %c0_i32 = arith.constant 0 : i32
    %c0_i32_0 = arith.constant 0 : i32
    %c0_i32_1 = arith.constant 0 : i32
    return %c0_i32, %c0_i32_0 : i32, i32
  }
  func.func @transform_3(%arg0: i32) -> (i32, i32) {
    %c0_i32 = arith.constant 0 : i32
    %c0_i32_0 = arith.constant 0 : i32
    %c0_i32_1 = arith.constant 0 : i32
    return %c0_i32, %c0_i32_0 : i32, i32
  }
  func.func @transform_4(%arg0: i32) -> (i32, i32) {
    %c0_i32 = arith.constant 0 : i32
    %c0_i32_0 = arith.constant 0 : i32
    %c0_i32_1 = arith.constant 0 : i32
    return %c0_i32, %c0_i32_0 : i32, i32
  }
  func.func @transform_5(%arg0: i32) -> (i32, i32) {
    %c0_i32 = arith.constant 0 : i32
    %c0_i32_0 = arith.constant 0 : i32
    return %arg0, %c0_i32 : i32, i32
  }
}

module attributes {stable_mosaic.version = 11 : i64} {
  func.func @ffn_kernel(%arg0: i32, %arg1: memref<16x32xf32, #tpu.memory_space<vmem>>, %arg2: memref<32x2048xbf16, #tpu.memory_space<vmem>>, %arg3: memref<1x2048xf32, #tpu.memory_space<vmem>>, %arg4: memref<2048x128xbf16, #tpu.memory_space<vmem>>, %arg5: memref<1x128xf32, #tpu.memory_space<vmem>>, %arg6: memref<16x128xf32, #tpu.memory_space<vmem>>) attributes {dimension_semantics = [#tpu.dimension_semantics<parallel>], iteration_bounds = array<i64: 1>, scalar_prefetch = 0 : i64, scratch_operands = 0 : i64, tpu.core_type = #tpu.core_type<tc>, window_params = [{transform_indices = @transform_0, window_bounds = array<i64: 16, 32>}, {pipeline_mode = #tpu.pipeline_mode<synchronous>, transform_indices = @transform_1, window_bounds = array<i64: 32, 2048>}, {pipeline_mode = #tpu.pipeline_mode<synchronous>, transform_indices = @transform_2, window_bounds = array<i64: 1, 2048>}, {pipeline_mode = #tpu.pipeline_mode<synchronous>, transform_indices = @transform_3, window_bounds = array<i64: 2048, 128>}, {pipeline_mode = #tpu.pipeline_mode<synchronous>, transform_indices = @transform_4, window_bounds = array<i64: 1, 128>}, {transform_indices = @transform_5, window_bounds = array<i64: 16, 128>}]} {
    %c0 = arith.constant 0 : index
    %c0_0 = arith.constant 0 : index
    %0 = vector.load %arg1[%c0, %c0_0] : memref<16x32xf32, #tpu.memory_space<vmem>>, vector<16x32xf32>
    %1 = arith.truncf %0 : vector<16x32xf32> to vector<16x32xbf16>
    %c0_1 = arith.constant 0 : index
    %c0_2 = arith.constant 0 : index
    %2 = vector.load %arg2[%c0_1, %c0_2] : memref<32x2048xbf16, #tpu.memory_space<vmem>>, vector<32x2048xbf16>
    %cst = arith.constant dense<0.000000e+00> : vector<16x2048xf32>
    %3 = tpu.matmul %1, %2, %cst {dimension_numbers = #tpu.dot_dimension_numbers<[1], [0], [0], [1], [0, 0, 1, 1], [], []>} : vector<16x32xbf16>, vector<32x2048xbf16>, vector<16x2048xf32> -> vector<16x2048xf32>
    %c0_3 = arith.constant 0 : index
    %c0_4 = arith.constant 0 : index
    %4 = vector.load %arg3[%c0_3, %c0_4] : memref<1x2048xf32, #tpu.memory_space<vmem>>, vector<1x2048xf32>
    %5 = vector.broadcast %4 : vector<1x2048xf32> to vector<16x2048xf32>
    %6 = arith.addf %3, %5 : vector<16x2048xf32>
    %cst_5 = arith.constant 0.000000e+00 : f32
    %7 = vector.broadcast %cst_5 : f32 to vector<16x2048xf32>
    %8 = arith.maximumf %6, %7 : vector<16x2048xf32>
    %9 = arith.truncf %8 : vector<16x2048xf32> to vector<16x2048xbf16>
    %c0_6 = arith.constant 0 : index
    %c0_7 = arith.constant 0 : index
    %10 = vector.load %arg4[%c0_6, %c0_7] : memref<2048x128xbf16, #tpu.memory_space<vmem>>, vector<2048x128xbf16>
    %cst_8 = arith.constant dense<0.000000e+00> : vector<16x128xf32>
    %11 = tpu.matmul %9, %10, %cst_8 {dimension_numbers = #tpu.dot_dimension_numbers<[1], [0], [0], [1], [0, 0, 1, 1], [], []>} : vector<16x2048xbf16>, vector<2048x128xbf16>, vector<16x128xf32> -> vector<16x128xf32>
    %c0_9 = arith.constant 0 : index
    %c0_10 = arith.constant 0 : index
    %12 = vector.load %arg5[%c0_9, %c0_10] : memref<1x128xf32, #tpu.memory_space<vmem>>, vector<1x128xf32>
    %13 = vector.broadcast %12 : vector<1x128xf32> to vector<16x128xf32>
    %14 = arith.addf %11, %13 : vector<16x128xf32>
    %c0_11 = arith.constant 0 : index
    %c0_12 = arith.constant 0 : index
    %15 = vector.load %arg6[%c0_11, %c0_12] : memref<16x128xf32, #tpu.memory_space<vmem>>, vector<16x128xf32>
    tpu.vector_store %arg6[%c0_11, %c0_12], %14 {strides = array<i32>} : memref<16x128xf32, #tpu.memory_space<vmem>>, vector<16x128xf32>,
    return
  }
  func.func @transform_0(%arg0: i32) -> (i32, i32) {
    %c0_i32 = arith.constant 0 : i32
    %c0_i32_0 = arith.constant 0 : i32
    return %arg0, %c0_i32 : i32, i32
  }
  func.func @transform_1(%arg0: i32) -> (i32, i32) {
    %c0_i32 = arith.constant 0 : i32
    %c0_i32_0 = arith.constant 0 : i32
    %c0_i32_1 = arith.constant 0 : i32
    return %c0_i32, %c0_i32_0 : i32, i32
  }
  func.func @transform_2(%arg0: i32) -> (i32, i32) {
    %c0_i32 = arith.constant 0 : i32
    %c0_i32_0 = arith.constant 0 : i32
    %c0_i32_1 = arith.constant 0 : i32
    return %c0_i32, %c0_i32_0 : i32, i32
  }
  func.func @transform_3(%arg0: i32) -> (i32, i32) {
    %c0_i32 = arith.constant 0 : i32
    %c0_i32_0 = arith.constant 0 : i32
    %c0_i32_1 = arith.constant 0 : i32
    return %c0_i32, %c0_i32_0 : i32, i32
  }
  func.func @transform_4(%arg0: i32) -> (i32, i32) {
    %c0_i32 = arith.constant 0 : i32
    %c0_i32_0 = arith.constant 0 : i32
    %c0_i32_1 = arith.constant 0 : i32
    return %c0_i32, %c0_i32_0 : i32, i32
  }
  func.func @transform_5(%arg0: i32) -> (i32, i32) {
    %c0_i32 = arith.constant 0 : i32
    %c0_i32_0 = arith.constant 0 : i32
    return %arg0, %c0_i32 : i32, i32
  }
}

</mosaic_0001>

<llo_original>
// kernel: ffn_forward.1
$region0: #{ffn_forward.1}
  #allocation0 [shape = 'u32[]', space=smem, size = 0x4, offset = 0x4, fixed_abs, tag = 'smem constant byte address 0x4 - core index']
  #allocation1 [shape = 'u32[144,128]{1,0:T(1,128)}', space=vmem, size = 0x12000, scoped, tag = 'internal scratch']
  %s0 = inlined_call_operand.vmem [shape: f32[16,32], index: 0, kind: input, shape index: {}]
  %s1 = inlined_call_operand.vmem [shape: bf16[32,2048], index: 1, kind: input, shape index: {}]
  %s2 = inlined_call_operand.vmem [shape: f32[1,2048], index: 2, kind: input, shape index: {}]
  %s3 = inlined_call_operand.vmem [shape: bf16[2048,128], index: 3, kind: input, shape index: {}]
  %s4 = inlined_call_operand.vmem [shape: f32[1,128], index: 4, kind: input, shape index: {}]
  %s5 = inlined_call_operand.vmem [shape: f32[16,128], index: 5, kind: output, shape index: {}]
  %s6 = sld [smem:[#allocation0]]
  $region30: #{ffn_forward.1} parent=0
    _
  %s8 = ssub.s32 1, %s6
  %s9 = scalar_select 0, %s8, %s6
  // Predicated region
  $region2: #{ffn_forward.1} parent=0 // pred_check
    _
  $region3: #{ffn_forward.1} parent=0 // pred_check_branch
    %11 = sbr.rel (0) target = $region5
  $region4: #{ffn_forward.1} parent=0 // pred_region
    _
  $region5: #{ffn_forward.1} parent=0 // pred_fallthru
    _
  // Predicated region
  $region6: #{ffn_forward.1} parent=0 // pred_check
    _
  $region7: #{ffn_forward.1} parent=0 // pred_check_branch
    %13 = sbr.rel (0) target = $region9
  $region8: #{ffn_forward.1} parent=0 // pred_region
    _
  $region9: #{ffn_forward.1} parent=0 // pred_fallthru
    _
  // Predicated region
  $region10: #{ffn_forward.1} parent=0 // pred_check
    _
  $region11: #{ffn_forward.1} parent=0 // pred_check_branch
    %15 = sbr.rel (0) target = $region13
  $region12: #{ffn_forward.1} parent=0 // pred_region
    _
  $region13: #{ffn_forward.1} parent=0 // pred_fallthru
    _
  // Predicated region
  $region14: #{ffn_forward.1} parent=0 // pred_check
    _
  $region15: #{ffn_forward.1} parent=0 // pred_check_branch
    %17 = sbr.rel (0) target = $region17
  $region16: #{ffn_forward.1} parent=0 // pred_region
    _
  $region17: #{ffn_forward.1} parent=0 // pred_fallthru
    _
  // Predicated region
  $region18: #{ffn_forward.1} parent=0 // pred_check
    _
  $region19: #{ffn_forward.1} parent=0 // pred_check_branch
    %19 = sbr.rel (0) target = $region21
  $region20: #{ffn_forward.1} parent=0 // pred_region
    _
  $region21: #{ffn_forward.1} parent=0 // pred_fallthru
    _
  %v21 = vld [vmem:[%s0] sm:$0xff]
  %v22 = vld [vmem:[%s0 + $0x8] sm:$0xff]
  %v23 = vpack.c.bf16 %v22, %v21
  %v24 = vld [vmem:[%s1] sm:$0xff]
  %v25 = vld [vmem:[%s1 + $0x8] sm:$0xff]
  %v26 = vld [vmem:[%s1 + $0x10] sm:$0xff]
  %v27 = vld [vmem:[%s1 + $0x18] sm:$0xff]
  %v28 = vld [vmem:[%s1 + $0x20] sm:$0xff]
  %v29 = vld [vmem:[%s1 + $0x28] sm:$0xff]
  %v30 = vld [vmem:[%s1 + $0x30] sm:$0xff]
  %v31 = vld [vmem:[%s1 + $0x38] sm:$0xff]
  %v32 = vld [vmem:[%s1 + $0x40] sm:$0xff]
  %v33 = vld [vmem:[%s1 + $0x48] sm:$0xff]
  %v34 = vld [vmem:[%s1 + $0x50] sm:$0xff]
  %v35 = vld [vmem:[%s1 + $0x58] sm:$0xff]
  %v36 = vld [vmem:[%s1 + $0x60] sm:$0xff]
  %v37 = vld [vmem:[%s1 + $0x68] sm:$0xff]
  %v38 = vld [vmem:[%s1 + $0x70] sm:$0xff]
  %v39 = vld [vmem:[%s1 + $0x78] sm:$0xff]
  %v40 = vld [vmem:[%s1 + $0x80] sm:$0xff]
  %v41 = vld [vmem:[%s1 + $0x88] sm:$0xff]
  %v42 = vld [vmem:[%s1 + $0x90] sm:$0xff]
  %v43 = vld [vmem:[%s1 + $0x98] sm:$0xff]
  %v44 = vld [vmem:[%s1 + $0xa0] sm:$0xff]
  %v45 = vld [vmem:[%s1 + $0xa8] sm:$0xff]
  %v46 = vld [vmem:[%s1 + $0xb0] sm:$0xff]
  %v47 = vld [vmem:[%s1 + $0xb8] sm:$0xff]
  %v48 = vld [vmem:[%s1 + $0xc0] sm:$0xff]
  %v49 = vld [vmem:[%s1 + $0xc8] sm:$0xff]
  %v50 = vld [vmem:[%s1 + $0xd0] sm:$0xff]
  %v51 = vld [vmem:[%s1 + $0xd8] sm:$0xff]
  %v52 = vld [vmem:[%s1 + $0xe0] sm:$0xff]
  %v53 = vld [vmem:[%s1 + $0xe8] sm:$0xff]
  %v54 = vld [vmem:[%s1 + $0xf0] sm:$0xff]
  %v55 = vld [vmem:[%s1 + $0xf8] sm:$0xff]
  %v56 = vld [vmem:[%s2] sm:$0xff]
  %v57 = vld [vmem:[%s2 + $0x8] sm:$0xff]
  %v60 = vlaneseq
  %v61 = vshrl.u32 %v60, 7
  %v62 = vsub.s32 0, %v61
  %v63 = vrot.slane %v56, %v62
  %v64 = vlaneseq
  %v65 = vshrl.u32 %v64, 7
  %v66 = vsub.s32 1, %v65
  %v67 = vrot.slane %v56, %v66
  %v68 = vlaneseq
  %v69 = vshrl.u32 %v68, 7
  %v70 = vsub.s32 2, %v69
  %v71 = vrot.slane %v56, %v70
  %v72 = vlaneseq
  %v73 = vshrl.u32 %v72, 7
  %v74 = vsub.s32 3, %v73
  %v75 = vrot.slane %v56, %v74
  %v76 = vlaneseq
  %v77 = vshrl.u32 %v76, 7
  %v78 = vsub.s32 4, %v77
  %v79 = vrot.slane %v56, %v78
  %v80 = vlaneseq
  %v81 = vshrl.u32 %v80, 7
  %v82 = vsub.s32 5, %v81
  %v83 = vrot.slane %v56, %v82
  %v84 = vlaneseq
  %v85 = vshrl.u32 %v84, 7
  %v86 = vsub.s32 6, %v85
  %v87 = vrot.slane %v56, %v86
  %v88 = vlaneseq
  %v89 = vshrl.u32 %v88, 7
  %v90 = vsub.s32 7, %v89
  %v91 = vrot.slane %v56, %v90
  %v92 = vlaneseq
  %v93 = vshrl.u32 %v92, 7
  %v94 = vsub.s32 0, %v93
  %v95 = vrot.slane %v57, %v94
  %v96 = vlaneseq
  %v97 = vshrl.u32 %v96, 7
  %v98 = vsub.s32 1, %v97
  %v99 = vrot.slane %v57, %v98
  %v100 = vlaneseq
  %v101 = vshrl.u32 %v100, 7
  %v102 = vsub.s32 2, %v101
  %v103 = vrot.slane %v57, %v102
  %v104 = vlaneseq
  %v105 = vshrl.u32 %v104, 7
  %v106 = vsub.s32 3, %v105
  %v107 = vrot.slane %v57, %v106
  %v108 = vlaneseq
  %v109 = vshrl.u32 %v108, 7
  %v110 = vsub.s32 4, %v109
  %v111 = vrot.slane %v57, %v110
  %v112 = vlaneseq
  %v113 = vshrl.u32 %v112, 7
  %v114 = vsub.s32 5, %v113
  %v115 = vrot.slane %v57, %v114
  %v116 = vlaneseq
  %v117 = vshrl.u32 %v116, 7
  %v118 = vsub.s32 6, %v117
  %v119 = vrot.slane %v57, %v118
  %v120 = vlaneseq
  %v121 = vshrl.u32 %v120, 7
  %v122 = vsub.s32 7, %v121
  %v123 = vrot.slane %v57, %v122
  %v172 = vunpack.c.l.b16 %v24
  %v173 = vunpack.c.h.b16 %v24
  %v174 = vunpack.c.l.b16 %v25
  %v175 = vunpack.c.h.b16 %v25
  %v176 = vunpack.c.l.b16 %v26
  %v177 = vunpack.c.h.b16 %v26
  %v178 = vunpack.c.l.b16 %v27
  %v179 = vunpack.c.h.b16 %v27
  %v180 = vunpack.c.l.b16 %v28
  %v181 = vunpack.c.h.b16 %v28
  %v182 = vunpack.c.l.b16 %v29
  %v183 = vunpack.c.h.b16 %v29
  %v184 = vunpack.c.l.b16 %v30
  %v185 = vunpack.c.h.b16 %v30
  %v186 = vunpack.c.l.b16 %v31
  %v187 = vunpack.c.h.b16 %v31
  %v188 = vunpack.c.l.b16 %v32
  %v189 = vunpack.c.h.b16 %v32
  %v190 = vunpack.c.l.b16 %v33
  %v191 = vunpack.c.h.b16 %v33
  %v192 = vunpack.c.l.b16 %v34
  %v193 = vunpack.c.h.b16 %v34
  %v194 = vunpack.c.l.b16 %v35
  %v195 = vunpack.c.h.b16 %v35
  %v196 = vunpack.c.l.b16 %v36
  %v197 = vunpack.c.h.b16 %v36
  %v198 = vunpack.c.l.b16 %v37
  %v199 = vunpack.c.h.b16 %v37
  %v200 = vunpack.c.l.b16 %v38
  %v201 = vunpack.c.h.b16 %v38
  %v202 = vunpack.c.l.b16 %v39
  %v203 = vunpack.c.h.b16 %v39
  %v204 = vunpack.c.l.b16 %v40
  %v205 = vunpack.c.h.b16 %v40
  %v206 = vunpack.c.l.b16 %v41
  %v207 = vunpack.c.h.b16 %v41
  %v208 = vunpack.c.l.b16 %v42
  %v209 = vunpack.c.h.b16 %v42
  %v210 = vunpack.c.l.b16 %v43
  %v211 = vunpack.c.h.b16 %v43
  %v212 = vunpack.c.l.b16 %v44
  %v213 = vunpack.c.h.b16 %v44
  %v214 = vunpack.c.l.b16 %v45
  %v215 = vunpack.c.h.b16 %v45
  %v216 = vunpack.c.l.b16 %v46
  %v217 = vunpack.c.h.b16 %v46
  %v218 = vunpack.c.l.b16 %v47
  %v219 = vunpack.c.h.b16 %v47
  %v220 = vunpack.c.l.b16 %v48
  %v221 = vunpack.c.h.b16 %v48
  %v222 = vunpack.c.l.b16 %v49
  %v223 = vunpack.c.h.b16 %v49
  %v224 = vunpack.c.l.b16 %v50
  %v225 = vunpack.c.h.b16 %v50
  %v226 = vunpack.c.l.b16 %v51
  %v227 = vunpack.c.h.b16 %v51
  %v228 = vunpack.c.l.b16 %v52
  %v229 = vunpack.c.h.b16 %v52
  %v230 = vunpack.c.l.b16 %v53
  %v231 = vunpack.c.h.b16 %v53
  %v232 = vunpack.c.l.b16 %v54
  %v233 = vunpack.c.h.b16 %v54
  %v234 = vunpack.c.l.b16 %v55
  %v235 = vunpack.c.h.b16 %v55
  %v236 = vpack.c.b16 %v188, %v172
  %v237 = vpack.c.b16 %v189, %v173
  %v238 = vpack.c.b16 %v190, %v174
  %v239 = vpack.c.b16 %v191, %v175
  %v240 = vpack.c.b16 %v192, %v176
  %v241 = vpack.c.b16 %v193, %v177
  %v242 = vpack.c.b16 %v194, %v178
  %v243 = vpack.c.b16 %v195, %v179
  %v244 = vpack.c.b16 %v196, %v180
  %v245 = vpack.c.b16 %v197, %v181
  %v246 = vpack.c.b16 %v198, %v182
  %v247 = vpack.c.b16 %v199, %v183
  %v248 = vpack.c.b16 %v200, %v184
  %v249 = vpack.c.b16 %v201, %v185
  %v250 = vpack.c.b16 %v202, %v186
  %v251 = vpack.c.b16 %v203, %v187
  %v252 = vpack.c.b16 %v220, %v204
  %v253 = vpack.c.b16 %v221, %v205
  %v254 = vpack.c.b16 %v222, %v206
  %v255 = vpack.c.b16 %v223, %v207
  %v256 = vpack.c.b16 %v224, %v208
  %v257 = vpack.c.b16 %v225, %v209
  %v258 = vpack.c.b16 %v226, %v210
  %v259 = vpack.c.b16 %v227, %v211
  %v260 = vpack.c.b16 %v228, %v212
  %v261 = vpack.c.b16 %v229, %v213
  %v262 = vpack.c.b16 %v230, %v214
  %v263 = vpack.c.b16 %v231, %v215
  %v264 = vpack.c.b16 %v232, %v216
  %v265 = vpack.c.b16 %v233, %v217
  %v266 = vpack.c.b16 %v234, %v218
  %v267 = vpack.c.b16 %v235, %v219
  %vm300 = vcmask 261120
  %v302 = vsel %vm300, %v23, 0
  %304 = vmatprep.subr.bf16.mxu0 %v237
  %305 = vmatpush1.bf16.msra.mxu0 %v236
  %306 = vmatprep.subr.bf16.mxu0 %v253
  %307 = vmatpush1.bf16.msra.mxu0 %v252
  %308 = vmatprep.subr.bf16.mxu0 0
  %309 = vmatpush1.bf16.msra.mxu0 0
  %310 = vmatprep.subr.bf16.mxu0 0
  %311 = vmatpush1.bf16.msra.mxu0 0
  %312 = vmatprep.subr.bf16.mxu0 0
  %313 = vmatpush1.bf16.msra.mxu0 0
  %314 = vmatprep.subr.bf16.mxu0 0
  %315 = vmatpush1.bf16.msra.mxu0 0
  %316 = vmatprep.subr.bf16.mxu0 0
  %317 = vmatpush1.bf16.msra.mxu0 0
  %318 = vmatprep.subr.bf16.mxu0 0
  %319 = vmatpush1.bf16.msra.mxu0 0
  %320 = vmatprep.subr.bf16.mxu0 0
  %321 = vmatpush1.bf16.msra.mxu0 0
  %322 = vmatprep.subr.bf16.mxu0 0
  %323 = vmatpush1.bf16.msra.mxu0 0
  %324 = vmatprep.subr.bf16.mxu0 0
  %325 = vmatpush1.bf16.msra.mxu0 0
  %326 = vmatprep.subr.bf16.mxu0 0
  %327 = vmatpush1.bf16.msra.mxu0 0
  %328 = vmatprep.subr.bf16.mxu0 0
  %329 = vmatpush1.bf16.msra.mxu0 0
  %330 = vmatprep.subr.bf16.mxu0 0
  %331 = vmatpush1.bf16.msra.mxu0 0
  %332 = vmatprep.subr.bf16.mxu0 0
  %333 = vmatpush1.bf16.msra.mxu0 0
  %334 = vmatprep.subr.bf16.mxu0 0
  %335 = vmatpush1.bf16.msra.mxu0 0
  %336 = vmatprep.mubr.bf16.mxu0 0
  %337 = vmatmul.mubr.bf16.gmra.mrb[0].mxu0 %v302
  %v338 = vpop.f32.mrb[0].mxu0
  %v339 = vadd.f32 %v63, %v338
  %v340 = vpop.f32.mrb[0].mxu0
  %v341 = vadd.f32 %v67, %v340
  %v342 = vpop.f32.mrb[0].mxu0
  %v343 = vadd.f32 %v63, %v342
  %v344 = vpop.f32.mrb[0].mxu0
  %v345 = vadd.f32 %v67, %v344
  %346 = vdwg.mxu0
  %347 = vmatprep.subr.bf16.mxu0 %v239
  %348 = vmatpush1.bf16.msra.mxu0 %v238
  %349 = vmatprep.subr.bf16.mxu0 %v255
  %350 = vmatpush1.bf16.msra.mxu0 %v254
  %351 = vmatprep.subr.bf16.mxu0 0
  %352 = vmatpush1.bf16.msra.mxu0 0
  %353 = vmatprep.subr.bf16.mxu0 0
  %354 = vmatpush1.bf16.msra.mxu0 0
  %355 = vmatprep.subr.bf16.mxu0 0
  %356 = vmatpush1.bf16.msra.mxu0 0
  %357 = vmatprep.subr.bf16.mxu0 0
  %358 = vmatpush1.bf16.msra.mxu0 0
  %359 = vmatprep.subr.bf16.mxu0 0
  %360 = vmatpush1.bf16.msra.mxu0 0
  %361 = vmatprep.subr.bf16.mxu0 0
  %362 = vmatpush1.bf16.msra.mxu0 0
  %363 = vmatprep.subr.bf16.mxu0 0
  %364 = vmatpush1.bf16.msra.mxu0 0
  %365 = vmatprep.subr.bf16.mxu0 0
  %366 = vmatpush1.bf16.msra.mxu0 0
  %367 = vmatprep.subr.bf16.mxu0 0
  %368 = vmatpush1.bf16.msra.mxu0 0
  %369 = vmatprep.subr.bf16.mxu0 0
  %370 = vmatpush1.bf16.msra.mxu0 0
  %371 = vmatprep.subr.bf16.mxu0 0
  %372 = vmatpush1.bf16.msra.mxu0 0
  %373 = vmatprep.subr.bf16.mxu0 0
  %374 = vmatpush1.bf16.msra.mxu0 0
  %375 = vmatprep.subr.bf16.mxu0 0
  %376 = vmatpush1.bf16.msra.mxu0 0
  %377 = vmatprep.subr.bf16.mxu0 0
  %378 = vmatpush1.bf16.msra.mxu0 0
  %379 = vmatprep.mubr.bf16.mxu0 0
  %380 = vmatmul.mubr.bf16.gmra.mrb[0].mxu0 %v302
  %v381 = vpop.f32.mrb[0].mxu0
  %v382 = vadd.f32 %v71, %v381
  %v383 = vpop.f32.mrb[0].mxu0
  %v384 = vadd.f32 %v75, %v383
  %v385 = vpop.f32.mrb[0].mxu0
  %v386 = vadd.f32 %v71, %v385
  %v387 = vpop.f32.mrb[0].mxu0
  %v388 = vadd.f32 %v75, %v387
  %389 = vdwg.mxu0
  %390 = vmatprep.subr.bf16.mxu0 %v241
  %391 = vmatpush1.bf16.msra.mxu0 %v240
  %392 = vmatprep.subr.bf16.mxu0 %v257
  %393 = vmatpush1.bf16.msra.mxu0 %v256
  %394 = vmatprep.subr.bf16.mxu0 0
  %395 = vmatpush1.bf16.msra.mxu0 0
  %396 = vmatprep.subr.bf16.mxu0 0
  %397 = vmatpush1.bf16.msra.mxu0 0
  %398 = vmatprep.subr.bf16.mxu0 0
  %399 = vmatpush1.bf16.msra.mxu0 0
  %400 = vmatprep.subr.bf16.mxu0 0
  %401 = vmatpush1.bf16.msra.mxu0 0
  %402 = vmatprep.subr.bf16.mxu0 0
  %403 = vmatpush1.bf16.msra.mxu0 0
  %404 = vmatprep.subr.bf16.mxu0 0
  %405 = vmatpush1.bf16.msra.mxu0 0
  %406 = vmatprep.subr.bf16.mxu0 0
  %407 = vmatpush1.bf16.msra.mxu0 0
  %408 = vmatprep.subr.bf16.mxu0 0
  %409 = vmatpush1.bf16.msra.mxu0 0
  %410 = vmatprep.subr.bf16.mxu0 0
  %411 = vmatpush1.bf16.msra.mxu0 0
  %412 = vmatprep.subr.bf16.mxu0 0
  %413 = vmatpush1.bf16.msra.mxu0 0
  %414 = vmatprep.subr.bf16.mxu0 0
  %415 = vmatpush1.bf16.msra.mxu0 0
  %416 = vmatprep.subr.bf16.mxu0 0
  %417 = vmatpush1.bf16.msra.mxu0 0
  %418 = vmatprep.subr.bf16.mxu0 0
  %419 = vmatpush1.bf16.msra.mxu0 0
  %420 = vmatprep.subr.bf16.mxu0 0
  %421 = vmatpush1.bf16.msra.mxu0 0
  %422 = vmatprep.mubr.bf16.mxu0 0
  %423 = vmatmul.mubr.bf16.gmra.mrb[0].mxu0 %v302
  %v424 = vpop.f32.mrb[0].mxu0
  %v425 = vadd.f32 %v79, %v424
  %v426 = vpop.f32.mrb[0].mxu0
  %v427 = vadd.f32 %v83, %v426
  %v428 = vpop.f32.mrb[0].mxu0
  %v429 = vadd.f32 %v79, %v428
  %v430 = vpop.f32.mrb[0].mxu0
  %v431 = vadd.f32 %v83, %v430
  %432 = vdwg.mxu0
  %433 = vmatprep.subr.bf16.mxu0 %v243
  %434 = vmatpush1.bf16.msra.mxu0 %v242
  %435 = vmatprep.subr.bf16.mxu0 %v259
  %436 = vmatpush1.bf16.msra.mxu0 %v258
  %437 = vmatprep.subr.bf16.mxu0 0
  %438 = vmatpush1.bf16.msra.mxu0 0
  %439 = vmatprep.subr.bf16.mxu0 0
  %440 = vmatpush1.bf16.msra.mxu0 0
  %441 = vmatprep.subr.bf16.mxu0 0
  %442 = vmatpush1.bf16.msra.mxu0 0
  %443 = vmatprep.subr.bf16.mxu0 0
  %444 = vmatpush1.bf16.msra.mxu0 0
  %445 = vmatprep.subr.bf16.mxu0 0
  %446 = vmatpush1.bf16.msra.mxu0 0
  %447 = vmatprep.subr.bf16.mxu0 0
  %448 = vmatpush1.bf16.msra.mxu0 0
  %449 = vmatprep.subr.bf16.mxu0 0
  %450 = vmatpush1.bf16.msra.mxu0 0
  %451 = vmatprep.subr.bf16.mxu0 0
  %452 = vmatpush1.bf16.msra.mxu0 0
  %453 = vmatprep.subr.bf16.mxu0 0
  %454 = vmatpush1.bf16.msra.mxu0 0
  %455 = vmatprep.subr.bf16.mxu0 0
  %456 = vmatpush1.bf16.msra.mxu0 0
  %457 = vmatprep.subr.bf16.mxu0 0
  %458 = vmatpush1.bf16.msra.mxu0 0
  %459 = vmatprep.subr.bf16.mxu0 0
  %460 = vmatpush1.bf16.msra.mxu0 0
  %461 = vmatprep.subr.bf16.mxu0 0
  %462 = vmatpush1.bf16.msra.mxu0 0
  %463 = vmatprep.subr.bf16.mxu0 0
  %464 = vmatpush1.bf16.msra.mxu0 0
  %465 = vmatprep.mubr.bf16.mxu0 0
  %466 = vmatmul.mubr.bf16.gmra.mrb[0].mxu0 %v302
  %v467 = vpop.f32.mrb[0].mxu0
  %v468 = vadd.f32 %v87, %v467
  %v469 = vpop.f32.mrb[0].mxu0
  %v470 = vadd.f32 %v91, %v469
  %v471 = vpop.f32.mrb[0].mxu0
  %v472 = vadd.f32 %v87, %v471
  %v473 = vpop.f32.mrb[0].mxu0
  %v474 = vadd.f32 %v91, %v473
  %475 = vdwg.mxu0
  %476 = vmatprep.subr.bf16.mxu0 %v245
  %477 = vmatpush1.bf16.msra.mxu0 %v244
  %478 = vmatprep.subr.bf16.mxu0 %v261
  %479 = vmatpush1.bf16.msra.mxu0 %v260
  %480 = vmatprep.subr.bf16.mxu0 0
  %481 = vmatpush1.bf16.msra.mxu0 0
  %482 = vmatprep.subr.bf16.mxu0 0
  %483 = vmatpush1.bf16.msra.mxu0 0
  %484 = vmatprep.subr.bf16.mxu0 0
  %485 = vmatpush1.bf16.msra.mxu0 0
  %486 = vmatprep.subr.bf16.mxu0 0
  %487 = vmatpush1.bf16.msra.mxu0 0
  %488 = vmatprep.subr.bf16.mxu0 0
  %489 = vmatpush1.bf16.msra.mxu0 0
  %490 = vmatprep.subr.bf16.mxu0 0
  %491 = vmatpush1.bf16.msra.mxu0 0
  %492 = vmatprep.subr.bf16.mxu0 0
  %493 = vmatpush1.bf16.msra.mxu0 0
  %494 = vmatprep.subr.bf16.mxu0 0
  %495 = vmatpush1.bf16.msra.mxu0 0
  %496 = vmatprep.subr.bf16.mxu0 0
  %497 = vmatpush1.bf16.msra.mxu0 0
  %498 = vmatprep.subr.bf16.mxu0 0
  %499 = vmatpush1.bf16.msra.mxu0 0
  %500 = vmatprep.subr.bf16.mxu0 0
  %501 = vmatpush1.bf16.msra.mxu0 0
  %502 = vmatprep.subr.bf16.mxu0 0
  %503 = vmatpush1.bf16.msra.mxu0 0
  %504 = vmatprep.subr.bf16.mxu0 0
  %505 = vmatpush1.bf16.msra.mxu0 0
  %506 = vmatprep.subr.bf16.mxu0 0
  %507 = vmatpush1.bf16.msra.mxu0 0
  %508 = vmatprep.mubr.bf16.mxu0 0
  %509 = vmatmul.mubr.bf16.gmra.mrb[0].mxu0 %v302
  %v510 = vpop.f32.mrb[0].mxu0
  %v511 = vadd.f32 %v95, %v510
  %v512 = vpop.f32.mrb[0].mxu0
  %v513 = vadd.f32 %v99, %v512
  %v514 = vpop.f32.mrb[0].mxu0
  %v515 = vadd.f32 %v95, %v514
  %v516 = vpop.f32.mrb[0].mxu0
  %v517 = vadd.f32 %v99, %v516
  %518 = vdwg.mxu0
  %519 = vmatprep.subr.bf16.mxu0 %v247
  %520 = vmatpush1.bf16.msra.mxu0 %v246
  %521 = vmatprep.subr.bf16.mxu0 %v263
  %522 = vmatpush1.bf16.msra.mxu0 %v262
  %523 = vmatprep.subr.bf16.mxu0 0
  %524 = vmatpush1.bf16.msra.mxu0 0
  %525 = vmatprep.subr.bf16.mxu0 0
  %526 = vmatpush1.bf16.msra.mxu0 0
  %527 = vmatprep.subr.bf16.mxu0 0
  %528 = vmatpush1.bf16.msra.mxu0 0
  %529 = vmatprep.subr.bf16.mxu0 0
  %530 = vmatpush1.bf16.msra.mxu0 0
  %531 = vmatprep.subr.bf16.mxu0 0
  %532 = vmatpush1.bf16.msra.mxu0 0
  %533 = vmatprep.subr.bf16.mxu0 0
  %534 = vmatpush1.bf16.msra.mxu0 0
  %535 = vmatprep.subr.bf16.mxu0 0
  %536 = vmatpush1.bf16.msra.mxu0 0
  %537 = vmatprep.subr.bf16.mxu0 0
  %538 = vmatpush1.bf16.msra.mxu0 0
  %539 = vmatprep.subr.bf16.mxu0 0
  %540 = vmatpush1.bf16.msra.mxu0 0
  %541 = vmatprep.subr.bf16.mxu0 0
  %542 = vmatpush1.bf16.msra.mxu0 0
  %543 = vmatprep.subr.bf16.mxu0 0
  %544 = vmatpush1.bf16.msra.mxu0 0
  %545 = vmatprep.subr.bf16.mxu0 0
  %546 = vmatpush1.bf16.msra.mxu0 0
  %547 = vmatprep.subr.bf16.mxu0 0
  %548 = vmatpush1.bf16.msra.mxu0 0
  %549 = vmatprep.subr.bf16.mxu0 0
  %550 = vmatpush1.bf16.msra.mxu0 0
  %551 = vmatprep.mubr.bf16.mxu0 0
  %552 = vmatmul.mubr.bf16.gmra.mrb[0].mxu0 %v302
  %v553 = vpop.f32.mrb[0].mxu0
  %v554 = vadd.f32 %v103, %v553
  %v555 = vpop.f32.mrb[0].mxu0
  %v556 = vadd.f32 %v107, %v555
  %v557 = vpop.f32.mrb[0].mxu0
  %v558 = vadd.f32 %v103, %v557
  %v559 = vpop.f32.mrb[0].mxu0
  %v560 = vadd.f32 %v107, %v559
  %561 = vdwg.mxu0
  %562 = vmatprep.subr.bf16.mxu0 %v249
  %563 = vmatpush1.bf16.msra.mxu0 %v248
  %564 = vmatprep.subr.bf16.mxu0 %v265
  %565 = vmatpush1.bf16.msra.mxu0 %v264
  %566 = vmatprep.subr.bf16.mxu0 0
  %567 = vmatpush1.bf16.msra.mxu0 0
  %568 = vmatprep.subr.bf16.mxu0 0
  %569 = vmatpush1.bf16.msra.mxu0 0
  %570 = vmatprep.subr.bf16.mxu0 0
  %571 = vmatpush1.bf16.msra.mxu0 0
  %572 = vmatprep.subr.bf16.mxu0 0
  %573 = vmatpush1.bf16.msra.mxu0 0
  %574 = vmatprep.subr.bf16.mxu0 0
  %575 = vmatpush1.bf16.msra.mxu0 0
  %576 = vmatprep.subr.bf16.mxu0 0
  %577 = vmatpush1.bf16.msra.mxu0 0
  %578 = vmatprep.subr.bf16.mxu0 0
  %579 = vmatpush1.bf16.msra.mxu0 0
  %580 = vmatprep.subr.bf16.mxu0 0
  %581 = vmatpush1.bf16.msra.mxu0 0
  %582 = vmatprep.subr.bf16.mxu0 0
  %583 = vmatpush1.bf16.msra.mxu0 0
  %584 = vmatprep.subr.bf16.mxu0 0
  %585 = vmatpush1.bf16.msra.mxu0 0
  %586 = vmatprep.subr.bf16.mxu0 0
  %587 = vmatpush1.bf16.msra.mxu0 0
  %588 = vmatprep.subr.bf16.mxu0 0
  %589 = vmatpush1.bf16.msra.mxu0 0
  %590 = vmatprep.subr.bf16.mxu0 0
  %591 = vmatpush1.bf16.msra.mxu0 0
  %592 = vmatprep.subr.bf16.mxu0 0
  %593 = vmatpush1.bf16.msra.mxu0 0
  %594 = vmatprep.mubr.bf16.mxu0 0
  %595 = vmatmul.mubr.bf16.gmra.mrb[0].mxu0 %v302
  %v596 = vpop.f32.mrb[0].mxu0
  %v597 = vadd.f32 %v111, %v596
  %v598 = vpop.f32.mrb[0].mxu0
  %v599 = vadd.f32 %v115, %v598
  %v600 = vpop.f32.mrb[0].mxu0
  %v601 = vadd.f32 %v111, %v600
  %v602 = vpop.f32.mrb[0].mxu0
  %v603 = vadd.f32 %v115, %v602
  %604 = vdwg.mxu0
  %605 = vmatprep.subr.bf16.mxu0 %v251
  %606 = vmatpush1.bf16.msra.mxu0 %v250
  %607 = vmatprep.subr.bf16.mxu0 %v267
  %608 = vmatpush1.bf16.msra.mxu0 %v266
  %609 = vmatprep.subr.bf16.mxu0 0
  %610 = vmatpush1.bf16.msra.mxu0 0
  %611 = vmatprep.subr.bf16.mxu0 0
  %612 = vmatpush1.bf16.msra.mxu0 0
  %613 = vmatprep.subr.bf16.mxu0 0
  %614 = vmatpush1.bf16.msra.mxu0 0
  %615 = vmatprep.subr.bf16.mxu0 0
  %616 = vmatpush1.bf16.msra.mxu0 0
  %617 = vmatprep.subr.bf16.mxu0 0
  %618 = vmatpush1.bf16.msra.mxu0 0
  %619 = vmatprep.subr.bf16.mxu0 0
  %620 = vmatpush1.bf16.msra.mxu0 0
  %621 = vmatprep.subr.bf16.mxu0 0
  %622 = vmatpush1.bf16.msra.mxu0 0
  %623 = vmatprep.subr.bf16.mxu0 0
  %624 = vmatpush1.bf16.msra.mxu0 0
  %625 = vmatprep.subr.bf16.mxu0 0
  %626 = vmatpush1.bf16.msra.mxu0 0
  %627 = vmatprep.subr.bf16.mxu0 0
  %628 = vmatpush1.bf16.msra.mxu0 0
  %629 = vmatprep.subr.bf16.mxu0 0
  %630 = vmatpush1.bf16.msra.mxu0 0
  %631 = vmatprep.subr.bf16.mxu0 0
  %632 = vmatpush1.bf16.msra.mxu0 0
  %633 = vmatprep.subr.bf16.mxu0 0
  %634 = vmatpush1.bf16.msra.mxu0 0
  %635 = vmatprep.subr.bf16.mxu0 0
  %636 = vmatpush1.bf16.msra.mxu0 0
  %637 = vmatprep.mubr.bf16.mxu0 0
  %638 = vmatmul.mubr.bf16.gmra.mrb[0].mxu0 %v302
  %v639 = vpop.f32.mrb[0].mxu0
  %v640 = vadd.f32 %v119, %v639
  %v641 = vpop.f32.mrb[0].mxu0
  %v642 = vadd.f32 %v123, %v641
  %v643 = vpop.f32.mrb[0].mxu0
  %v644 = vadd.f32 %v119, %v643
  %v645 = vpop.f32.mrb[0].mxu0
  %v646 = vadd.f32 %v123, %v645
  %647 = vdwg.mxu0
  %v648 = vmax.f32 %v339, 0.0
  %v649 = vmax.f32 %v341, 0.0
  %v650 = vmax.f32 %v382, 0.0
  %v651 = vmax.f32 %v384, 0.0
  %v652 = vmax.f32 %v425, 0.0
  %v653 = vmax.f32 %v427, 0.0
  %v654 = vmax.f32 %v468, 0.0
  %v655 = vmax.f32 %v470, 0.0
  %v656 = vmax.f32 %v511, 0.0
  %v657 = vmax.f32 %v513, 0.0
  %v658 = vmax.f32 %v554, 0.0
  %v659 = vmax.f32 %v556, 0.0
  %v660 = vmax.f32 %v597, 0.0
  %v661 = vmax.f32 %v599, 0.0
  %v662 = vmax.f32 %v640, 0.0
  %v663 = vmax.f32 %v642, 0.0
  %v664 = vmax.f32 %v343, 0.0
  %v665 = vmax.f32 %v345, 0.0
  %v666 = vmax.f32 %v386, 0.0
  %v667 = vmax.f32 %v388, 0.0
  %v668 = vmax.f32 %v429, 0.0
  %v669 = vmax.f32 %v431, 0.0
  %v670 = vmax.f32 %v472, 0.0
  %v671 = vmax.f32 %v474, 0.0
  %v672 = vmax.f32 %v515, 0.0
  %v673 = vmax.f32 %v517, 0.0
  %v674 = vmax.f32 %v558, 0.0
  %v675 = vmax.f32 %v560, 0.0
  %v676 = vmax.f32 %v601, 0.0
  %v677 = vmax.f32 %v603, 0.0
  %v678 = vmax.f32 %v644, 0.0
  %v679 = vmax.f32 %v646, 0.0
  %v680 = vpack.c.bf16 %v664, %v648
  %v681 = vpack.c.bf16 %v665, %v649
  %v682 = vpack.c.bf16 %v666, %v650
  %v683 = vpack.c.bf16 %v667, %v651
  %v684 = vpack.c.bf16 %v668, %v652
  %v685 = vpack.c.bf16 %v669, %v653
  %v686 = vpack.c.bf16 %v670, %v654
  %v687 = vpack.c.bf16 %v671, %v655
  %v688 = vpack.c.bf16 %v672, %v656
  %v689 = vpack.c.bf16 %v673, %v657
  %v690 = vpack.c.bf16 %v674, %v658
  %v691 = vpack.c.bf16 %v675, %v659
  %v692 = vpack.c.bf16 %v676, %v660
  %v693 = vpack.c.bf16 %v677, %v661
  %v694 = vpack.c.bf16 %v678, %v662
  %v695 = vpack.c.bf16 %v679, %v663
  %v696 = vld [vmem:[%s3] sm:$0xf]
  %v697 = vld [vmem:[%s3 + $0x4] sm:$0xf]
  %v698 = vld [vmem:[%s3 + $0x8] sm:$0xf]
  %v699 = vld [vmem:[%s3 + $0xc] sm:$0xf]
  %v700 = vld [vmem:[%s3 + $0x10] sm:$0xf]
  %v701 = vld [vmem:[%s3 + $0x14] sm:$0xf]
  %v702 = vld [vmem:[%s3 + $0x18] sm:$0xf]
  %v703 = vld [vmem:[%s3 + $0x1c] sm:$0xf]
  %v704 = vld [vmem:[%s3 + $0x20] sm:$0xf]
  %v705 = vld [vmem:[%s3 + $0x24] sm:$0xf]
  %v706 = vld [vmem:[%s3 + $0x28] sm:$0xf]
  %v707 = vld [vmem:[%s3 + $0x2c] sm:$0xf]
  %v708 = vld [vmem:[%s3 + $0x30] sm:$0xf]
  %v709 = vld [vmem:[%s3 + $0x34] sm:$0xf]
  %v710 = vld [vmem:[%s3 + $0x38] sm:$0xf]
  %v711 = vld [vmem:[%s3 + $0x3c] sm:$0xf]
  %v712 = vld [vmem:[%s3 + $0x40] sm:$0xf]
  %v713 = vld [vmem:[%s3 + $0x44] sm:$0xf]
  %v714 = vld [vmem:[%s3 + $0x48] sm:$0xf]
  %v715 = vld [vmem:[%s3 + $0x4c] sm:$0xf]
  %v716 = vld [vmem:[%s3 + $0x50] sm:$0xf]
  %v717 = vld [vmem:[%s3 + $0x54] sm:$0xf]
  %v718 = vld [vmem:[%s3 + $0x58] sm:$0xf]
  %v719 = vld [vmem:[%s3 + $0x5c] sm:$0xf]
  %v720 = vld [vmem:[%s3 + $0x60] sm:$0xf]
  %v721 = vld [vmem:[%s3 + $0x64] sm:$0xf]
  %v722 = vld [vmem:[%s3 + $0x68] sm:$0xf]
  %v723 = vld [vmem:[%s3 + $0x6c] sm:$0xf]
  %v724 = vld [vmem:[%s3 + $0x70] sm:$0xf]
  %v725 = vld [vmem:[%s3 + $0x74] sm:$0xf]
  %v726 = vld [vmem:[%s3 + $0x78] sm:$0xf]
  %v727 = vld [vmem:[%s3 + $0x7c] sm:$0xf]
  %v728 = vld [vmem:[%s3 + $0x80] sm:$0xf]
  %v729 = vld [vmem:[%s3 + $0x84] sm:$0xf]
  %v730 = vld [vmem:[%s3 + $0x88] sm:$0xf]
  %v731 = vld [vmem:[%s3 + $0x8c] sm:$0xf]
  %v732 = vld [vmem:[%s3 + $0x90] sm:$0xf]
  %v733 = vld [vmem:[%s3 + $0x94] sm:$0xf]
  %v734 = vld [vmem:[%s3 + $0x98] sm:$0xf]
  %v735 = vld [vmem:[%s3 + $0x9c] sm:$0xf]
  %v736 = vld [vmem:[%s3 + $0xa0] sm:$0xf]
  %v737 = vld [vmem:[%s3 + $0xa4] sm:$0xf]
  %v738 = vld [vmem:[%s3 + $0xa8] sm:$0xf]
  %v739 = vld [vmem:[%s3 + $0xac] sm:$0xf]
  %v740 = vld [vmem:[%s3 + $0xb0] sm:$0xf]
  %v741 = vld [vmem:[%s3 + $0xb4] sm:$0xf]
  %v742 = vld [vmem:[%s3 + $0xb8] sm:$0xf]
  %v743 = vld [vmem:[%s3 + $0xbc] sm:$0xf]
  %v744 = vld [vmem:[%s3 + $0xc0] sm:$0xf]
  %v745 = vld [vmem:[%s3 + $0xc4] sm:$0xf]
  %v746 = vld [vmem:[%s3 + $0xc8] sm:$0xf]
  %v747 = vld [vmem:[%s3 + $0xcc] sm:$0xf]
  %v748 = vld [vmem:[%s3 + $0xd0] sm:$0xf]
  %v749 = vld [vmem:[%s3 + $0xd4] sm:$0xf]
  %v750 = vld [vmem:[%s3 + $0xd8] sm:$0xf]
  %v751 = vld [vmem:[%s3 + $0xdc] sm:$0xf]
  %v752 = vld [vmem:[%s3 + $0xe0] sm:$0xf]
  %v753 = vld [vmem:[%s3 + $0xe4] sm:$0xf]
  %v754 = vld [vmem:[%s3 + $0xe8] sm:$0xf]
  %v755 = vld [vmem:[%s3 + $0xec] sm:$0xf]
  %v756 = vld [vmem:[%s3 + $0xf0] sm:$0xf]
  %v757 = vld [vmem:[%s3 + $0xf4] sm:$0xf]
  %v758 = vld [vmem:[%s3 + $0xf8] sm:$0xf]
  %v759 = vld [vmem:[%s3 + $0xfc] sm:$0xf]
  %v760 = vld [vmem:[%s3 + $0x100] sm:$0xf]
  %v761 = vld [vmem:[%s3 + $0x104] sm:$0xf]
  %v762 = vld [vmem:[%s3 + $0x108] sm:$0xf]
  %v763 = vld [vmem:[%s3 + $0x10c] sm:$0xf]
  %v764 = vld [vmem:[%s3 + $0x110] sm:$0xf]
  %v765 = vld [vmem:[%s3 + $0x114] sm:$0xf]
  %v766 = vld [vmem:[%s3 + $0x118] sm:$0xf]
  %v767 = vld [vmem:[%s3 + $0x11c] sm:$0xf]
  %v768 = vld [vmem:[%s3 + $0x120] sm:$0xf]
  %v769 = vld [vmem:[%s3 + $0x124] sm:$0xf]
  %v770 = vld [vmem:[%s3 + $0x128] sm:$0xf]
  %v771 = vld [vmem:[%s3 + $0x12c] sm:$0xf]
  %v772 = vld [vmem:[%s3 + $0x130] sm:$0xf]
  %v773 = vld [vmem:[%s3 + $0x134] sm:$0xf]
  %v774 = vld [vmem:[%s3 + $0x138] sm:$0xf]
  %v775 = vld [vmem:[%s3 + $0x13c] sm:$0xf]
  %v776 = vld [vmem:[%s3 + $0x140] sm:$0xf]
  %v777 = vld [vmem:[%s3 + $0x144] sm:$0xf]
  %v778 = vld [vmem:[%s3 + $0x148] sm:$0xf]
  %v779 = vld [vmem:[%s3 + $0x14c] sm:$0xf]
  %v780 = vld [vmem:[%s3 + $0x150] sm:$0xf]
  %v781 = vld [vmem:[%s3 + $0x154] sm:$0xf]
  %v782 = vld [vmem:[%s3 + $0x158] sm:$0xf]
  %v783 = vld [vmem:[%s3 + $0x15c] sm:$0xf]
  %v784 = vld [vmem:[%s3 + $0x160] sm:$0xf]
  %v785 = vld [vmem:[%s3 + $0x164] sm:$0xf]
  %v786 = vld [vmem:[%s3 + $0x168] sm:$0xf]
  %v787 = vld [vmem:[%s3 + $0x16c] sm:$0xf]
  %v788 = vld [vmem:[%s3 + $0x170] sm:$0xf]
  %v789 = vld [vmem:[%s3 + $0x174] sm:$0xf]
  %v790 = vld [vmem:[%s3 + $0x178] sm:$0xf]
  %v791 = vld [vmem:[%s3 + $0x17c] sm:$0xf]
  %v792 = vld [vmem:[%s3 + $0x180] sm:$0xf]
  %v793 = vld [vmem:[%s3 + $0x184] sm:$0xf]
  %v794 = vld [vmem:[%s3 + $0x188] sm:$0xf]
  %v795 = vld [vmem:[%s3 + $0x18c] sm:$0xf]
  %v796 = vld [vmem:[%s3 + $0x190] sm:$0xf]
  %v797 = vld [vmem:[%s3 + $0x194] sm:$0xf]
  %v798 = vld [vmem:[%s3 + $0x198] sm:$0xf]
  %v799 = vld [vmem:[%s3 + $0x19c] sm:$0xf]
  %v800 = vld [vmem:[%s3 + $0x1a0] sm:$0xf]
  %v801 = vld [vmem:[%s3 + $0x1a4] sm:$0xf]
  %v802 = vld [vmem:[%s3 + $0x1a8] sm:$0xf]
  %v803 = vld [vmem:[%s3 + $0x1ac] sm:$0xf]
  %v804 = vld [vmem:[%s3 + $0x1b0] sm:$0xf]
  %v805 = vld [vmem:[%s3 + $0x1b4] sm:$0xf]
  %v806 = vld [vmem:[%s3 + $0x1b8] sm:$0xf]
  %v807 = vld [vmem:[%s3 + $0x1bc] sm:$0xf]
  %v808 = vld [vmem:[%s3 + $0x1c0] sm:$0xf]
  %v809 = vld [vmem:[%s3 + $0x1c4] sm:$0xf]
  %v810 = vld [vmem:[%s3 + $0x1c8] sm:$0xf]
  %v811 = vld [vmem:[%s3 + $0x1cc] sm:$0xf]
  %v812 = vld [vmem:[%s3 + $0x1d0] sm:$0xf]
  %v813 = vld [vmem:[%s3 + $0x1d4] sm:$0xf]
  %v814 = vld [vmem:[%s3 + $0x1d8] sm:$0xf]
  %v815 = vld [vmem:[%s3 + $0x1dc] sm:$0xf]
  %v816 = vld [vmem:[%s3 + $0x1e0] sm:$0xf]
  %v817 = vld [vmem:[%s3 + $0x1e4] sm:$0xf]
  %v818 = vld [vmem:[%s3 + $0x1e8] sm:$0xf]
  %v819 = vld [vmem:[%s3 + $0x1ec] sm:$0xf]
  %v820 = vld [vmem:[%s3 + $0x1f0] sm:$0xf]
  %v821 = vld [vmem:[%s3 + $0x1f4] sm:$0xf]
  %v822 = vld [vmem:[%s3 + $0x1f8] sm:$0xf]
  %v823 = vld [vmem:[%s3 + $0x1fc] sm:$0xf]
  %v824 = vld [vmem:[%s3 + $0x200] sm:$0xf]
  %v825 = vld [vmem:[%s3 + $0x204] sm:$0xf]
  %v826 = vld [vmem:[%s3 + $0x208] sm:$0xf]
  %v827 = vld [vmem:[%s3 + $0x20c] sm:$0xf]
  %v828 = vld [vmem:[%s3 + $0x210] sm:$0xf]
  %v829 = vld [vmem:[%s3 + $0x214] sm:$0xf]
  %v830 = vld [vmem:[%s3 + $0x218] sm:$0xf]
  %v831 = vld [vmem:[%s3 + $0x21c] sm:$0xf]
  %v832 = vld [vmem:[%s3 + $0x220] sm:$0xf]
  %v833 = vld [vmem:[%s3 + $0x224] sm:$0xf]
  %v834 = vld [vmem:[%s3 + $0x228] sm:$0xf]
  %v835 = vld [vmem:[%s3 + $0x22c] sm:$0xf]
  %v836 = vld [vmem:[%s3 + $0x230] sm:$0xf]
  %v837 = vld [vmem:[%s3 + $0x234] sm:$0xf]
  %v838 = vld [vmem:[%s3 + $0x238] sm:$0xf]
  %v839 = vld [vmem:[%s3 + $0x23c] sm:$0xf]
  %v840 = vld [vmem:[%s3 + $0x240] sm:$0xf]
  %v841 = vld [vmem:[%s3 + $0x244] sm:$0xf]
  %v842 = vld [vmem:[%s3 + $0x248] sm:$0xf]
  %v843 = vld [vmem:[%s3 + $0x24c] sm:$0xf]
  %v844 = vld [vmem:[%s3 + $0x250] sm:$0xf]
  %v845 = vld [vmem:[%s3 + $0x254] sm:$0xf]
  %v846 = vld [vmem:[%s3 + $0x258] sm:$0xf]
  %v847 = vld [vmem:[%s3 + $0x25c] sm:$0xf]
  %v848 = vld [vmem:[%s3 + $0x260] sm:$0xf]
  %v849 = vld [vmem:[%s3 + $0x264] sm:$0xf]
  %v850 = vld [vmem:[%s3 + $0x268] sm:$0xf]
  %v851 = vld [vmem:[%s3 + $0x26c] sm:$0xf]
  %v852 = vld [vmem:[%s3 + $0x270] sm:$0xf]
  %v853 = vld [vmem:[%s3 + $0x274] sm:$0xf]
  %v854 = vld [vmem:[%s3 + $0x278] sm:$0xf]
  %v855 = vld [vmem:[%s3 + $0x27c] sm:$0xf]
  %v856 = vld [vmem:[%s3 + $0x280] sm:$0xf]
  %v857 = vld [vmem:[%s3 + $0x284] sm:$0xf]
  %v858 = vld [vmem:[%s3 + $0x288] sm:$0xf]
  %v859 = vld [vmem:[%s3 + $0x28c] sm:$0xf]
  %v860 = vld [vmem:[%s3 + $0x290] sm:$0xf]
  %v861 = vld [vmem:[%s3 + $0x294] sm:$0xf]
  %v862 = vld [vmem:[%s3 + $0x298] sm:$0xf]
  %v863 = vld [vmem:[%s3 + $0x29c] sm:$0xf]
  %v864 = vld [vmem:[%s3 + $0x2a0] sm:$0xf]
  %v865 = vld [vmem:[%s3 + $0x2a4] sm:$0xf]
  %v866 = vld [vmem:[%s3 + $0x2a8] sm:$0xf]
  %v867 = vld [vmem:[%s3 + $0x2ac] sm:$0xf]
  %v868 = vld [vmem:[%s3 + $0x2b0] sm:$0xf]
  %v869 = vld [vmem:[%s3 + $0x2b4] sm:$0xf]
  %v870 = vld [vmem:[%s3 + $0x2b8] sm:$0xf]
  %v871 = vld [vmem:[%s3 + $0x2bc] sm:$0xf]
  %v872 = vld [vmem:[%s3 + $0x2c0] sm:$0xf]
  %v873 = vld [vmem:[%s3 + $0x2c4] sm:$0xf]
  %v874 = vld [vmem:[%s3 + $0x2c8] sm:$0xf]
  %v875 = vld [vmem:[%s3 + $0x2cc] sm:$0xf]
  %v876 = vld [vmem:[%s3 + $0x2d0] sm:$0xf]
  %v877 = vld [vmem:[%s3 + $0x2d4] sm:$0xf]
  %v878 = vld [vmem:[%s3 + $0x2d8] sm:$0xf]
  %v879 = vld [vmem:[%s3 + $0x2dc] sm:$0xf]
  %v880 = vld [vmem:[%s3 + $0x2e0] sm:$0xf]
  %v881 = vld [vmem:[%s3 + $0x2e4] sm:$0xf]
  %v882 = vld [vmem:[%s3 + $0x2e8] sm:$0xf]
  %v883 = vld [vmem:[%s3 + $0x2ec] sm:$0xf]
  %v884 = vld [vmem:[%s3 + $0x2f0] sm:$0xf]
  %v885 = vld [vmem:[%s3 + $0x2f4] sm:$0xf]
  %v886 = vld [vmem:[%s3 + $0x2f8] sm:$0xf]
  %v887 = vld [vmem:[%s3 + $0x2fc] sm:$0xf]
  %v888 = vld [vmem:[%s3 + $0x300] sm:$0xf]
  %v889 = vld [vmem:[%s3 + $0x304] sm:$0xf]
  %v890 = vld [vmem:[%s3 + $0x308] sm:$0xf]
  %v891 = vld [vmem:[%s3 + $0x30c] sm:$0xf]
  %v892 = vld [vmem:[%s3 + $0x310] sm:$0xf]
  %v893 = vld [vmem:[%s3 + $0x314] sm:$0xf]
  %v894 = vld [vmem:[%s3 + $0x318] sm:$0xf]
  %v895 = vld [vmem:[%s3 + $0x31c] sm:$0xf]
  %v896 = vld [vmem:[%s3 + $0x320] sm:$0xf]
  %v897 = vld [vmem:[%s3 + $0x324] sm:$0xf]
  %v898 = vld [vmem:[%s3 + $0x328] sm:$0xf]
  %v899 = vld [vmem:[%s3 + $0x32c] sm:$0xf]
  %v900 = vld [vmem:[%s3 + $0x330] sm:$0xf]
  %v901 = vld [vmem:[%s3 + $0x334] sm:$0xf]
  %v902 = vld [vmem:[%s3 + $0x338] sm:$0xf]
  %v903 = vld [vmem:[%s3 + $0x33c] sm:$0xf]
  %v904 = vld [vmem:[%s3 + $0x340] sm:$0xf]
  %v905 = vld [vmem:[%s3 + $0x344] sm:$0xf]
  %v906 = vld [vmem:[%s3 + $0x348] sm:$0xf]
  %v907 = vld [vmem:[%s3 + $0x34c] sm:$0xf]
  %v908 = vld [vmem:[%s3 + $0x350] sm:$0xf]
  %v909 = vld [vmem:[%s3 + $0x354] sm:$0xf]
  %v910 = vld [vmem:[%s3 + $0x358] sm:$0xf]
  %v911 = vld [vmem:[%s3 + $0x35c] sm:$0xf]
  %v912 = vld [vmem:[%s3 + $0x360] sm:$0xf]
  %v913 = vld [vmem:[%s3 + $0x364] sm:$0xf]
  %v914 = vld [vmem:[%s3 + $0x368] sm:$0xf]
  %v915 = vld [vmem:[%s3 + $0x36c] sm:$0xf]
  %v916 = vld [vmem:[%s3 + $0x370] sm:$0xf]
  %v917 = vld [vmem:[%s3 + $0x374] sm:$0xf]
  %v918 = vld [vmem:[%s3 + $0x378] sm:$0xf]
  %v919 = vld [vmem:[%s3 + $0x37c] sm:$0xf]
  %v920 = vld [vmem:[%s3 + $0x380] sm:$0xf]
  %v921 = vld [vmem:[%s3 + $0x384] sm:$0xf]
  %v922 = vld [vmem:[%s3 + $0x388] sm:$0xf]
  %v923 = vld [vmem:[%s3 + $0x38c] sm:$0xf]
  %v924 = vld [vmem:[%s3 + $0x390] sm:$0xf]
  %v925 = vld [vmem:[%s3 + $0x394] sm:$0xf]
  %v926 = vld [vmem:[%s3 + $0x398] sm:$0xf]
  %v927 = vld [vmem:[%s3 + $0x39c] sm:$0xf]
  %v928 = vld [vmem:[%s3 + $0x3a0] sm:$0xf]
  %v929 = vld [vmem:[%s3 + $0x3a4] sm:$0xf]
  %v930 = vld [vmem:[%s3 + $0x3a8] sm:$0xf]
  %v931 = vld [vmem:[%s3 + $0x3ac] sm:$0xf]
  %v932 = vld [vmem:[%s3 + $0x3b0] sm:$0xf]
  %v933 = vld [vmem:[%s3 + $0x3b4] sm:$0xf]
  %v934 = vld [vmem:[%s3 + $0x3b8] sm:$0xf]
  %v935 = vld [vmem:[%s3 + $0x3bc] sm:$0xf]
  %v936 = vld [vmem:[%s3 + $0x3c0] sm:$0xf]
  %v937 = vld [vmem:[%s3 + $0x3c4] sm:$0xf]
  %v938 = vld [vmem:[%s3 + $0x3c8] sm:$0xf]
  %v939 = vld [vmem:[%s3 + $0x3cc] sm:$0xf]
  %v940 = vld [vmem:[%s3 + $0x3d0] sm:$0xf]
  %v941 = vld [vmem:[%s3 + $0x3d4] sm:$0xf]
  %v942 = vld [vmem:[%s3 + $0x3d8] sm:$0xf]
  %v943 = vld [vmem:[%s3 + $0x3dc] sm:$0xf]
  %v944 = vld [vmem:[%s3 + $0x3e0] sm:$0xf]
  %v945 = vld [vmem:[%s3 + $0x3e4] sm:$0xf]
  %v946 = vld [vmem:[%s3 + $0x3e8] sm:$0xf]
  %v947 = vld [vmem:[%s3 + $0x3ec] sm:$0xf]
  %v948 = vld [vmem:[%s3 + $0x3f0] sm:$0xf]
  %v949 = vld [vmem:[%s3 + $0x3f4] sm:$0xf]
  %v950 = vld [vmem:[%s3 + $0x3f8] sm:$0xf]
  %v951 = vld [vmem:[%s3 + $0x3fc] sm:$0xf]
  %v952 = vld [vmem:[%s4] sm:$0x1]
  %v954 = vlaneseq
  %v955 = vshrl.u32 %v954, 7
  %v956 = vsub.s32 0, %v955
  %v957 = vrot.slane %v952, %v956
  %v1215 = vunpack.c.l.b16 %v696
  %v1216 = vunpack.c.l.b16 %v697
  %v1217 = vunpack.c.l.b16 %v698
  %v1218 = vunpack.c.l.b16 %v699
  %v1219 = vunpack.c.l.b16 %v700
  %v1220 = vunpack.c.l.b16 %v701
  %v1221 = vunpack.c.l.b16 %v702
  %v1222 = vunpack.c.l.b16 %v703
  %v1223 = vunpack.c.l.b16 %v704
  %v1224 = vunpack.c.l.b16 %v705
  %v1225 = vunpack.c.l.b16 %v706
  %v1226 = vunpack.c.l.b16 %v707
  %v1227 = vunpack.c.l.b16 %v708
  %v1228 = vunpack.c.l.b16 %v709
  %v1229 = vunpack.c.l.b16 %v710
  %v1230 = vunpack.c.l.b16 %v711
  %v1231 = vunpack.c.l.b16 %v712
  %v1232 = vunpack.c.l.b16 %v713
  %v1233 = vunpack.c.l.b16 %v714
  %v1234 = vunpack.c.l.b16 %v715
  %v1235 = vunpack.c.l.b16 %v716
  %v1236 = vunpack.c.l.b16 %v717
  %v1237 = vunpack.c.l.b16 %v718
  %v1238 = vunpack.c.l.b16 %v719
  %v1239 = vunpack.c.l.b16 %v720
  %v1240 = vunpack.c.l.b16 %v721
  %v1241 = vunpack.c.l.b16 %v722
  %v1242 = vunpack.c.l.b16 %v723
  %v1243 = vunpack.c.l.b16 %v724
  %v1244 = vunpack.c.l.b16 %v725
  %v1245 = vunpack.c.l.b16 %v726
  %v1246 = vunpack.c.l.b16 %v727
  %v1247 = vunpack.c.l.b16 %v728
  %v1248 = vunpack.c.l.b16 %v729
  %v1249 = vunpack.c.l.b16 %v730
  %v1250 = vunpack.c.l.b16 %v731
  %v1251 = vunpack.c.l.b16 %v732
  %v1252 = vunpack.c.l.b16 %v733
  %v1253 = vunpack.c.l.b16 %v734
  %v1254 = vunpack.c.l.b16 %v735
  %v1255 = vunpack.c.l.b16 %v736
  %v1256 = vunpack.c.l.b16 %v737
  %v1257 = vunpack.c.l.b16 %v738
  %v1258 = vunpack.c.l.b16 %v739
  %v1259 = vunpack.c.l.b16 %v740
  %v1260 = vunpack.c.l.b16 %v741
  %v1261 = vunpack.c.l.b16 %v742
  %v1262 = vunpack.c.l.b16 %v743
  %v1263 = vunpack.c.l.b16 %v744
  %v1264 = vunpack.c.l.b16 %v745
  %v1265 = vunpack.c.l.b16 %v746
  %v1266 = vunpack.c.l.b16 %v747
  %v1267 = vunpack.c.l.b16 %v748
  %v1268 = vunpack.c.l.b16 %v749
  %v1269 = vunpack.c.l.b16 %v750
  %v1270 = vunpack.c.l.b16 %v751
  %v1271 = vunpack.c.l.b16 %v752
  %v1272 = vunpack.c.l.b16 %v753
  %v1273 = vunpack.c.l.b16 %v754
  %v1274 = vunpack.c.l.b16 %v755
  %v1275 = vunpack.c.l.b16 %v756
  %v1276 = vunpack.c.l.b16 %v757
  %v1277 = vunpack.c.l.b16 %v758
  %v1278 = vunpack.c.l.b16 %v759
  %v1279 = vunpack.c.l.b16 %v760
  %v1280 = vunpack.c.l.b16 %v761
  %v1281 = vunpack.c.l.b16 %v762
  %v1282 = vunpack.c.l.b16 %v763
  %v1283 = vunpack.c.l.b16 %v764
  %v1284 = vunpack.c.l.b16 %v765
  %v1285 = vunpack.c.l.b16 %v766
  %v1286 = vunpack.c.l.b16 %v767
  %v1287 = vunpack.c.l.b16 %v768
  %v1288 = vunpack.c.l.b16 %v769
  %v1289 = vunpack.c.l.b16 %v770
  %v1290 = vunpack.c.l.b16 %v771
  %v1291 = vunpack.c.l.b16 %v772
  %v1292 = vunpack.c.l.b16 %v773
  %v1293 = vunpack.c.l.b16 %v774
  %v1294 = vunpack.c.l.b16 %v775
  %v1295 = vunpack.c.l.b16 %v776
  %v1296 = vunpack.c.l.b16 %v777
  %v1297 = vunpack.c.l.b16 %v778
  %v1298 = vunpack.c.l.b16 %v779
  %v1299 = vunpack.c.l.b16 %v780
  %v1300 = vunpack.c.l.b16 %v781
  %v1301 = vunpack.c.l.b16 %v782
  %v1302 = vunpack.c.l.b16 %v783
  %v1303 = vunpack.c.l.b16 %v784
  %v1304 = vunpack.c.l.b16 %v785
  %v1305 = vunpack.c.l.b16 %v786
  %v1306 = vunpack.c.l.b16 %v787
  %v1307 = vunpack.c.l.b16 %v788
  %v1308 = vunpack.c.l.b16 %v789
  %v1309 = vunpack.c.l.b16 %v790
  %v1310 = vunpack.c.l.b16 %v791
  %v1311 = vunpack.c.l.b16 %v792
  %v1312 = vunpack.c.l.b16 %v793
  %v1313 = vunpack.c.l.b16 %v794
  %v1314 = vunpack.c.l.b16 %v795
  %v1315 = vunpack.c.l.b16 %v796
  %v1316 = vunpack.c.l.b16 %v797
  %v1317 = vunpack.c.l.b16 %v798
  %v1318 = vunpack.c.l.b16 %v799
  %v1319 = vunpack.c.l.b16 %v800
  %v1320 = vunpack.c.l.b16 %v801
  %v1321 = vunpack.c.l.b16 %v802
  %v1322 = vunpack.c.l.b16 %v803
  %v1323 = vunpack.c.l.b16 %v804
  %v1324 = vunpack.c.l.b16 %v805
  %v1325 = vunpack.c.l.b16 %v806
  %v1326 = vunpack.c.l.b16 %v807
  %v1327 = vunpack.c.l.b16 %v808
  %v1328 = vunpack.c.l.b16 %v809
  %v1329 = vunpack.c.l.b16 %v810
  %v1330 = vunpack.c.l.b16 %v811
  %v1331 = vunpack.c.l.b16 %v812
  %v1332 = vunpack.c.l.b16 %v813
  %v1333 = vunpack.c.l.b16 %v814
  %v1334 = vunpack.c.l.b16 %v815
  %v1335 = vunpack.c.l.b16 %v816
  %v1336 = vunpack.c.l.b16 %v817
  %v1337 = vunpack.c.l.b16 %v818
  %v1338 = vunpack.c.l.b16 %v819
  %v1339 = vunpack.c.l.b16 %v820
  %v1340 = vunpack.c.l.b16 %v821
  %v1341 = vunpack.c.l.b16 %v822
  %v1342 = vunpack.c.l.b16 %v823
  %v1343 = vunpack.c.l.b16 %v824
  %v1344 = vunpack.c.l.b16 %v825
  %v1345 = vunpack.c.l.b16 %v826
  %v1346 = vunpack.c.l.b16 %v827
  %v1347 = vunpack.c.l.b16 %v828
  %v1348 = vunpack.c.l.b16 %v829
  %v1349 = vunpack.c.l.b16 %v830
  %v1350 = vunpack.c.l.b16 %v831
  %v1351 = vunpack.c.l.b16 %v832
  %v1352 = vunpack.c.l.b16 %v833
  %v1353 = vunpack.c.l.b16 %v834
  %v1354 = vunpack.c.l.b16 %v835
  %v1355 = vunpack.c.l.b16 %v836
  %v1356 = vunpack.c.l.b16 %v837
  %v1357 = vunpack.c.l.b16 %v838
  %v1358 = vunpack.c.l.b16 %v839
  %v1359 = vunpack.c.l.b16 %v840
  %v1360 = vunpack.c.l.b16 %v841
  %v1361 = vunpack.c.l.b16 %v842
  %v1362 = vunpack.c.l.b16 %v843
  %v1363 = vunpack.c.l.b16 %v844
  %v1364 = vunpack.c.l.b16 %v845
  %v1365 = vunpack.c.l.b16 %v846
  %v1366 = vunpack.c.l.b16 %v847
  %v1367 = vunpack.c.l.b16 %v848
  %v1368 = vunpack.c.l.b16 %v849
  %v1369 = vunpack.c.l.b16 %v850
  %v1370 = vunpack.c.l.b16 %v851
  %v1371 = vunpack.c.l.b16 %v852
  %v1372 = vunpack.c.l.b16 %v853
  %v1373 = vunpack.c.l.b16 %v854
  %v1374 = vunpack.c.l.b16 %v855
  %v1375 = vunpack.c.l.b16 %v856
  %v1376 = vunpack.c.l.b16 %v857
  %v1377 = vunpack.c.l.b16 %v858
  %v1378 = vunpack.c.l.b16 %v859
  %v1379 = vunpack.c.l.b16 %v860
  %v1380 = vunpack.c.l.b16 %v861
  %v1381 = vunpack.c.l.b16 %v862
  %v1382 = vunpack.c.l.b16 %v863
  %v1383 = vunpack.c.l.b16 %v864
  %v1384 = vunpack.c.l.b16 %v865
  %v1385 = vunpack.c.l.b16 %v866
  %v1386 = vunpack.c.l.b16 %v867
  %v1387 = vunpack.c.l.b16 %v868
  %v1388 = vunpack.c.l.b16 %v869
  %v1389 = vunpack.c.l.b16 %v870
  %v1390 = vunpack.c.l.b16 %v871
  %v1391 = vunpack.c.l.b16 %v872
  %v1392 = vunpack.c.l.b16 %v873
  %v1393 = vunpack.c.l.b16 %v874
  %v1394 = vunpack.c.l.b16 %v875
  %v1395 = vunpack.c.l.b16 %v876
  %v1396 = vunpack.c.l.b16 %v877
  %v1397 = vunpack.c.l.b16 %v878
  %v1398 = vunpack.c.l.b16 %v879
  %v1399 = vunpack.c.l.b16 %v880
  %v1400 = vunpack.c.l.b16 %v881
  %v1401 = vunpack.c.l.b16 %v882
  %v1402 = vunpack.c.l.b16 %v883
  %v1403 = vunpack.c.l.b16 %v884
  %v1404 = vunpack.c.l.b16 %v885
  %v1405 = vunpack.c.l.b16 %v886
  %v1406 = vunpack.c.l.b16 %v887
  %v1407 = vunpack.c.l.b16 %v888
  %v1408 = vunpack.c.l.b16 %v889
  %v1409 = vunpack.c.l.b16 %v890
  %v1410 = vunpack.c.l.b16 %v891
  %v1411 = vunpack.c.l.b16 %v892
  %v1412 = vunpack.c.l.b16 %v893
  %v1413 = vunpack.c.l.b16 %v894
  %v1414 = vunpack.c.l.b16 %v895
  %v1415 = vunpack.c.l.b16 %v896
  %v1416 = vunpack.c.l.b16 %v897
  %v1417 = vunpack.c.l.b16 %v898
  %v1418 = vunpack.c.l.b16 %v899
  %v1419 = vunpack.c.l.b16 %v900
  %v1420 = vunpack.c.l.b16 %v901
  %v1421 = vunpack.c.l.b16 %v902
  %v1422 = vunpack.c.l.b16 %v903
  %v1423 = vunpack.c.l.b16 %v904
  %v1424 = vunpack.c.l.b16 %v905
  %v1425 = vunpack.c.l.b16 %v906
  %v1426 = vunpack.c.l.b16 %v907
  %v1427 = vunpack.c.l.b16 %v908
  %v1428 = vunpack.c.l.b16 %v909
  %v1429 = vunpack.c.l.b16 %v910
  %v1430 = vunpack.c.l.b16 %v911
  %v1431 = vunpack.c.l.b16 %v912
  %v1432 = vunpack.c.l.b16 %v913
  %v1433 = vunpack.c.l.b16 %v914
  %v1434 = vunpack.c.l.b16 %v915
  %v1435 = vunpack.c.l.b16 %v916
  %v1436 = vunpack.c.l.b16 %v917
  %v1437 = vunpack.c.l.b16 %v918
  %v1438 = vunpack.c.l.b16 %v919
  %v1439 = vunpack.c.l.b16 %v920
  %v1440 = vunpack.c.l.b16 %v921
  %v1441 = vunpack.c.l.b16 %v922
  %v1442 = vunpack.c.l.b16 %v923
  %v1443 = vunpack.c.l.b16 %v924
  %v1444 = vunpack.c.l.b16 %v925
  %v1445 = vunpack.c.l.b16 %v926
  %v1446 = vunpack.c.l.b16 %v927
  %v1447 = vunpack.c.l.b16 %v928
  %v1448 = vunpack.c.l.b16 %v929
  %v1449 = vunpack.c.l.b16 %v930
  %v1450 = vunpack.c.l.b16 %v931
  %v1451 = vunpack.c.l.b16 %v932
  %v1452 = vunpack.c.l.b16 %v933
  %v1453 = vunpack.c.l.b16 %v934
  %v1454 = vunpack.c.l.b16 %v935
  %v1455 = vunpack.c.l.b16 %v936
  %v1456 = vunpack.c.l.b16 %v937
  %v1457 = vunpack.c.l.b16 %v938
  %v1458 = vunpack.c.l.b16 %v939
  %v1459 = vunpack.c.l.b16 %v940
  %v1460 = vunpack.c.l.b16 %v941
  %v1461 = vunpack.c.l.b16 %v942
  %v1462 = vunpack.c.l.b16 %v943
  %v1463 = vunpack.c.l.b16 %v944
  %v1464 = vunpack.c.l.b16 %v945
  %v1465 = vunpack.c.l.b16 %v946
  %v1466 = vunpack.c.l.b16 %v947
  %v1467 = vunpack.c.l.b16 %v948
  %v1468 = vunpack.c.l.b16 %v949
  %v1469 = vunpack.c.l.b16 %v950
  %v1470 = vunpack.c.l.b16 %v951
  %v1471 = vpack.c.b16 %v1216, %v1215
  %v1472 = vpack.c.b16 %v1218, %v1217
  %v1473 = vpack.c.b16 %v1220, %v1219
  %v1474 = vpack.c.b16 %v1222, %v1221
  %v1475 = vpack.c.b16 %v1224, %v1223
  %v1476 = vpack.c.b16 %v1226, %v1225
  %v1477 = vpack.c.b16 %v1228, %v1227
  %v1478 = vpack.c.b16 %v1230, %v1229
  %v1479 = vpack.c.b16 %v1232, %v1231
  %v1480 = vpack.c.b16 %v1234, %v1233
  %v1481 = vpack.c.b16 %v1236, %v1235
  %v1482 = vpack.c.b16 %v1238, %v1237
  %v1483 = vpack.c.b16 %v1240, %v1239
  %v1484 = vpack.c.b16 %v1242, %v1241
  %v1485 = vpack.c.b16 %v1244, %v1243
  %v1486 = vpack.c.b16 %v1246, %v1245
  %v1487 = vpack.c.b16 %v1248, %v1247
  %v1488 = vpack.c.b16 %v1250, %v1249
  %v1489 = vpack.c.b16 %v1252, %v1251
  %v1490 = vpack.c.b16 %v1254, %v1253
  %v1491 = vpack.c.b16 %v1256, %v1255
  %v1492 = vpack.c.b16 %v1258, %v1257
  %v1493 = vpack.c.b16 %v1260, %v1259
  %v1494 = vpack.c.b16 %v1262, %v1261
  %v1495 = vpack.c.b16 %v1264, %v1263
  %v1496 = vpack.c.b16 %v1266, %v1265
  %v1497 = vpack.c.b16 %v1268, %v1267
  %v1498 = vpack.c.b16 %v1270, %v1269
  %v1499 = vpack.c.b16 %v1272, %v1271
  %v1500 = vpack.c.b16 %v1274, %v1273
  %v1501 = vpack.c.b16 %v1276, %v1275
  %v1502 = vpack.c.b16 %v1278, %v1277
  %v1503 = vpack.c.b16 %v1280, %v1279
  %v1504 = vpack.c.b16 %v1282, %v1281
  %v1505 = vpack.c.b16 %v1284, %v1283
  %v1506 = vpack.c.b16 %v1286, %v1285
  %v1507 = vpack.c.b16 %v1288, %v1287
  %v1508 = vpack.c.b16 %v1290, %v1289
  %v1509 = vpack.c.b16 %v1292, %v1291
  %v1510 = vpack.c.b16 %v1294, %v1293
  %v1511 = vpack.c.b16 %v1296, %v1295
  %v1512 = vpack.c.b16 %v1298, %v1297
  %v1513 = vpack.c.b16 %v1300, %v1299
  %v1514 = vpack.c.b16 %v1302, %v1301
  %v1515 = vpack.c.b16 %v1304, %v1303
  %v1516 = vpack.c.b16 %v1306, %v1305
  %v1517 = vpack.c.b16 %v1308, %v1307
  %v1518 = vpack.c.b16 %v1310, %v1309
  %v1519 = vpack.c.b16 %v1312, %v1311
  %v1520 = vpack.c.b16 %v1314, %v1313
  %v1521 = vpack.c.b16 %v1316, %v1315
  %v1522 = vpack.c.b16 %v1318, %v1317
  %v1523 = vpack.c.b16 %v1320, %v1319
  %v1524 = vpack.c.b16 %v1322, %v1321
  %v1525 = vpack.c.b16 %v1324, %v1323
  %v1526 = vpack.c.b16 %v1326, %v1325
  %v1527 = vpack.c.b16 %v1328, %v1327
  %v1528 = vpack.c.b16 %v1330, %v1329
  %v1529 = vpack.c.b16 %v1332, %v1331
  %v1530 = vpack.c.b16 %v1334, %v1333
  %v1531 = vpack.c.b16 %v1336, %v1335
  %v1532 = vpack.c.b16 %v1338, %v1337
  %v1533 = vpack.c.b16 %v1340, %v1339
  %v1534 = vpack.c.b16 %v1342, %v1341
  %v1535 = vpack.c.b16 %v1344, %v1343
  %v1536 = vpack.c.b16 %v1346, %v1345
  %v1537 = vpack.c.b16 %v1348, %v1347
  %v1538 = vpack.c.b16 %v1350, %v1349
  %v1539 = vpack.c.b16 %v1352, %v1351
  %v1540 = vpack.c.b16 %v1354, %v1353
  %v1541 = vpack.c.b16 %v1356, %v1355
  %v1542 = vpack.c.b16 %v1358, %v1357
  %v1543 = vpack.c.b16 %v1360, %v1359
  %v1544 = vpack.c.b16 %v1362, %v1361
  %v1545 = vpack.c.b16 %v1364, %v1363
  %v1546 = vpack.c.b16 %v1366, %v1365
  %v1547 = vpack.c.b16 %v1368, %v1367
  %v1548 = vpack.c.b16 %v1370, %v1369
  %v1549 = vpack.c.b16 %v1372, %v1371
  %v1550 = vpack.c.b16 %v1374, %v1373
  %v1551 = vpack.c.b16 %v1376, %v1375
  %v1552 = vpack.c.b16 %v1378, %v1377
  %v1553 = vpack.c.b16 %v1380, %v1379
  %v1554 = vpack.c.b16 %v1382, %v1381
  %v1555 = vpack.c.b16 %v1384, %v1383
  %v1556 = vpack.c.b16 %v1386, %v1385
  %v1557 = vpack.c.b16 %v1388, %v1387
  %v1558 = vpack.c.b16 %v1390, %v1389
  %v1559 = vpack.c.b16 %v1392, %v1391
  %v1560 = vpack.c.b16 %v1394, %v1393
  %v1561 = vpack.c.b16 %v1396, %v1395
  %v1562 = vpack.c.b16 %v1398, %v1397
  %v1563 = vpack.c.b16 %v1400, %v1399
  %v1564 = vpack.c.b16 %v1402, %v1401
  %v1565 = vpack.c.b16 %v1404, %v1403
  %v1566 = vpack.c.b16 %v1406, %v1405
  %v1567 = vpack.c.b16 %v1408, %v1407
  %v1568 = vpack.c.b16 %v1410, %v1409
  %v1569 = vpack.c.b16 %v1412, %v1411
  %v1570 = vpack.c.b16 %v1414, %v1413
  %v1571 = vpack.c.b16 %v1416, %v1415
  %v1572 = vpack.c.b16 %v1418, %v1417
  %v1573 = vpack.c.b16 %v1420, %v1419
  %v1574 = vpack.c.b16 %v1422, %v1421
  %v1575 = vpack.c.b16 %v1424, %v1423
  %v1576 = vpack.c.b16 %v1426, %v1425
  %v1577 = vpack.c.b16 %v1428, %v1427
  %v1578 = vpack.c.b16 %v1430, %v1429
  %v1579 = vpack.c.b16 %v1432, %v1431
  %v1580 = vpack.c.b16 %v1434, %v1433
  %v1581 = vpack.c.b16 %v1436, %v1435
  %v1582 = vpack.c.b16 %v1438, %v1437
  %v1583 = vpack.c.b16 %v1440, %v1439
  %v1584 = vpack.c.b16 %v1442, %v1441
  %v1585 = vpack.c.b16 %v1444, %v1443
  %v1586 = vpack.c.b16 %v1446, %v1445
  %v1587 = vpack.c.b16 %v1448, %v1447
  %v1588 = vpack.c.b16 %v1450, %v1449
  %v1589 = vpack.c.b16 %v1452, %v1451
  %v1590 = vpack.c.b16 %v1454, %v1453
  %v1591 = vpack.c.b16 %v1456, %v1455
  %v1592 = vpack.c.b16 %v1458, %v1457
  %v1593 = vpack.c.b16 %v1460, %v1459
  %v1594 = vpack.c.b16 %v1462, %v1461
  %v1595 = vpack.c.b16 %v1464, %v1463
  %v1596 = vpack.c.b16 %v1466, %v1465
  %v1597 = vpack.c.b16 %v1468, %v1467
  %v1598 = vpack.c.b16 %v1470, %v1469
  %1727 = vmatprep.subr.bf16.mxu0 0
  %1728 = vmatpush1.bf16.msra.mxu0 %v1471
  %1729 = vmatprep.subr.bf16.mxu0 0
  %1730 = vmatpush1.bf16.msra.mxu0 %v1472
  %1731 = vmatprep.subr.bf16.mxu0 0
  %1732 = vmatpush1.bf16.msra.mxu0 %v1473
  %1733 = vmatprep.subr.bf16.mxu0 0
  %1734 = vmatpush1.bf16.msra.mxu0 %v1474
  %1735 = vmatprep.subr.bf16.mxu0 0
  %1736 = vmatpush1.bf16.msra.mxu0 %v1475
  %1737 = vmatprep.subr.bf16.mxu0 0
  %1738 = vmatpush1.bf16.msra.mxu0 %v1476
  %1739 = vmatprep.subr.bf16.mxu0 0
  %1740 = vmatpush1.bf16.msra.mxu0 %v1477
  %1741 = vmatprep.subr.bf16.mxu0 0
  %1742 = vmatpush1.bf16.msra.mxu0 %v1478
  %1743 = vmatprep.subr.bf16.mxu0 0
  %1744 = vmatpush1.bf16.msra.mxu0 %v1479
  %1745 = vmatprep.subr.bf16.mxu0 0
  %1746 = vmatpush1.bf16.msra.mxu0 %v1480
  %1747 = vmatprep.subr.bf16.mxu0 0
  %1748 = vmatpush1.bf16.msra.mxu0 %v1481
  %1749 = vmatprep.subr.bf16.mxu0 0
  %1750 = vmatpush1.bf16.msra.mxu0 %v1482
  %1751 = vmatprep.subr.bf16.mxu0 0
  %1752 = vmatpush1.bf16.msra.mxu0 %v1483
  %1753 = vmatprep.subr.bf16.mxu0 0
  %1754 = vmatpush1.bf16.msra.mxu0 %v1484
  %1755 = vmatprep.subr.bf16.mxu0 0
  %1756 = vmatpush1.bf16.msra.mxu0 %v1485
  %1757 = vmatprep.subr.bf16.mxu0 0
  %1758 = vmatpush1.bf16.msra.mxu0 %v1486
  %1759 = vmatprep.mubr.bf16.mxu0 %v681
  %1760 = vmatmul.mubr.bf16.gmra.mrb[0].mxu0 %v680
  %v1761 = vpop.f32.mrb[0].mxu0
  %v1762 = vadd.f32 %v957, %v1761
  %v1763 = vpop.f32.mrb[0].mxu0
  %v1764 = vpop.f32.mrb[0].mxu0
  %v1765 = vadd.f32 %v957, %v1764
  %v1766 = vpop.f32.mrb[0].mxu0
  %1767 = vdwg.mxu0
  %1768 = vmatprep.subr.bf16.mxu0 0
  %1769 = vmatpush1.bf16.msra.mxu0 %v1487
  %1770 = vmatprep.subr.bf16.mxu0 0
  %1771 = vmatpush1.bf16.msra.mxu0 %v1488
  %1772 = vmatprep.subr.bf16.mxu0 0
  %1773 = vmatpush1.bf16.msra.mxu0 %v1489
  %1774 = vmatprep.subr.bf16.mxu0 0
  %1775 = vmatpush1.bf16.msra.mxu0 %v1490
  %1776 = vmatprep.subr.bf16.mxu0 0
  %1777 = vmatpush1.bf16.msra.mxu0 %v1491
  %1778 = vmatprep.subr.bf16.mxu0 0
  %1779 = vmatpush1.bf16.msra.mxu0 %v1492
  %1780 = vmatprep.subr.bf16.mxu0 0
  %1781 = vmatpush1.bf16.msra.mxu0 %v1493
  %1782 = vmatprep.subr.bf16.mxu0 0
  %1783 = vmatpush1.bf16.msra.mxu0 %v1494
  %1784 = vmatprep.subr.bf16.mxu0 0
  %1785 = vmatpush1.bf16.msra.mxu0 %v1495
  %1786 = vmatprep.subr.bf16.mxu0 0
  %1787 = vmatpush1.bf16.msra.mxu0 %v1496
  %1788 = vmatprep.subr.bf16.mxu0 0
  %1789 = vmatpush1.bf16.msra.mxu0 %v1497
  %1790 = vmatprep.subr.bf16.mxu0 0
  %1791 = vmatpush1.bf16.msra.mxu0 %v1498
  %1792 = vmatprep.subr.bf16.mxu0 0
  %1793 = vmatpush1.bf16.msra.mxu0 %v1499
  %1794 = vmatprep.subr.bf16.mxu0 0
  %1795 = vmatpush1.bf16.msra.mxu0 %v1500
  %1796 = vmatprep.subr.bf16.mxu0 0
  %1797 = vmatpush1.bf16.msra.mxu0 %v1501
  %1798 = vmatprep.subr.bf16.mxu0 0
  %1799 = vmatpush1.bf16.msra.mxu0 %v1502
  %1800 = vmatprep.mubr.bf16.mxu0 %v683
  %1801 = vmatmul.mubr.bf16.gmra.mrb[0].mxu0 %v682
  %v1802 = vpop.f32.mrb[0].mxu0
  %v1803 = vadd.f32 %v1762, %v1802
  %v1804 = vpop.f32.mrb[0].mxu0
  %v1805 = vpop.f32.mrb[0].mxu0
  %v1806 = vadd.f32 %v1765, %v1805
  %v1807 = vpop.f32.mrb[0].mxu0
  %1808 = vdwg.mxu0
  %1809 = vmatprep.subr.bf16.mxu0 0
  %1810 = vmatpush1.bf16.msra.mxu0 %v1503
  %1811 = vmatprep.subr.bf16.mxu0 0
  %1812 = vmatpush1.bf16.msra.mxu0 %v1504
  %1813 = vmatprep.subr.bf16.mxu0 0
  %1814 = vmatpush1.bf16.msra.mxu0 %v1505
  %1815 = vmatprep.subr.bf16.mxu0 0
  %1816 = vmatpush1.bf16.msra.mxu0 %v1506
  %1817 = vmatprep.subr.bf16.mxu0 0
  %1818 = vmatpush1.bf16.msra.mxu0 %v1507
  %1819 = vmatprep.subr.bf16.mxu0 0
  %1820 = vmatpush1.bf16.msra.mxu0 %v1508
  %1821 = vmatprep.subr.bf16.mxu0 0
  %1822 = vmatpush1.bf16.msra.mxu0 %v1509
  %1823 = vmatprep.subr.bf16.mxu0 0
  %1824 = vmatpush1.bf16.msra.mxu0 %v1510
  %1825 = vmatprep.subr.bf16.mxu0 0
  %1826 = vmatpush1.bf16.msra.mxu0 %v1511
  %1827 = vmatprep.subr.bf16.mxu0 0
  %1828 = vmatpush1.bf16.msra.mxu0 %v1512
  %1829 = vmatprep.subr.bf16.mxu0 0
  %1830 = vmatpush1.bf16.msra.mxu0 %v1513
  %1831 = vmatprep.subr.bf16.mxu0 0
  %1832 = vmatpush1.bf16.msra.mxu0 %v1514
  %1833 = vmatprep.subr.bf16.mxu0 0
  %1834 = vmatpush1.bf16.msra.mxu0 %v1515
  %1835 = vmatprep.subr.bf16.mxu0 0
  %1836 = vmatpush1.bf16.msra.mxu0 %v1516
  %1837 = vmatprep.subr.bf16.mxu0 0
  %1838 = vmatpush1.bf16.msra.mxu0 %v1517
  %1839 = vmatprep.subr.bf16.mxu0 0
  %1840 = vmatpush1.bf16.msra.mxu0 %v1518
  %1841 = vmatprep.mubr.bf16.mxu0 %v685
  %1842 = vmatmul.mubr.bf16.gmra.mrb[0].mxu0 %v684
  %v1843 = vpop.f32.mrb[0].mxu0
  %v1844 = vadd.f32 %v1803, %v1843
  %v1845 = vpop.f32.mrb[0].mxu0
  %v1846 = vpop.f32.mrb[0].mxu0
  %v1847 = vadd.f32 %v1806, %v1846
  %v1848 = vpop.f32.mrb[0].mxu0
  %1849 = vdwg.mxu0
  %1850 = vmatprep.subr.bf16.mxu0 0
  %1851 = vmatpush1.bf16.msra.mxu0 %v1519
  %1852 = vmatprep.subr.bf16.mxu0 0
  %1853 = vmatpush1.bf16.msra.mxu0 %v1520
  %1854 = vmatprep.subr.bf16.mxu0 0
  %1855 = vmatpush1.bf16.msra.mxu0 %v1521
  %1856 = vmatprep.subr.bf16.mxu0 0
  %1857 = vmatpush1.bf16.msra.mxu0 %v1522
  %1858 = vmatprep.subr.bf16.mxu0 0
  %1859 = vmatpush1.bf16.msra.mxu0 %v1523
  %1860 = vmatprep.subr.bf16.mxu0 0
  %1861 = vmatpush1.bf16.msra.mxu0 %v1524
  %1862 = vmatprep.subr.bf16.mxu0 0
  %1863 = vmatpush1.bf16.msra.mxu0 %v1525
  %1864 = vmatprep.subr.bf16.mxu0 0
  %1865 = vmatpush1.bf16.msra.mxu0 %v1526
  %1866 = vmatprep.subr.bf16.mxu0 0
  %1867 = vmatpush1.bf16.msra.mxu0 %v1527
  %1868 = vmatprep.subr.bf16.mxu0 0
  %1869 = vmatpush1.bf16.msra.mxu0 %v1528
  %1870 = vmatprep.subr.bf16.mxu0 0
  %1871 = vmatpush1.bf16.msra.mxu0 %v1529
  %1872 = vmatprep.subr.bf16.mxu0 0
  %1873 = vmatpush1.bf16.msra.mxu0 %v1530
  %1874 = vmatprep.subr.bf16.mxu0 0
  %1875 = vmatpush1.bf16.msra.mxu0 %v1531
  %1876 = vmatprep.subr.bf16.mxu0 0
  %1877 = vmatpush1.bf16.msra.mxu0 %v1532
  %1878 = vmatprep.subr.bf16.mxu0 0
  %1879 = vmatpush1.bf16.msra.mxu0 %v1533
  %1880 = vmatprep.subr.bf16.mxu0 0
  %1881 = vmatpush1.bf16.msra.mxu0 %v1534
  %1882 = vmatprep.mubr.bf16.mxu0 %v687
  %1883 = vmatmul.mubr.bf16.gmra.mrb[0].mxu0 %v686
  %v1884 = vpop.f32.mrb[0].mxu0
  %v1885 = vadd.f32 %v1844, %v1884
  %v1886 = vpop.f32.mrb[0].mxu0
  %v1887 = vpop.f32.mrb[0].mxu0
  %v1888 = vadd.f32 %v1847, %v1887
  %v1889 = vpop.f32.mrb[0].mxu0
  %1890 = vdwg.mxu0
  %1891 = vmatprep.subr.bf16.mxu0 0
  %1892 = vmatpush1.bf16.msra.mxu0 %v1535
  %1893 = vmatprep.subr.bf16.mxu0 0
  %1894 = vmatpush1.bf16.msra.mxu0 %v1536
  %1895 = vmatprep.subr.bf16.mxu0 0
  %1896 = vmatpush1.bf16.msra.mxu0 %v1537
  %1897 = vmatprep.subr.bf16.mxu0 0
  %1898 = vmatpush1.bf16.msra.mxu0 %v1538
  %1899 = vmatprep.subr.bf16.mxu0 0
  %1900 = vmatpush1.bf16.msra.mxu0 %v1539
  %1901 = vmatprep.subr.bf16.mxu0 0
  %1902 = vmatpush1.bf16.msra.mxu0 %v1540
  %1903 = vmatprep.subr.bf16.mxu0 0
  %1904 = vmatpush1.bf16.msra.mxu0 %v1541
  %1905 = vmatprep.subr.bf16.mxu0 0
  %1906 = vmatpush1.bf16.msra.mxu0 %v1542
  %1907 = vmatprep.subr.bf16.mxu0 0
  %1908 = vmatpush1.bf16.msra.mxu0 %v1543
  %1909 = vmatprep.subr.bf16.mxu0 0
  %1910 = vmatpush1.bf16.msra.mxu0 %v1544
  %1911 = vmatprep.subr.bf16.mxu0 0
  %1912 = vmatpush1.bf16.msra.mxu0 %v1545
  %1913 = vmatprep.subr.bf16.mxu0 0
  %1914 = vmatpush1.bf16.msra.mxu0 %v1546
  %1915 = vmatprep.subr.bf16.mxu0 0
  %1916 = vmatpush1.bf16.msra.mxu0 %v1547
  %1917 = vmatprep.subr.bf16.mxu0 0
  %1918 = vmatpush1.bf16.msra.mxu0 %v1548
  %1919 = vmatprep.subr.bf16.mxu0 0
  %1920 = vmatpush1.bf16.msra.mxu0 %v1549
  %1921 = vmatprep.subr.bf16.mxu0 0
  %1922 = vmatpush1.bf16.msra.mxu0 %v1550
  %1923 = vmatprep.mubr.bf16.mxu0 %v689
  %1924 = vmatmul.mubr.bf16.gmra.mrb[0].mxu0 %v688
  %v1925 = vpop.f32.mrb[0].mxu0
  %v1926 = vadd.f32 %v1885, %v1925
  %v1927 = vpop.f32.mrb[0].mxu0
  %v1928 = vpop.f32.mrb[0].mxu0
  %v1929 = vadd.f32 %v1888, %v1928
  %v1930 = vpop.f32.mrb[0].mxu0
  %1931 = vdwg.mxu0
  %1932 = vmatprep.subr.bf16.mxu0 0
  %1933 = vmatpush1.bf16.msra.mxu0 %v1551
  %1934 = vmatprep.subr.bf16.mxu0 0
  %1935 = vmatpush1.bf16.msra.mxu0 %v1552
  %1936 = vmatprep.subr.bf16.mxu0 0
  %1937 = vmatpush1.bf16.msra.mxu0 %v1553
  %1938 = vmatprep.subr.bf16.mxu0 0
  %1939 = vmatpush1.bf16.msra.mxu0 %v1554
  %1940 = vmatprep.subr.bf16.mxu0 0
  %1941 = vmatpush1.bf16.msra.mxu0 %v1555
  %1942 = vmatprep.subr.bf16.mxu0 0
  %1943 = vmatpush1.bf16.msra.mxu0 %v1556
  %1944 = vmatprep.subr.bf16.mxu0 0
  %1945 = vmatpush1.bf16.msra.mxu0 %v1557
  %1946 = vmatprep.subr.bf16.mxu0 0
  %1947 = vmatpush1.bf16.msra.mxu0 %v1558
  %1948 = vmatprep.subr.bf16.mxu0 0
  %1949 = vmatpush1.bf16.msra.mxu0 %v1559
  %1950 = vmatprep.subr.bf16.mxu0 0
  %1951 = vmatpush1.bf16.msra.mxu0 %v1560
  %1952 = vmatprep.subr.bf16.mxu0 0
  %1953 = vmatpush1.bf16.msra.mxu0 %v1561
  %1954 = vmatprep.subr.bf16.mxu0 0
  %1955 = vmatpush1.bf16.msra.mxu0 %v1562
  %1956 = vmatprep.subr.bf16.mxu0 0
  %1957 = vmatpush1.bf16.msra.mxu0 %v1563
  %1958 = vmatprep.subr.bf16.mxu0 0
  %1959 = vmatpush1.bf16.msra.mxu0 %v1564
  %1960 = vmatprep.subr.bf16.mxu0 0
  %1961 = vmatpush1.bf16.msra.mxu0 %v1565
  %1962 = vmatprep.subr.bf16.mxu0 0
  %1963 = vmatpush1.bf16.msra.mxu0 %v1566
  %1964 = vmatprep.mubr.bf16.mxu0 %v691
  %1965 = vmatmul.mubr.bf16.gmra.mrb[0].mxu0 %v690
  %v1966 = vpop.f32.mrb[0].mxu0
  %v1967 = vadd.f32 %v1926, %v1966
  %v1968 = vpop.f32.mrb[0].mxu0
  %v1969 = vpop.f32.mrb[0].mxu0
  %v1970 = vadd.f32 %v1929, %v1969
  %v1971 = vpop.f32.mrb[0].mxu0
  %1972 = vdwg.mxu0
  %1973 = vmatprep.subr.bf16.mxu0 0
  %1974 = vmatpush1.bf16.msra.mxu0 %v1567
  %1975 = vmatprep.subr.bf16.mxu0 0
  %1976 = vmatpush1.bf16.msra.mxu0 %v1568
  %1977 = vmatprep.subr.bf16.mxu0 0
  %1978 = vmatpush1.bf16.msra.mxu0 %v1569
  %1979 = vmatprep.subr.bf16.mxu0 0
  %1980 = vmatpush1.bf16.msra.mxu0 %v1570
  %1981 = vmatprep.subr.bf16.mxu0 0
  %1982 = vmatpush1.bf16.msra.mxu0 %v1571
  %1983 = vmatprep.subr.bf16.mxu0 0
  %1984 = vmatpush1.bf16.msra.mxu0 %v1572
  %1985 = vmatprep.subr.bf16.mxu0 0
  %1986 = vmatpush1.bf16.msra.mxu0 %v1573
  %1987 = vmatprep.subr.bf16.mxu0 0
  %1988 = vmatpush1.bf16.msra.mxu0 %v1574
  %1989 = vmatprep.subr.bf16.mxu0 0
  %1990 = vmatpush1.bf16.msra.mxu0 %v1575
  %1991 = vmatprep.subr.bf16.mxu0 0
  %1992 = vmatpush1.bf16.msra.mxu0 %v1576
  %1993 = vmatprep.subr.bf16.mxu0 0
  %1994 = vmatpush1.bf16.msra.mxu0 %v1577
  %1995 = vmatprep.subr.bf16.mxu0 0
  %1996 = vmatpush1.bf16.msra.mxu0 %v1578
  %1997 = vmatprep.subr.bf16.mxu0 0
  %1998 = vmatpush1.bf16.msra.mxu0 %v1579
  %1999 = vmatprep.subr.bf16.mxu0 0
  %2000 = vmatpush1.bf16.msra.mxu0 %v1580
  %2001 = vmatprep.subr.bf16.mxu0 0
  %2002 = vmatpush1.bf16.msra.mxu0 %v1581
  %2003 = vmatprep.subr.bf16.mxu0 0
  %2004 = vmatpush1.bf16.msra.mxu0 %v1582
  %2005 = vmatprep.mubr.bf16.mxu0 %v693
  %2006 = vmatmul.mubr.bf16.gmra.mrb[0].mxu0 %v692
  %v2007 = vpop.f32.mrb[0].mxu0
  %v2008 = vadd.f32 %v1967, %v2007
  %v2009 = vpop.f32.mrb[0].mxu0
  %v2010 = vpop.f32.mrb[0].mxu0
  %v2011 = vadd.f32 %v1970, %v2010
  %v2012 = vpop.f32.mrb[0].mxu0
  %2013 = vdwg.mxu0
  %2014 = vmatprep.subr.bf16.mxu0 0
  %2015 = vmatpush1.bf16.msra.mxu0 %v1583
  %2016 = vmatprep.subr.bf16.mxu0 0
  %2017 = vmatpush1.bf16.msra.mxu0 %v1584
  %2018 = vmatprep.subr.bf16.mxu0 0
  %2019 = vmatpush1.bf16.msra.mxu0 %v1585
  %2020 = vmatprep.subr.bf16.mxu0 0
  %2021 = vmatpush1.bf16.msra.mxu0 %v1586
  %2022 = vmatprep.subr.bf16.mxu0 0
  %2023 = vmatpush1.bf16.msra.mxu0 %v1587
  %2024 = vmatprep.subr.bf16.mxu0 0
  %2025 = vmatpush1.bf16.msra.mxu0 %v1588
  %2026 = vmatprep.subr.bf16.mxu0 0
  %2027 = vmatpush1.bf16.msra.mxu0 %v1589
  %2028 = vmatprep.subr.bf16.mxu0 0
  %2029 = vmatpush1.bf16.msra.mxu0 %v1590
  %2030 = vmatprep.subr.bf16.mxu0 0
  %2031 = vmatpush1.bf16.msra.mxu0 %v1591
  %2032 = vmatprep.subr.bf16.mxu0 0
  %2033 = vmatpush1.bf16.msra.mxu0 %v1592
  %2034 = vmatprep.subr.bf16.mxu0 0
  %2035 = vmatpush1.bf16.msra.mxu0 %v1593
  %2036 = vmatprep.subr.bf16.mxu0 0
  %2037 = vmatpush1.bf16.msra.mxu0 %v1594
  %2038 = vmatprep.subr.bf16.mxu0 0
  %2039 = vmatpush1.bf16.msra.mxu0 %v1595
  %2040 = vmatprep.subr.bf16.mxu0 0
  %2041 = vmatpush1.bf16.msra.mxu0 %v1596
  %2042 = vmatprep.subr.bf16.mxu0 0
  %2043 = vmatpush1.bf16.msra.mxu0 %v1597
  %2044 = vmatprep.subr.bf16.mxu0 0
  %2045 = vmatpush1.bf16.msra.mxu0 %v1598
  %2046 = vmatprep.mubr.bf16.mxu0 %v695
  %2047 = vmatmul.mubr.bf16.gmra.mrb[0].mxu0 %v694
  %v2048 = vpop.f32.mrb[0].mxu0
  %v2049 = vadd.f32 %v2008, %v2048
  %v2050 = vpop.f32.mrb[0].mxu0
  %v2051 = vpop.f32.mrb[0].mxu0
  %v2052 = vadd.f32 %v2011, %v2051
  %v2053 = vpop.f32.mrb[0].mxu0
  %2054 = vdwg.mxu0
  %2055 = vst [vmem:[%s5] sm:$0xff] %v2049
  %2056 = vst [vmem:[%s5 + $0x8] sm:$0xff] %v2052
  // Predicated region
  $region22: #{ffn_forward.1} parent=0 // pred_check
    _
  $region23: #{ffn_forward.1} parent=0 // pred_check_branch
    %2058 = sbr.rel (0) target = $region25
  $region24: #{ffn_forward.1} parent=0 // pred_region
    _
  $region25: #{ffn_forward.1} parent=0 // pred_fallthru
    _
  // Predicated region
  $region26: #{ffn_forward.1} parent=0 // pred_check
    _
  $region27: #{ffn_forward.1} parent=0 // pred_check_branch
    %2060 = sbr.rel (0) target = $region29
  $region28: #{ffn_forward.1} parent=0 // pred_region
    _
  $region29: #{ffn_forward.1} parent=0 // pred_fallthru
    _

// kernel: ffn_forward.1
$region0: #{ffn_forward.1}
  #allocation0 [shape = 'u32[]', space=smem, size = 0x4, offset = 0x4, fixed_abs, tag = 'smem constant byte address 0x4 - core index']
  #allocation1 [shape = 'u32[144,128]{1,0:T(1,128)}', space=vmem, size = 0x12000, scoped, tag = 'internal scratch']
  %s0 = inlined_call_operand.vmem [shape: f32[16,32], index: 0, kind: input, shape index: {}]
  %s1 = inlined_call_operand.vmem [shape: bf16[32,2048], index: 1, kind: input, shape index: {}]
  %s2 = inlined_call_operand.vmem [shape: f32[1,2048], index: 2, kind: input, shape index: {}]
  %s3 = inlined_call_operand.vmem [shape: bf16[2048,128], index: 3, kind: input, shape index: {}]
  %s4 = inlined_call_operand.vmem [shape: f32[1,128], index: 4, kind: input, shape index: {}]
  %s5 = inlined_call_operand.vmem [shape: f32[16,128], index: 5, kind: output, shape index: {}]
  %s6 = sld [smem:[#allocation0]]
  $region30: #{ffn_forward.1} parent=0
    _
  %s8 = ssub.s32 1, %s6
  %s9 = scalar_select 0, %s8, %s6
  // Predicated region
  $region2: #{ffn_forward.1} parent=0 // pred_check
    _
  $region3: #{ffn_forward.1} parent=0 // pred_check_branch
    %11 = sbr.rel (0) target = $region5
  $region4: #{ffn_forward.1} parent=0 // pred_region
    _
  $region5: #{ffn_forward.1} parent=0 // pred_fallthru
    _
  // Predicated region
  $region6: #{ffn_forward.1} parent=0 // pred_check
    _
  $region7: #{ffn_forward.1} parent=0 // pred_check_branch
    %13 = sbr.rel (0) target = $region9
  $region8: #{ffn_forward.1} parent=0 // pred_region
    _
  $region9: #{ffn_forward.1} parent=0 // pred_fallthru
    _
  // Predicated region
  $region10: #{ffn_forward.1} parent=0 // pred_check
    _
  $region11: #{ffn_forward.1} parent=0 // pred_check_branch
    %15 = sbr.rel (0) target = $region13
  $region12: #{ffn_forward.1} parent=0 // pred_region
    _
  $region13: #{ffn_forward.1} parent=0 // pred_fallthru
    _
  // Predicated region
  $region14: #{ffn_forward.1} parent=0 // pred_check
    _
  $region15: #{ffn_forward.1} parent=0 // pred_check_branch
    %17 = sbr.rel (0) target = $region17
  $region16: #{ffn_forward.1} parent=0 // pred_region
    _
  $region17: #{ffn_forward.1} parent=0 // pred_fallthru
    _
  // Predicated region
  $region18: #{ffn_forward.1} parent=0 // pred_check
    _
  $region19: #{ffn_forward.1} parent=0 // pred_check_branch
    %19 = sbr.rel (0) target = $region21
  $region20: #{ffn_forward.1} parent=0 // pred_region
    _
  $region21: #{ffn_forward.1} parent=0 // pred_fallthru
    _
  %v21 = vld [vmem:[%s0] sm:$0xff]
  %v22 = vld [vmem:[%s0 + $0x8] sm:$0xff]
  %v23 = vpack.c.bf16 %v22, %v21
  %v24 = vld [vmem:[%s1] sm:$0xff]
  %v25 = vld [vmem:[%s1 + $0x8] sm:$0xff]
  %v26 = vld [vmem:[%s1 + $0x10] sm:$0xff]
  %v27 = vld [vmem:[%s1 + $0x18] sm:$0xff]
  %v28 = vld [vmem:[%s1 + $0x20] sm:$0xff]
  %v29 = vld [vmem:[%s1 + $0x28] sm:$0xff]
  %v30 = vld [vmem:[%s1 + $0x30] sm:$0xff]
  %v31 = vld [vmem:[%s1 + $0x38] sm:$0xff]
  %v32 = vld [vmem:[%s1 + $0x40] sm:$0xff]
  %v33 = vld [vmem:[%s1 + $0x48] sm:$0xff]
  %v34 = vld [vmem:[%s1 + $0x50] sm:$0xff]
  %v35 = vld [vmem:[%s1 + $0x58] sm:$0xff]
  %v36 = vld [vmem:[%s1 + $0x60] sm:$0xff]
  %v37 = vld [vmem:[%s1 + $0x68] sm:$0xff]
  %v38 = vld [vmem:[%s1 + $0x70] sm:$0xff]
  %v39 = vld [vmem:[%s1 + $0x78] sm:$0xff]
  %v40 = vld [vmem:[%s1 + $0x80] sm:$0xff]
  %v41 = vld [vmem:[%s1 + $0x88] sm:$0xff]
  %v42 = vld [vmem:[%s1 + $0x90] sm:$0xff]
  %v43 = vld [vmem:[%s1 + $0x98] sm:$0xff]
  %v44 = vld [vmem:[%s1 + $0xa0] sm:$0xff]
  %v45 = vld [vmem:[%s1 + $0xa8] sm:$0xff]
  %v46 = vld [vmem:[%s1 + $0xb0] sm:$0xff]
  %v47 = vld [vmem:[%s1 + $0xb8] sm:$0xff]
  %v48 = vld [vmem:[%s1 + $0xc0] sm:$0xff]
  %v49 = vld [vmem:[%s1 + $0xc8] sm:$0xff]
  %v50 = vld [vmem:[%s1 + $0xd0] sm:$0xff]
  %v51 = vld [vmem:[%s1 + $0xd8] sm:$0xff]
  %v52 = vld [vmem:[%s1 + $0xe0] sm:$0xff]
  %v53 = vld [vmem:[%s1 + $0xe8] sm:$0xff]
  %v54 = vld [vmem:[%s1 + $0xf0] sm:$0xff]
  %v55 = vld [vmem:[%s1 + $0xf8] sm:$0xff]
  %v56 = vld [vmem:[%s2] sm:$0xff]
  %v57 = vld [vmem:[%s2 + $0x8] sm:$0xff]
  %v60 = vlaneseq
  %v61 = vshrl.u32 %v60, 7
  %v62 = vsub.s32 0, %v61
  %v63 = vrot.slane %v56, %v62
  %v64 = vlaneseq
  %v65 = vshrl.u32 %v64, 7
  %v66 = vsub.s32 1, %v65
  %v67 = vrot.slane %v56, %v66
  %v68 = vlaneseq
  %v69 = vshrl.u32 %v68, 7
  %v70 = vsub.s32 2, %v69
  %v71 = vrot.slane %v56, %v70
  %v72 = vlaneseq
  %v73 = vshrl.u32 %v72, 7
  %v74 = vsub.s32 3, %v73
  %v75 = vrot.slane %v56, %v74
  %v76 = vlaneseq
  %v77 = vshrl.u32 %v76, 7
  %v78 = vsub.s32 4, %v77
  %v79 = vrot.slane %v56, %v78
  %v80 = vlaneseq
  %v81 = vshrl.u32 %v80, 7
  %v82 = vsub.s32 5, %v81
  %v83 = vrot.slane %v56, %v82
  %v84 = vlaneseq
  %v85 = vshrl.u32 %v84, 7
  %v86 = vsub.s32 6, %v85
  %v87 = vrot.slane %v56, %v86
  %v88 = vlaneseq
  %v89 = vshrl.u32 %v88, 7
  %v90 = vsub.s32 7, %v89
  %v91 = vrot.slane %v56, %v90
  %v92 = vlaneseq
  %v93 = vshrl.u32 %v92, 7
  %v94 = vsub.s32 0, %v93
  %v95 = vrot.slane %v57, %v94
  %v96 = vlaneseq
  %v97 = vshrl.u32 %v96, 7
  %v98 = vsub.s32 1, %v97
  %v99 = vrot.slane %v57, %v98
  %v100 = vlaneseq
  %v101 = vshrl.u32 %v100, 7
  %v102 = vsub.s32 2, %v101
  %v103 = vrot.slane %v57, %v102
  %v104 = vlaneseq
  %v105 = vshrl.u32 %v104, 7
  %v106 = vsub.s32 3, %v105
  %v107 = vrot.slane %v57, %v106
  %v108 = vlaneseq
  %v109 = vshrl.u32 %v108, 7
  %v110 = vsub.s32 4, %v109
  %v111 = vrot.slane %v57, %v110
  %v112 = vlaneseq
  %v113 = vshrl.u32 %v112, 7
  %v114 = vsub.s32 5, %v113
  %v115 = vrot.slane %v57, %v114
  %v116 = vlaneseq
  %v117 = vshrl.u32 %v116, 7
  %v118 = vsub.s32 6, %v117
  %v119 = vrot.slane %v57, %v118
  %v120 = vlaneseq
  %v121 = vshrl.u32 %v120, 7
  %v122 = vsub.s32 7, %v121
  %v123 = vrot.slane %v57, %v122
  %v172 = vunpack.c.l.b16 %v24
  %v173 = vunpack.c.h.b16 %v24
  %v174 = vunpack.c.l.b16 %v25
  %v175 = vunpack.c.h.b16 %v25
  %v176 = vunpack.c.l.b16 %v26
  %v177 = vunpack.c.h.b16 %v26
  %v178 = vunpack.c.l.b16 %v27
  %v179 = vunpack.c.h.b16 %v27
  %v180 = vunpack.c.l.b16 %v28
  %v181 = vunpack.c.h.b16 %v28
  %v182 = vunpack.c.l.b16 %v29
  %v183 = vunpack.c.h.b16 %v29
  %v184 = vunpack.c.l.b16 %v30
  %v185 = vunpack.c.h.b16 %v30
  %v186 = vunpack.c.l.b16 %v31
  %v187 = vunpack.c.h.b16 %v31
  %v188 = vunpack.c.l.b16 %v32
  %v189 = vunpack.c.h.b16 %v32
  %v190 = vunpack.c.l.b16 %v33
  %v191 = vunpack.c.h.b16 %v33
  %v192 = vunpack.c.l.b16 %v34
  %v193 = vunpack.c.h.b16 %v34
  %v194 = vunpack.c.l.b16 %v35
  %v195 = vunpack.c.h.b16 %v35
  %v196 = vunpack.c.l.b16 %v36
  %v197 = vunpack.c.h.b16 %v36
  %v198 = vunpack.c.l.b16 %v37
  %v199 = vunpack.c.h.b16 %v37
  %v200 = vunpack.c.l.b16 %v38
  %v201 = vunpack.c.h.b16 %v38
  %v202 = vunpack.c.l.b16 %v39
  %v203 = vunpack.c.h.b16 %v39
  %v204 = vunpack.c.l.b16 %v40
  %v205 = vunpack.c.h.b16 %v40
  %v206 = vunpack.c.l.b16 %v41
  %v207 = vunpack.c.h.b16 %v41
  %v208 = vunpack.c.l.b16 %v42
  %v209 = vunpack.c.h.b16 %v42
  %v210 = vunpack.c.l.b16 %v43
  %v211 = vunpack.c.h.b16 %v43
  %v212 = vunpack.c.l.b16 %v44
  %v213 = vunpack.c.h.b16 %v44
  %v214 = vunpack.c.l.b16 %v45
  %v215 = vunpack.c.h.b16 %v45
  %v216 = vunpack.c.l.b16 %v46
  %v217 = vunpack.c.h.b16 %v46
  %v218 = vunpack.c.l.b16 %v47
  %v219 = vunpack.c.h.b16 %v47
  %v220 = vunpack.c.l.b16 %v48
  %v221 = vunpack.c.h.b16 %v48
  %v222 = vunpack.c.l.b16 %v49
  %v223 = vunpack.c.h.b16 %v49
  %v224 = vunpack.c.l.b16 %v50
  %v225 = vunpack.c.h.b16 %v50
  %v226 = vunpack.c.l.b16 %v51
  %v227 = vunpack.c.h.b16 %v51
  %v228 = vunpack.c.l.b16 %v52
  %v229 = vunpack.c.h.b16 %v52
  %v230 = vunpack.c.l.b16 %v53
  %v231 = vunpack.c.h.b16 %v53
  %v232 = vunpack.c.l.b16 %v54
  %v233 = vunpack.c.h.b16 %v54
  %v234 = vunpack.c.l.b16 %v55
  %v235 = vunpack.c.h.b16 %v55
  %v236 = vpack.c.b16 %v188, %v172
  %v237 = vpack.c.b16 %v189, %v173
  %v238 = vpack.c.b16 %v190, %v174
  %v239 = vpack.c.b16 %v191, %v175
  %v240 = vpack.c.b16 %v192, %v176
  %v241 = vpack.c.b16 %v193, %v177
  %v242 = vpack.c.b16 %v194, %v178
  %v243 = vpack.c.b16 %v195, %v179
  %v244 = vpack.c.b16 %v196, %v180
  %v245 = vpack.c.b16 %v197, %v181
  %v246 = vpack.c.b16 %v198, %v182
  %v247 = vpack.c.b16 %v199, %v183
  %v248 = vpack.c.b16 %v200, %v184
  %v249 = vpack.c.b16 %v201, %v185
  %v250 = vpack.c.b16 %v202, %v186
  %v251 = vpack.c.b16 %v203, %v187
  %v252 = vpack.c.b16 %v220, %v204
  %v253 = vpack.c.b16 %v221, %v205
  %v254 = vpack.c.b16 %v222, %v206
  %v255 = vpack.c.b16 %v223, %v207
  %v256 = vpack.c.b16 %v224, %v208
  %v257 = vpack.c.b16 %v225, %v209
  %v258 = vpack.c.b16 %v226, %v210
  %v259 = vpack.c.b16 %v227, %v211
  %v260 = vpack.c.b16 %v228, %v212
  %v261 = vpack.c.b16 %v229, %v213
  %v262 = vpack.c.b16 %v230, %v214
  %v263 = vpack.c.b16 %v231, %v215
  %v264 = vpack.c.b16 %v232, %v216
  %v265 = vpack.c.b16 %v233, %v217
  %v266 = vpack.c.b16 %v234, %v218
  %v267 = vpack.c.b16 %v235, %v219
  %vm300 = vcmask 261120
  %v302 = vsel %vm300, %v23, 0
  %304 = vmatprep.subr.bf16.mxu0 %v237
  %305 = vmatpush1.bf16.msra.mxu0 %v236
  %306 = vmatprep.subr.bf16.mxu0 %v253
  %307 = vmatpush1.bf16.msra.mxu0 %v252
  %308 = vmatprep.subr.bf16.mxu0 0
  %309 = vmatpush1.bf16.msra.mxu0 0
  %310 = vmatprep.subr.bf16.mxu0 0
  %311 = vmatpush1.bf16.msra.mxu0 0
  %312 = vmatprep.subr.bf16.mxu0 0
  %313 = vmatpush1.bf16.msra.mxu0 0
  %314 = vmatprep.subr.bf16.mxu0 0
  %315 = vmatpush1.bf16.msra.mxu0 0
  %316 = vmatprep.subr.bf16.mxu0 0
  %317 = vmatpush1.bf16.msra.mxu0 0
  %318 = vmatprep.subr.bf16.mxu0 0
  %319 = vmatpush1.bf16.msra.mxu0 0
  %320 = vmatprep.subr.bf16.mxu0 0
  %321 = vmatpush1.bf16.msra.mxu0 0
  %322 = vmatprep.subr.bf16.mxu0 0
  %323 = vmatpush1.bf16.msra.mxu0 0
  %324 = vmatprep.subr.bf16.mxu0 0
  %325 = vmatpush1.bf16.msra.mxu0 0
  %326 = vmatprep.subr.bf16.mxu0 0
  %327 = vmatpush1.bf16.msra.mxu0 0
  %328 = vmatprep.subr.bf16.mxu0 0
  %329 = vmatpush1.bf16.msra.mxu0 0
  %330 = vmatprep.subr.bf16.mxu0 0
  %331 = vmatpush1.bf16.msra.mxu0 0
  %332 = vmatprep.subr.bf16.mxu0 0
  %333 = vmatpush1.bf16.msra.mxu0 0
  %334 = vmatprep.subr.bf16.mxu0 0
  %335 = vmatpush1.bf16.msra.mxu0 0
  %336 = vmatprep.mubr.bf16.mxu0 0
  %337 = vmatmul.mubr.bf16.gmra.mrb[0].mxu0 %v302
  %v338 = vpop.f32.mrb[0].mxu0
  %v339 = vadd.f32 %v63, %v338
  %v340 = vpop.f32.mrb[0].mxu0
  %v341 = vadd.f32 %v67, %v340
  %v342 = vpop.f32.mrb[0].mxu0
  %v343 = vadd.f32 %v63, %v342
  %v344 = vpop.f32.mrb[0].mxu0
  %v345 = vadd.f32 %v67, %v344
  %346 = vdwg.mxu0
  %347 = vmatprep.subr.bf16.mxu0 %v239
  %348 = vmatpush1.bf16.msra.mxu0 %v238
  %349 = vmatprep.subr.bf16.mxu0 %v255
  %350 = vmatpush1.bf16.msra.mxu0 %v254
  %351 = vmatprep.subr.bf16.mxu0 0
  %352 = vmatpush1.bf16.msra.mxu0 0
  %353 = vmatprep.subr.bf16.mxu0 0
  %354 = vmatpush1.bf16.msra.mxu0 0
  %355 = vmatprep.subr.bf16.mxu0 0
  %356 = vmatpush1.bf16.msra.mxu0 0
  %357 = vmatprep.subr.bf16.mxu0 0
  %358 = vmatpush1.bf16.msra.mxu0 0
  %359 = vmatprep.subr.bf16.mxu0 0
  %360 = vmatpush1.bf16.msra.mxu0 0
  %361 = vmatprep.subr.bf16.mxu0 0
  %362 = vmatpush1.bf16.msra.mxu0 0
  %363 = vmatprep.subr.bf16.mxu0 0
  %364 = vmatpush1.bf16.msra.mxu0 0
  %365 = vmatprep.subr.bf16.mxu0 0
  %366 = vmatpush1.bf16.msra.mxu0 0
  %367 = vmatprep.subr.bf16.mxu0 0
  %368 = vmatpush1.bf16.msra.mxu0 0
  %369 = vmatprep.subr.bf16.mxu0 0
  %370 = vmatpush1.bf16.msra.mxu0 0
  %371 = vmatprep.subr.bf16.mxu0 0
  %372 = vmatpush1.bf16.msra.mxu0 0
  %373 = vmatprep.subr.bf16.mxu0 0
  %374 = vmatpush1.bf16.msra.mxu0 0
  %375 = vmatprep.subr.bf16.mxu0 0
  %376 = vmatpush1.bf16.msra.mxu0 0
  %377 = vmatprep.subr.bf16.mxu0 0
  %378 = vmatpush1.bf16.msra.mxu0 0
  %379 = vmatprep.mubr.bf16.mxu0 0
  %380 = vmatmul.mubr.bf16.gmra.mrb[0].mxu0 %v302
  %v381 = vpop.f32.mrb[0].mxu0
  %v382 = vadd.f32 %v71, %v381
  %v383 = vpop.f32.mrb[0].mxu0
  %v384 = vadd.f32 %v75, %v383
  %v385 = vpop.f32.mrb[0].mxu0
  %v386 = vadd.f32 %v71, %v385
  %v387 = vpop.f32.mrb[0].mxu0
  %v388 = vadd.f32 %v75, %v387
  %389 = vdwg.mxu0
  %390 = vmatprep.subr.bf16.mxu0 %v241
  %391 = vmatpush1.bf16.msra.mxu0 %v240
  %392 = vmatprep.subr.bf16.mxu0 %v257
  %393 = vmatpush1.bf16.msra.mxu0 %v256
  %394 = vmatprep.subr.bf16.mxu0 0
  %395 = vmatpush1.bf16.msra.mxu0 0
  %396 = vmatprep.subr.bf16.mxu0 0
  %397 = vmatpush1.bf16.msra.mxu0 0
  %398 = vmatprep.subr.bf16.mxu0 0
  %399 = vmatpush1.bf16.msra.mxu0 0
  %400 = vmatprep.subr.bf16.mxu0 0
  %401 = vmatpush1.bf16.msra.mxu0 0
  %402 = vmatprep.subr.bf16.mxu0 0
  %403 = vmatpush1.bf16.msra.mxu0 0
  %404 = vmatprep.subr.bf16.mxu0 0
  %405 = vmatpush1.bf16.msra.mxu0 0
  %406 = vmatprep.subr.bf16.mxu0 0
  %407 = vmatpush1.bf16.msra.mxu0 0
  %408 = vmatprep.subr.bf16.mxu0 0
  %409 = vmatpush1.bf16.msra.mxu0 0
  %410 = vmatprep.subr.bf16.mxu0 0
  %411 = vmatpush1.bf16.msra.mxu0 0
  %412 = vmatprep.subr.bf16.mxu0 0
  %413 = vmatpush1.bf16.msra.mxu0 0
  %414 = vmatprep.subr.bf16.mxu0 0
  %415 = vmatpush1.bf16.msra.mxu0 0
  %416 = vmatprep.subr.bf16.mxu0 0
  %417 = vmatpush1.bf16.msra.mxu0 0
  %418 = vmatprep.subr.bf16.mxu0 0
  %419 = vmatpush1.bf16.msra.mxu0 0
  %420 = vmatprep.subr.bf16.mxu0 0
  %421 = vmatpush1.bf16.msra.mxu0 0
  %422 = vmatprep.mubr.bf16.mxu0 0
  %423 = vmatmul.mubr.bf16.gmra.mrb[0].mxu0 %v302
  %v424 = vpop.f32.mrb[0].mxu0
  %v425 = vadd.f32 %v79, %v424
  %v426 = vpop.f32.mrb[0].mxu0
  %v427 = vadd.f32 %v83, %v426
  %v428 = vpop.f32.mrb[0].mxu0
  %v429 = vadd.f32 %v79, %v428
  %v430 = vpop.f32.mrb[0].mxu0
  %v431 = vadd.f32 %v83, %v430
  %432 = vdwg.mxu0
  %433 = vmatprep.subr.bf16.mxu0 %v243
  %434 = vmatpush1.bf16.msra.mxu0 %v242
  %435 = vmatprep.subr.bf16.mxu0 %v259
  %436 = vmatpush1.bf16.msra.mxu0 %v258
  %437 = vmatprep.subr.bf16.mxu0 0
  %438 = vmatpush1.bf16.msra.mxu0 0
  %439 = vmatprep.subr.bf16.mxu0 0
  %440 = vmatpush1.bf16.msra.mxu0 0
  %441 = vmatprep.subr.bf16.mxu0 0
  %442 = vmatpush1.bf16.msra.mxu0 0
  %443 = vmatprep.subr.bf16.mxu0 0
  %444 = vmatpush1.bf16.msra.mxu0 0
  %445 = vmatprep.subr.bf16.mxu0 0
  %446 = vmatpush1.bf16.msra.mxu0 0
  %447 = vmatprep.subr.bf16.mxu0 0
  %448 = vmatpush1.bf16.msra.mxu0 0
  %449 = vmatprep.subr.bf16.mxu0 0
  %450 = vmatpush1.bf16.msra.mxu0 0
  %451 = vmatprep.subr.bf16.mxu0 0
  %452 = vmatpush1.bf16.msra.mxu0 0
  %453 = vmatprep.subr.bf16.mxu0 0
  %454 = vmatpush1.bf16.msra.mxu0 0
  %455 = vmatprep.subr.bf16.mxu0 0
  %456 = vmatpush1.bf16.msra.mxu0 0
  %457 = vmatprep.subr.bf16.mxu0 0
  %458 = vmatpush1.bf16.msra.mxu0 0
  %459 = vmatprep.subr.bf16.mxu0 0
  %460 = vmatpush1.bf16.msra.mxu0 0
  %461 = vmatprep.subr.bf16.mxu0 0
  %462 = vmatpush1.bf16.msra.mxu0 0
  %463 = vmatprep.subr.bf16.mxu0 0
  %464 = vmatpush1.bf16.msra.mxu0 0
  %465 = vmatprep.mubr.bf16.mxu0 0
  %466 = vmatmul.mubr.bf16.gmra.mrb[0].mxu0 %v302
  %v467 = vpop.f32.mrb[0].mxu0
  %v468 = vadd.f32 %v87, %v467
  %v469 = vpop.f32.mrb[0].mxu0
  %v470 = vadd.f32 %v91, %v469
  %v471 = vpop.f32.mrb[0].mxu0
  %v472 = vadd.f32 %v87, %v471
  %v473 = vpop.f32.mrb[0].mxu0
  %v474 = vadd.f32 %v91, %v473
  %475 = vdwg.mxu0
  %476 = vmatprep.subr.bf16.mxu0 %v245
  %477 = vmatpush1.bf16.msra.mxu0 %v244
  %478 = vmatprep.subr.bf16.mxu0 %v261
  %479 = vmatpush1.bf16.msra.mxu0 %v260
  %480 = vmatprep.subr.bf16.mxu0 0
  %481 = vmatpush1.bf16.msra.mxu0 0
  %482 = vmatprep.subr.bf16.mxu0 0
  %483 = vmatpush1.bf16.msra.mxu0 0
  %484 = vmatprep.subr.bf16.mxu0 0
  %485 = vmatpush1.bf16.msra.mxu0 0
  %486 = vmatprep.subr.bf16.mxu0 0
  %487 = vmatpush1.bf16.msra.mxu0 0
  %488 = vmatprep.subr.bf16.mxu0 0
  %489 = vmatpush1.bf16.msra.mxu0 0
  %490 = vmatprep.subr.bf16.mxu0 0
  %491 = vmatpush1.bf16.msra.mxu0 0
  %492 = vmatprep.subr.bf16.mxu0 0
  %493 = vmatpush1.bf16.msra.mxu0 0
  %494 = vmatprep.subr.bf16.mxu0 0
  %495 = vmatpush1.bf16.msra.mxu0 0
  %496 = vmatprep.subr.bf16.mxu0 0
  %497 = vmatpush1.bf16.msra.mxu0 0
  %498 = vmatprep.subr.bf16.mxu0 0
  %499 = vmatpush1.bf16.msra.mxu0 0
  %500 = vmatprep.subr.bf16.mxu0 0
  %501 = vmatpush1.bf16.msra.mxu0 0
  %502 = vmatprep.subr.bf16.mxu0 0
  %503 = vmatpush1.bf16.msra.mxu0 0
  %504 = vmatprep.subr.bf16.mxu0 0
  %505 = vmatpush1.bf16.msra.mxu0 0
  %506 = vmatprep.subr.bf16.mxu0 0
  %507 = vmatpush1.bf16.msra.mxu0 0
  %508 = vmatprep.mubr.bf16.mxu0 0
  %509 = vmatmul.mubr.bf16.gmra.mrb[0].mxu0 %v302
  %v510 = vpop.f32.mrb[0].mxu0
  %v511 = vadd.f32 %v95, %v510
  %v512 = vpop.f32.mrb[0].mxu0
  %v513 = vadd.f32 %v99, %v512
  %v514 = vpop.f32.mrb[0].mxu0
  %v515 = vadd.f32 %v95, %v514
  %v516 = vpop.f32.mrb[0].mxu0
  %v517 = vadd.f32 %v99, %v516
  %518 = vdwg.mxu0
  %519 = vmatprep.subr.bf16.mxu0 %v247
  %520 = vmatpush1.bf16.msra.mxu0 %v246
  %521 = vmatprep.subr.bf16.mxu0 %v263
  %522 = vmatpush1.bf16.msra.mxu0 %v262
  %523 = vmatprep.subr.bf16.mxu0 0
  %524 = vmatpush1.bf16.msra.mxu0 0
  %525 = vmatprep.subr.bf16.mxu0 0
  %526 = vmatpush1.bf16.msra.mxu0 0
  %527 = vmatprep.subr.bf16.mxu0 0
  %528 = vmatpush1.bf16.msra.mxu0 0
  %529 = vmatprep.subr.bf16.mxu0 0
  %530 = vmatpush1.bf16.msra.mxu0 0
  %531 = vmatprep.subr.bf16.mxu0 0
  %532 = vmatpush1.bf16.msra.mxu0 0
  %533 = vmatprep.subr.bf16.mxu0 0
  %534 = vmatpush1.bf16.msra.mxu0 0
  %535 = vmatprep.subr.bf16.mxu0 0
  %536 = vmatpush1.bf16.msra.mxu0 0
  %537 = vmatprep.subr.bf16.mxu0 0
  %538 = vmatpush1.bf16.msra.mxu0 0
  %539 = vmatprep.subr.bf16.mxu0 0
  %540 = vmatpush1.bf16.msra.mxu0 0
  %541 = vmatprep.subr.bf16.mxu0 0
  %542 = vmatpush1.bf16.msra.mxu0 0
  %543 = vmatprep.subr.bf16.mxu0 0
  %544 = vmatpush1.bf16.msra.mxu0 0
  %545 = vmatprep.subr.bf16.mxu0 0
  %546 = vmatpush1.bf16.msra.mxu0 0
  %547 = vmatprep.subr.bf16.mxu0 0
  %548 = vmatpush1.bf16.msra.mxu0 0
  %549 = vmatprep.subr.bf16.mxu0 0
  %550 = vmatpush1.bf16.msra.mxu0 0
  %551 = vmatprep.mubr.bf16.mxu0 0
  %552 = vmatmul.mubr.bf16.gmra.mrb[0].mxu0 %v302
  %v553 = vpop.f32.mrb[0].mxu0
  %v554 = vadd.f32 %v103, %v553
  %v555 = vpop.f32.mrb[0].mxu0
  %v556 = vadd.f32 %v107, %v555
  %v557 = vpop.f32.mrb[0].mxu0
  %v558 = vadd.f32 %v103, %v557
  %v559 = vpop.f32.mrb[0].mxu0
  %v560 = vadd.f32 %v107, %v559
  %561 = vdwg.mxu0
  %562 = vmatprep.subr.bf16.mxu0 %v249
  %563 = vmatpush1.bf16.msra.mxu0 %v248
  %564 = vmatprep.subr.bf16.mxu0 %v265
  %565 = vmatpush1.bf16.msra.mxu0 %v264
  %566 = vmatprep.subr.bf16.mxu0 0
  %567 = vmatpush1.bf16.msra.mxu0 0
  %568 = vmatprep.subr.bf16.mxu0 0
  %569 = vmatpush1.bf16.msra.mxu0 0
  %570 = vmatprep.subr.bf16.mxu0 0
  %571 = vmatpush1.bf16.msra.mxu0 0
  %572 = vmatprep.subr.bf16.mxu0 0
  %573 = vmatpush1.bf16.msra.mxu0 0
  %574 = vmatprep.subr.bf16.mxu0 0
  %575 = vmatpush1.bf16.msra.mxu0 0
  %576 = vmatprep.subr.bf16.mxu0 0
  %577 = vmatpush1.bf16.msra.mxu0 0
  %578 = vmatprep.subr.bf16.mxu0 0
  %579 = vmatpush1.bf16.msra.mxu0 0
  %580 = vmatprep.subr.bf16.mxu0 0
  %581 = vmatpush1.bf16.msra.mxu0 0
  %582 = vmatprep.subr.bf16.mxu0 0
  %583 = vmatpush1.bf16.msra.mxu0 0
  %584 = vmatprep.subr.bf16.mxu0 0
  %585 = vmatpush1.bf16.msra.mxu0 0
  %586 = vmatprep.subr.bf16.mxu0 0
  %587 = vmatpush1.bf16.msra.mxu0 0
  %588 = vmatprep.subr.bf16.mxu0 0
  %589 = vmatpush1.bf16.msra.mxu0 0
  %590 = vmatprep.subr.bf16.mxu0 0
  %591 = vmatpush1.bf16.msra.mxu0 0
  %592 = vmatprep.subr.bf16.mxu0 0
  %593 = vmatpush1.bf16.msra.mxu0 0
  %594 = vmatprep.mubr.bf16.mxu0 0
  %595 = vmatmul.mubr.bf16.gmra.mrb[0].mxu0 %v302
  %v596 = vpop.f32.mrb[0].mxu0
  %v597 = vadd.f32 %v111, %v596
  %v598 = vpop.f32.mrb[0].mxu0
  %v599 = vadd.f32 %v115, %v598
  %v600 = vpop.f32.mrb[0].mxu0
  %v601 = vadd.f32 %v111, %v600
  %v602 = vpop.f32.mrb[0].mxu0
  %v603 = vadd.f32 %v115, %v602
  %604 = vdwg.mxu0
  %605 = vmatprep.subr.bf16.mxu0 %v251
  %606 = vmatpush1.bf16.msra.mxu0 %v250
  %607 = vmatprep.subr.bf16.mxu0 %v267
  %608 = vmatpush1.bf16.msra.mxu0 %v266
  %609 = vmatprep.subr.bf16.mxu0 0
  %610 = vmatpush1.bf16.msra.mxu0 0
  %611 = vmatprep.subr.bf16.mxu0 0
  %612 = vmatpush1.bf16.msra.mxu0 0
  %613 = vmatprep.subr.bf16.mxu0 0
  %614 = vmatpush1.bf16.msra.mxu0 0
  %615 = vmatprep.subr.bf16.mxu0 0
  %616 = vmatpush1.bf16.msra.mxu0 0
  %617 = vmatprep.subr.bf16.mxu0 0
  %618 = vmatpush1.bf16.msra.mxu0 0
  %619 = vmatprep.subr.bf16.mxu0 0
  %620 = vmatpush1.bf16.msra.mxu0 0
  %621 = vmatprep.subr.bf16.mxu0 0
  %622 = vmatpush1.bf16.msra.mxu0 0
  %623 = vmatprep.subr.bf16.mxu0 0
  %624 = vmatpush1.bf16.msra.mxu0 0
  %625 = vmatprep.subr.bf16.mxu0 0
  %626 = vmatpush1.bf16.msra.mxu0 0
  %627 = vmatprep.subr.bf16.mxu0 0
  %628 = vmatpush1.bf16.msra.mxu0 0
  %629 = vmatprep.subr.bf16.mxu0 0
  %630 = vmatpush1.bf16.msra.mxu0 0
  %631 = vmatprep.subr.bf16.mxu0 0
  %632 = vmatpush1.bf16.msra.mxu0 0
  %633 = vmatprep.subr.bf16.mxu0 0
  %634 = vmatpush1.bf16.msra.mxu0 0
  %635 = vmatprep.subr.bf16.mxu0 0
  %636 = vmatpush1.bf16.msra.mxu0 0
  %637 = vmatprep.mubr.bf16.mxu0 0
  %638 = vmatmul.mubr.bf16.gmra.mrb[0].mxu0 %v302
  %v639 = vpop.f32.mrb[0].mxu0
  %v640 = vadd.f32 %v119, %v639
  %v641 = vpop.f32.mrb[0].mxu0
  %v642 = vadd.f32 %v123, %v641
  %v643 = vpop.f32.mrb[0].mxu0
  %v644 = vadd.f32 %v119, %v643
  %v645 = vpop.f32.mrb[0].mxu0
  %v646 = vadd.f32 %v123, %v645
  %647 = vdwg.mxu0
  %v648 = vmax.f32 %v339, 0.0
  %v649 = vmax.f32 %v341, 0.0
  %v650 = vmax.f32 %v382, 0.0
  %v651 = vmax.f32 %v384, 0.0
  %v652 = vmax.f32 %v425, 0.0
  %v653 = vmax.f32 %v427, 0.0
  %v654 = vmax.f32 %v468, 0.0
  %v655 = vmax.f32 %v470, 0.0
  %v656 = vmax.f32 %v511, 0.0
  %v657 = vmax.f32 %v513, 0.0
  %v658 = vmax.f32 %v554, 0.0
  %v659 = vmax.f32 %v556, 0.0
  %v660 = vmax.f32 %v597, 0.0
  %v661 = vmax.f32 %v599, 0.0
  %v662 = vmax.f32 %v640, 0.0
  %v663 = vmax.f32 %v642, 0.0
  %v664 = vmax.f32 %v343, 0.0
  %v665 = vmax.f32 %v345, 0.0
  %v666 = vmax.f32 %v386, 0.0
  %v667 = vmax.f32 %v388, 0.0
  %v668 = vmax.f32 %v429, 0.0
  %v669 = vmax.f32 %v431, 0.0
  %v670 = vmax.f32 %v472, 0.0
  %v671 = vmax.f32 %v474, 0.0
  %v672 = vmax.f32 %v515, 0.0
  %v673 = vmax.f32 %v517, 0.0
  %v674 = vmax.f32 %v558, 0.0
  %v675 = vmax.f32 %v560, 0.0
  %v676 = vmax.f32 %v601, 0.0
  %v677 = vmax.f32 %v603, 0.0
  %v678 = vmax.f32 %v644, 0.0
  %v679 = vmax.f32 %v646, 0.0
  %v680 = vpack.c.bf16 %v664, %v648
  %v681 = vpack.c.bf16 %v665, %v649
  %v682 = vpack.c.bf16 %v666, %v650
  %v683 = vpack.c.bf16 %v667, %v651
  %v684 = vpack.c.bf16 %v668, %v652
  %v685 = vpack.c.bf16 %v669, %v653
  %v686 = vpack.c.bf16 %v670, %v654
  %v687 = vpack.c.bf16 %v671, %v655
  %v688 = vpack.c.bf16 %v672, %v656
  %v689 = vpack.c.bf16 %v673, %v657
  %v690 = vpack.c.bf16 %v674, %v658
  %v691 = vpack.c.bf16 %v675, %v659
  %v692 = vpack.c.bf16 %v676, %v660
  %v693 = vpack.c.bf16 %v677, %v661
  %v694 = vpack.c.bf16 %v678, %v662
  %v695 = vpack.c.bf16 %v679, %v663
  %v696 = vld [vmem:[%s3] sm:$0xf]
  %v697 = vld [vmem:[%s3 + $0x4] sm:$0xf]
  %v698 = vld [vmem:[%s3 + $0x8] sm:$0xf]
  %v699 = vld [vmem:[%s3 + $0xc] sm:$0xf]
  %v700 = vld [vmem:[%s3 + $0x10] sm:$0xf]
  %v701 = vld [vmem:[%s3 + $0x14] sm:$0xf]
  %v702 = vld [vmem:[%s3 + $0x18] sm:$0xf]
  %v703 = vld [vmem:[%s3 + $0x1c] sm:$0xf]
  %v704 = vld [vmem:[%s3 + $0x20] sm:$0xf]
  %v705 = vld [vmem:[%s3 + $0x24] sm:$0xf]
  %v706 = vld [vmem:[%s3 + $0x28] sm:$0xf]
  %v707 = vld [vmem:[%s3 + $0x2c] sm:$0xf]
  %v708 = vld [vmem:[%s3 + $0x30] sm:$0xf]
  %v709 = vld [vmem:[%s3 + $0x34] sm:$0xf]
  %v710 = vld [vmem:[%s3 + $0x38] sm:$0xf]
  %v711 = vld [vmem:[%s3 + $0x3c] sm:$0xf]
  %v712 = vld [vmem:[%s3 + $0x40] sm:$0xf]
  %v713 = vld [vmem:[%s3 + $0x44] sm:$0xf]
  %v714 = vld [vmem:[%s3 + $0x48] sm:$0xf]
  %v715 = vld [vmem:[%s3 + $0x4c] sm:$0xf]
  %v716 = vld [vmem:[%s3 + $0x50] sm:$0xf]
  %v717 = vld [vmem:[%s3 + $0x54] sm:$0xf]
  %v718 = vld [vmem:[%s3 + $0x58] sm:$0xf]
  %v719 = vld [vmem:[%s3 + $0x5c] sm:$0xf]
  %v720 = vld [vmem:[%s3 + $0x60] sm:$0xf]
  %v721 = vld [vmem:[%s3 + $0x64] sm:$0xf]
  %v722 = vld [vmem:[%s3 + $0x68] sm:$0xf]
  %v723 = vld [vmem:[%s3 + $0x6c] sm:$0xf]
  %v724 = vld [vmem:[%s3 + $0x70] sm:$0xf]
  %v725 = vld [vmem:[%s3 + $0x74] sm:$0xf]
  %v726 = vld [vmem:[%s3 + $0x78] sm:$0xf]
  %v727 = vld [vmem:[%s3 + $0x7c] sm:$0xf]
  %v728 = vld [vmem:[%s3 + $0x80] sm:$0xf]
  %v729 = vld [vmem:[%s3 + $0x84] sm:$0xf]
  %v730 = vld [vmem:[%s3 + $0x88] sm:$0xf]
  %v731 = vld [vmem:[%s3 + $0x8c] sm:$0xf]
  %v732 = vld [vmem:[%s3 + $0x90] sm:$0xf]
  %v733 = vld [vmem:[%s3 + $0x94] sm:$0xf]
  %v734 = vld [vmem:[%s3 + $0x98] sm:$0xf]
  %v735 = vld [vmem:[%s3 + $0x9c] sm:$0xf]
  %v736 = vld [vmem:[%s3 + $0xa0] sm:$0xf]
  %v737 = vld [vmem:[%s3 + $0xa4] sm:$0xf]
  %v738 = vld [vmem:[%s3 + $0xa8] sm:$0xf]
  %v739 = vld [vmem:[%s3 + $0xac] sm:$0xf]
  %v740 = vld [vmem:[%s3 + $0xb0] sm:$0xf]
  %v741 = vld [vmem:[%s3 + $0xb4] sm:$0xf]
  %v742 = vld [vmem:[%s3 + $0xb8] sm:$0xf]
  %v743 = vld [vmem:[%s3 + $0xbc] sm:$0xf]
  %v744 = vld [vmem:[%s3 + $0xc0] sm:$0xf]
  %v745 = vld [vmem:[%s3 + $0xc4] sm:$0xf]
  %v746 = vld [vmem:[%s3 + $0xc8] sm:$0xf]
  %v747 = vld [vmem:[%s3 + $0xcc] sm:$0xf]
  %v748 = vld [vmem:[%s3 + $0xd0] sm:$0xf]
  %v749 = vld [vmem:[%s3 + $0xd4] sm:$0xf]
  %v750 = vld [vmem:[%s3 + $0xd8] sm:$0xf]
  %v751 = vld [vmem:[%s3 + $0xdc] sm:$0xf]
  %v752 = vld [vmem:[%s3 + $0xe0] sm:$0xf]
  %v753 = vld [vmem:[%s3 + $0xe4] sm:$0xf]
  %v754 = vld [vmem:[%s3 + $0xe8] sm:$0xf]
  %v755 = vld [vmem:[%s3 + $0xec] sm:$0xf]
  %v756 = vld [vmem:[%s3 + $0xf0] sm:$0xf]
  %v757 = vld [vmem:[%s3 + $0xf4] sm:$0xf]
  %v758 = vld [vmem:[%s3 + $0xf8] sm:$0xf]
  %v759 = vld [vmem:[%s3 + $0xfc] sm:$0xf]
  %v760 = vld [vmem:[%s3 + $0x100] sm:$0xf]
  %v761 = vld [vmem:[%s3 + $0x104] sm:$0xf]
  %v762 = vld [vmem:[%s3 + $0x108] sm:$0xf]
  %v763 = vld [vmem:[%s3 + $0x10c] sm:$0xf]
  %v764 = vld [vmem:[%s3 + $0x110] sm:$0xf]
  %v765 = vld [vmem:[%s3 + $0x114] sm:$0xf]
  %v766 = vld [vmem:[%s3 + $0x118] sm:$0xf]
  %v767 = vld [vmem:[%s3 + $0x11c] sm:$0xf]
  %v768 = vld [vmem:[%s3 + $0x120] sm:$0xf]
  %v769 = vld [vmem:[%s3 + $0x124] sm:$0xf]
  %v770 = vld [vmem:[%s3 + $0x128] sm:$0xf]
  %v771 = vld [vmem:[%s3 + $0x12c] sm:$0xf]
  %v772 = vld [vmem:[%s3 + $0x130] sm:$0xf]
  %v773 = vld [vmem:[%s3 + $0x134] sm:$0xf]
  %v774 = vld [vmem:[%s3 + $0x138] sm:$0xf]
  %v775 = vld [vmem:[%s3 + $0x13c] sm:$0xf]
  %v776 = vld [vmem:[%s3 + $0x140] sm:$0xf]
  %v777 = vld [vmem:[%s3 + $0x144] sm:$0xf]
  %v778 = vld [vmem:[%s3 + $0x148] sm:$0xf]
  %v779 = vld [vmem:[%s3 + $0x14c] sm:$0xf]
  %v780 = vld [vmem:[%s3 + $0x150] sm:$0xf]
  %v781 = vld [vmem:[%s3 + $0x154] sm:$0xf]
  %v782 = vld [vmem:[%s3 + $0x158] sm:$0xf]
  %v783 = vld [vmem:[%s3 + $0x15c] sm:$0xf]
  %v784 = vld [vmem:[%s3 + $0x160] sm:$0xf]
  %v785 = vld [vmem:[%s3 + $0x164] sm:$0xf]
  %v786 = vld [vmem:[%s3 + $0x168] sm:$0xf]
  %v787 = vld [vmem:[%s3 + $0x16c] sm:$0xf]
  %v788 = vld [vmem:[%s3 + $0x170] sm:$0xf]
  %v789 = vld [vmem:[%s3 + $0x174] sm:$0xf]
  %v790 = vld [vmem:[%s3 + $0x178] sm:$0xf]
  %v791 = vld [vmem:[%s3 + $0x17c] sm:$0xf]
  %v792 = vld [vmem:[%s3 + $0x180] sm:$0xf]
  %v793 = vld [vmem:[%s3 + $0x184] sm:$0xf]
  %v794 = vld [vmem:[%s3 + $0x188] sm:$0xf]
  %v795 = vld [vmem:[%s3 + $0x18c] sm:$0xf]
  %v796 = vld [vmem:[%s3 + $0x190] sm:$0xf]
  %v797 = vld [vmem:[%s3 + $0x194] sm:$0xf]
  %v798 = vld [vmem:[%s3 + $0x198] sm:$0xf]
  %v799 = vld [vmem:[%s3 + $0x19c] sm:$0xf]
  %v800 = vld [vmem:[%s3 + $0x1a0] sm:$0xf]
  %v801 = vld [vmem:[%s3 + $0x1a4] sm:$0xf]
  %v802 = vld [vmem:[%s3 + $0x1a8] sm:$0xf]
  %v803 = vld [vmem:[%s3 + $0x1ac] sm:$0xf]
  %v804 = vld [vmem:[%s3 + $0x1b0] sm:$0xf]
  %v805 = vld [vmem:[%s3 + $0x1b4] sm:$0xf]
  %v806 = vld [vmem:[%s3 + $0x1b8] sm:$0xf]
  %v807 = vld [vmem:[%s3 + $0x1bc] sm:$0xf]
  %v808 = vld [vmem:[%s3 + $0x1c0] sm:$0xf]
  %v809 = vld [vmem:[%s3 + $0x1c4] sm:$0xf]
  %v810 = vld [vmem:[%s3 + $0x1c8] sm:$0xf]
  %v811 = vld [vmem:[%s3 + $0x1cc] sm:$0xf]
  %v812 = vld [vmem:[%s3 + $0x1d0] sm:$0xf]
  %v813 = vld [vmem:[%s3 + $0x1d4] sm:$0xf]
  %v814 = vld [vmem:[%s3 + $0x1d8] sm:$0xf]
  %v815 = vld [vmem:[%s3 + $0x1dc] sm:$0xf]
  %v816 = vld [vmem:[%s3 + $0x1e0] sm:$0xf]
  %v817 = vld [vmem:[%s3 + $0x1e4] sm:$0xf]
  %v818 = vld [vmem:[%s3 + $0x1e8] sm:$0xf]
  %v819 = vld [vmem:[%s3 + $0x1ec] sm:$0xf]
  %v820 = vld [vmem:[%s3 + $0x1f0] sm:$0xf]
  %v821 = vld [vmem:[%s3 + $0x1f4] sm:$0xf]
  %v822 = vld [vmem:[%s3 + $0x1f8] sm:$0xf]
  %v823 = vld [vmem:[%s3 + $0x1fc] sm:$0xf]
  %v824 = vld [vmem:[%s3 + $0x200] sm:$0xf]
  %v825 = vld [vmem:[%s3 + $0x204] sm:$0xf]
  %v826 = vld [vmem:[%s3 + $0x208] sm:$0xf]
  %v827 = vld [vmem:[%s3 + $0x20c] sm:$0xf]
  %v828 = vld [vmem:[%s3 + $0x210] sm:$0xf]
  %v829 = vld [vmem:[%s3 + $0x214] sm:$0xf]
  %v830 = vld [vmem:[%s3 + $0x218] sm:$0xf]
  %v831 = vld [vmem:[%s3 + $0x21c] sm:$0xf]
  %v832 = vld [vmem:[%s3 + $0x220] sm:$0xf]
  %v833 = vld [vmem:[%s3 + $0x224] sm:$0xf]
  %v834 = vld [vmem:[%s3 + $0x228] sm:$0xf]
  %v835 = vld [vmem:[%s3 + $0x22c] sm:$0xf]
  %v836 = vld [vmem:[%s3 + $0x230] sm:$0xf]
  %v837 = vld [vmem:[%s3 + $0x234] sm:$0xf]
  %v838 = vld [vmem:[%s3 + $0x238] sm:$0xf]
  %v839 = vld [vmem:[%s3 + $0x23c] sm:$0xf]
  %v840 = vld [vmem:[%s3 + $0x240] sm:$0xf]
  %v841 = vld [vmem:[%s3 + $0x244] sm:$0xf]
  %v842 = vld [vmem:[%s3 + $0x248] sm:$0xf]
  %v843 = vld [vmem:[%s3 + $0x24c] sm:$0xf]
  %v844 = vld [vmem:[%s3 + $0x250] sm:$0xf]
  %v845 = vld [vmem:[%s3 + $0x254] sm:$0xf]
  %v846 = vld [vmem:[%s3 + $0x258] sm:$0xf]
  %v847 = vld [vmem:[%s3 + $0x25c] sm:$0xf]
  %v848 = vld [vmem:[%s3 + $0x260] sm:$0xf]
  %v849 = vld [vmem:[%s3 + $0x264] sm:$0xf]
  %v850 = vld [vmem:[%s3 + $0x268] sm:$0xf]
  %v851 = vld [vmem:[%s3 + $0x26c] sm:$0xf]
  %v852 = vld [vmem:[%s3 + $0x270] sm:$0xf]
  %v853 = vld [vmem:[%s3 + $0x274] sm:$0xf]
  %v854 = vld [vmem:[%s3 + $0x278] sm:$0xf]
  %v855 = vld [vmem:[%s3 + $0x27c] sm:$0xf]
  %v856 = vld [vmem:[%s3 + $0x280] sm:$0xf]
  %v857 = vld [vmem:[%s3 + $0x284] sm:$0xf]
  %v858 = vld [vmem:[%s3 + $0x288] sm:$0xf]
  %v859 = vld [vmem:[%s3 + $0x28c] sm:$0xf]
  %v860 = vld [vmem:[%s3 + $0x290] sm:$0xf]
  %v861 = vld [vmem:[%s3 + $0x294] sm:$0xf]
  %v862 = vld [vmem:[%s3 + $0x298] sm:$0xf]
  %v863 = vld [vmem:[%s3 + $0x29c] sm:$0xf]
  %v864 = vld [vmem:[%s3 + $0x2a0] sm:$0xf]
  %v865 = vld [vmem:[%s3 + $0x2a4] sm:$0xf]
  %v866 = vld [vmem:[%s3 + $0x2a8] sm:$0xf]
  %v867 = vld [vmem:[%s3 + $0x2ac] sm:$0xf]
  %v868 = vld [vmem:[%s3 + $0x2b0] sm:$0xf]
  %v869 = vld [vmem:[%s3 + $0x2b4] sm:$0xf]
  %v870 = vld [vmem:[%s3 + $0x2b8] sm:$0xf]
  %v871 = vld [vmem:[%s3 + $0x2bc] sm:$0xf]
  %v872 = vld [vmem:[%s3 + $0x2c0] sm:$0xf]
  %v873 = vld [vmem:[%s3 + $0x2c4] sm:$0xf]
  %v874 = vld [vmem:[%s3 + $0x2c8] sm:$0xf]
  %v875 = vld [vmem:[%s3 + $0x2cc] sm:$0xf]
  %v876 = vld [vmem:[%s3 + $0x2d0] sm:$0xf]
  %v877 = vld [vmem:[%s3 + $0x2d4] sm:$0xf]
  %v878 = vld [vmem:[%s3 + $0x2d8] sm:$0xf]
  %v879 = vld [vmem:[%s3 + $0x2dc] sm:$0xf]
  %v880 = vld [vmem:[%s3 + $0x2e0] sm:$0xf]
  %v881 = vld [vmem:[%s3 + $0x2e4] sm:$0xf]
  %v882 = vld [vmem:[%s3 + $0x2e8] sm:$0xf]
  %v883 = vld [vmem:[%s3 + $0x2ec] sm:$0xf]
  %v884 = vld [vmem:[%s3 + $0x2f0] sm:$0xf]
  %v885 = vld [vmem:[%s3 + $0x2f4] sm:$0xf]
  %v886 = vld [vmem:[%s3 + $0x2f8] sm:$0xf]
  %v887 = vld [vmem:[%s3 + $0x2fc] sm:$0xf]
  %v888 = vld [vmem:[%s3 + $0x300] sm:$0xf]
  %v889 = vld [vmem:[%s3 + $0x304] sm:$0xf]
  %v890 = vld [vmem:[%s3 + $0x308] sm:$0xf]
  %v891 = vld [vmem:[%s3 + $0x30c] sm:$0xf]
  %v892 = vld [vmem:[%s3 + $0x310] sm:$0xf]
  %v893 = vld [vmem:[%s3 + $0x314] sm:$0xf]
  %v894 = vld [vmem:[%s3 + $0x318] sm:$0xf]
  %v895 = vld [vmem:[%s3 + $0x31c] sm:$0xf]
  %v896 = vld [vmem:[%s3 + $0x320] sm:$0xf]
  %v897 = vld [vmem:[%s3 + $0x324] sm:$0xf]
  %v898 = vld [vmem:[%s3 + $0x328] sm:$0xf]
  %v899 = vld [vmem:[%s3 + $0x32c] sm:$0xf]
  %v900 = vld [vmem:[%s3 + $0x330] sm:$0xf]
  %v901 = vld [vmem:[%s3 + $0x334] sm:$0xf]
  %v902 = vld [vmem:[%s3 + $0x338] sm:$0xf]
  %v903 = vld [vmem:[%s3 + $0x33c] sm:$0xf]
  %v904 = vld [vmem:[%s3 + $0x340] sm:$0xf]
  %v905 = vld [vmem:[%s3 + $0x344] sm:$0xf]
  %v906 = vld [vmem:[%s3 + $0x348] sm:$0xf]
  %v907 = vld [vmem:[%s3 + $0x34c] sm:$0xf]
  %v908 = vld [vmem:[%s3 + $0x350] sm:$0xf]
  %v909 = vld [vmem:[%s3 + $0x354] sm:$0xf]
  %v910 = vld [vmem:[%s3 + $0x358] sm:$0xf]
  %v911 = vld [vmem:[%s3 + $0x35c] sm:$0xf]
  %v912 = vld [vmem:[%s3 + $0x360] sm:$0xf]
  %v913 = vld [vmem:[%s3 + $0x364] sm:$0xf]
  %v914 = vld [vmem:[%s3 + $0x368] sm:$0xf]
  %v915 = vld [vmem:[%s3 + $0x36c] sm:$0xf]
  %v916 = vld [vmem:[%s3 + $0x370] sm:$0xf]
  %v917 = vld [vmem:[%s3 + $0x374] sm:$0xf]
  %v918 = vld [vmem:[%s3 + $0x378] sm:$0xf]
  %v919 = vld [vmem:[%s3 + $0x37c] sm:$0xf]
  %v920 = vld [vmem:[%s3 + $0x380] sm:$0xf]
  %v921 = vld [vmem:[%s3 + $0x384] sm:$0xf]
  %v922 = vld [vmem:[%s3 + $0x388] sm:$0xf]
  %v923 = vld [vmem:[%s3 + $0x38c] sm:$0xf]
  %v924 = vld [vmem:[%s3 + $0x390] sm:$0xf]
  %v925 = vld [vmem:[%s3 + $0x394] sm:$0xf]
  %v926 = vld [vmem:[%s3 + $0x398] sm:$0xf]
  %v927 = vld [vmem:[%s3 + $0x39c] sm:$0xf]
  %v928 = vld [vmem:[%s3 + $0x3a0] sm:$0xf]
  %v929 = vld [vmem:[%s3 + $0x3a4] sm:$0xf]
  %v930 = vld [vmem:[%s3 + $0x3a8] sm:$0xf]
  %v931 = vld [vmem:[%s3 + $0x3ac] sm:$0xf]
  %v932 = vld [vmem:[%s3 + $0x3b0] sm:$0xf]
  %v933 = vld [vmem:[%s3 + $0x3b4] sm:$0xf]
  %v934 = vld [vmem:[%s3 + $0x3b8] sm:$0xf]
  %v935 = vld [vmem:[%s3 + $0x3bc] sm:$0xf]
  %v936 = vld [vmem:[%s3 + $0x3c0] sm:$0xf]
  %v937 = vld [vmem:[%s3 + $0x3c4] sm:$0xf]
  %v938 = vld [vmem:[%s3 + $0x3c8] sm:$0xf]
  %v939 = vld [vmem:[%s3 + $0x3cc] sm:$0xf]
  %v940 = vld [vmem:[%s3 + $0x3d0] sm:$0xf]
  %v941 = vld [vmem:[%s3 + $0x3d4] sm:$0xf]
  %v942 = vld [vmem:[%s3 + $0x3d8] sm:$0xf]
  %v943 = vld [vmem:[%s3 + $0x3dc] sm:$0xf]
  %v944 = vld [vmem:[%s3 + $0x3e0] sm:$0xf]
  %v945 = vld [vmem:[%s3 + $0x3e4] sm:$0xf]
  %v946 = vld [vmem:[%s3 + $0x3e8] sm:$0xf]
  %v947 = vld [vmem:[%s3 + $0x3ec] sm:$0xf]
  %v948 = vld [vmem:[%s3 + $0x3f0] sm:$0xf]
  %v949 = vld [vmem:[%s3 + $0x3f4] sm:$0xf]
  %v950 = vld [vmem:[%s3 + $0x3f8] sm:$0xf]
  %v951 = vld [vmem:[%s3 + $0x3fc] sm:$0xf]
  %v952 = vld [vmem:[%s4] sm:$0x1]
  %v954 = vlaneseq
  %v955 = vshrl.u32 %v954, 7
  %v956 = vsub.s32 0, %v955
  %v957 = vrot.slane %v952, %v956
  %v1215 = vunpack.c.l.b16 %v696
  %v1216 = vunpack.c.l.b16 %v697
  %v1217 = vunpack.c.l.b16 %v698
  %v1218 = vunpack.c.l.b16 %v699
  %v1219 = vunpack.c.l.b16 %v700
  %v1220 = vunpack.c.l.b16 %v701
  %v1221 = vunpack.c.l.b16 %v702
  %v1222 = vunpack.c.l.b16 %v703
  %v1223 = vunpack.c.l.b16 %v704
  %v1224 = vunpack.c.l.b16 %v705
  %v1225 = vunpack.c.l.b16 %v706
  %v1226 = vunpack.c.l.b16 %v707
  %v1227 = vunpack.c.l.b16 %v708
  %v1228 = vunpack.c.l.b16 %v709
  %v1229 = vunpack.c.l.b16 %v710
  %v1230 = vunpack.c.l.b16 %v711
  %v1231 = vunpack.c.l.b16 %v712
  %v1232 = vunpack.c.l.b16 %v713
  %v1233 = vunpack.c.l.b16 %v714
  %v1234 = vunpack.c.l.b16 %v715
  %v1235 = vunpack.c.l.b16 %v716
  %v1236 = vunpack.c.l.b16 %v717
  %v1237 = vunpack.c.l.b16 %v718
  %v1238 = vunpack.c.l.b16 %v719
  %v1239 = vunpack.c.l.b16 %v720
  %v1240 = vunpack.c.l.b16 %v721
  %v1241 = vunpack.c.l.b16 %v722
  %v1242 = vunpack.c.l.b16 %v723
  %v1243 = vunpack.c.l.b16 %v724
  %v1244 = vunpack.c.l.b16 %v725
  %v1245 = vunpack.c.l.b16 %v726
  %v1246 = vunpack.c.l.b16 %v727
  %v1247 = vunpack.c.l.b16 %v728
  %v1248 = vunpack.c.l.b16 %v729
  %v1249 = vunpack.c.l.b16 %v730
  %v1250 = vunpack.c.l.b16 %v731
  %v1251 = vunpack.c.l.b16 %v732
  %v1252 = vunpack.c.l.b16 %v733
  %v1253 = vunpack.c.l.b16 %v734
  %v1254 = vunpack.c.l.b16 %v735
  %v1255 = vunpack.c.l.b16 %v736
  %v1256 = vunpack.c.l.b16 %v737
  %v1257 = vunpack.c.l.b16 %v738
  %v1258 = vunpack.c.l.b16 %v739
  %v1259 = vunpack.c.l.b16 %v740
  %v1260 = vunpack.c.l.b16 %v741
  %v1261 = vunpack.c.l.b16 %v742
  %v1262 = vunpack.c.l.b16 %v743
  %v1263 = vunpack.c.l.b16 %v744
  %v1264 = vunpack.c.l.b16 %v745
  %v1265 = vunpack.c.l.b16 %v746
  %v1266 = vunpack.c.l.b16 %v747
  %v1267 = vunpack.c.l.b16 %v748
  %v1268 = vunpack.c.l.b16 %v749
  %v1269 = vunpack.c.l.b16 %v750
  %v1270 = vunpack.c.l.b16 %v751
  %v1271 = vunpack.c.l.b16 %v752
  %v1272 = vunpack.c.l.b16 %v753
  %v1273 = vunpack.c.l.b16 %v754
  %v1274 = vunpack.c.l.b16 %v755
  %v1275 = vunpack.c.l.b16 %v756
  %v1276 = vunpack.c.l.b16 %v757
  %v1277 = vunpack.c.l.b16 %v758
  %v1278 = vunpack.c.l.b16 %v759
  %v1279 = vunpack.c.l.b16 %v760
  %v1280 = vunpack.c.l.b16 %v761
  %v1281 = vunpack.c.l.b16 %v762
  %v1282 = vunpack.c.l.b16 %v763
  %v1283 = vunpack.c.l.b16 %v764
  %v1284 = vunpack.c.l.b16 %v765
  %v1285 = vunpack.c.l.b16 %v766
  %v1286 = vunpack.c.l.b16 %v767
  %v1287 = vunpack.c.l.b16 %v768
  %v1288 = vunpack.c.l.b16 %v769
  %v1289 = vunpack.c.l.b16 %v770
  %v1290 = vunpack.c.l.b16 %v771
  %v1291 = vunpack.c.l.b16 %v772
  %v1292 = vunpack.c.l.b16 %v773
  %v1293 = vunpack.c.l.b16 %v774
  %v1294 = vunpack.c.l.b16 %v775
  %v1295 = vunpack.c.l.b16 %v776
  %v1296 = vunpack.c.l.b16 %v777
  %v1297 = vunpack.c.l.b16 %v778
  %v1298 = vunpack.c.l.b16 %v779
  %v1299 = vunpack.c.l.b16 %v780
  %v1300 = vunpack.c.l.b16 %v781
  %v1301 = vunpack.c.l.b16 %v782
  %v1302 = vunpack.c.l.b16 %v783
  %v1303 = vunpack.c.l.b16 %v784
  %v1304 = vunpack.c.l.b16 %v785
  %v1305 = vunpack.c.l.b16 %v786
  %v1306 = vunpack.c.l.b16 %v787
  %v1307 = vunpack.c.l.b16 %v788
  %v1308 = vunpack.c.l.b16 %v789
  %v1309 = vunpack.c.l.b16 %v790
  %v1310 = vunpack.c.l.b16 %v791
  %v1311 = vunpack.c.l.b16 %v792
  %v1312 = vunpack.c.l.b16 %v793
  %v1313 = vunpack.c.l.b16 %v794
  %v1314 = vunpack.c.l.b16 %v795
  %v1315 = vunpack.c.l.b16 %v796
  %v1316 = vunpack.c.l.b16 %v797
  %v1317 = vunpack.c.l.b16 %v798
  %v1318 = vunpack.c.l.b16 %v799
  %v1319 = vunpack.c.l.b16 %v800
  %v1320 = vunpack.c.l.b16 %v801
  %v1321 = vunpack.c.l.b16 %v802
  %v1322 = vunpack.c.l.b16 %v803
  %v1323 = vunpack.c.l.b16 %v804
  %v1324 = vunpack.c.l.b16 %v805
  %v1325 = vunpack.c.l.b16 %v806
  %v1326 = vunpack.c.l.b16 %v807
  %v1327 = vunpack.c.l.b16 %v808
  %v1328 = vunpack.c.l.b16 %v809
  %v1329 = vunpack.c.l.b16 %v810
  %v1330 = vunpack.c.l.b16 %v811
  %v1331 = vunpack.c.l.b16 %v812
  %v1332 = vunpack.c.l.b16 %v813
  %v1333 = vunpack.c.l.b16 %v814
  %v1334 = vunpack.c.l.b16 %v815
  %v1335 = vunpack.c.l.b16 %v816
  %v1336 = vunpack.c.l.b16 %v817
  %v1337 = vunpack.c.l.b16 %v818
  %v1338 = vunpack.c.l.b16 %v819
  %v1339 = vunpack.c.l.b16 %v820
  %v1340 = vunpack.c.l.b16 %v821
  %v1341 = vunpack.c.l.b16 %v822
  %v1342 = vunpack.c.l.b16 %v823
  %v1343 = vunpack.c.l.b16 %v824
  %v1344 = vunpack.c.l.b16 %v825
  %v1345 = vunpack.c.l.b16 %v826
  %v1346 = vunpack.c.l.b16 %v827
  %v1347 = vunpack.c.l.b16 %v828
  %v1348 = vunpack.c.l.b16 %v829
  %v1349 = vunpack.c.l.b16 %v830
  %v1350 = vunpack.c.l.b16 %v831
  %v1351 = vunpack.c.l.b16 %v832
  %v1352 = vunpack.c.l.b16 %v833
  %v1353 = vunpack.c.l.b16 %v834
  %v1354 = vunpack.c.l.b16 %v835
  %v1355 = vunpack.c.l.b16 %v836
  %v1356 = vunpack.c.l.b16 %v837
  %v1357 = vunpack.c.l.b16 %v838
  %v1358 = vunpack.c.l.b16 %v839
  %v1359 = vunpack.c.l.b16 %v840
  %v1360 = vunpack.c.l.b16 %v841
  %v1361 = vunpack.c.l.b16 %v842
  %v1362 = vunpack.c.l.b16 %v843
  %v1363 = vunpack.c.l.b16 %v844
  %v1364 = vunpack.c.l.b16 %v845
  %v1365 = vunpack.c.l.b16 %v846
  %v1366 = vunpack.c.l.b16 %v847
  %v1367 = vunpack.c.l.b16 %v848
  %v1368 = vunpack.c.l.b16 %v849
  %v1369 = vunpack.c.l.b16 %v850
  %v1370 = vunpack.c.l.b16 %v851
  %v1371 = vunpack.c.l.b16 %v852
  %v1372 = vunpack.c.l.b16 %v853
  %v1373 = vunpack.c.l.b16 %v854
  %v1374 = vunpack.c.l.b16 %v855
  %v1375 = vunpack.c.l.b16 %v856
  %v1376 = vunpack.c.l.b16 %v857
  %v1377 = vunpack.c.l.b16 %v858
  %v1378 = vunpack.c.l.b16 %v859
  %v1379 = vunpack.c.l.b16 %v860
  %v1380 = vunpack.c.l.b16 %v861
  %v1381 = vunpack.c.l.b16 %v862
  %v1382 = vunpack.c.l.b16 %v863
  %v1383 = vunpack.c.l.b16 %v864
  %v1384 = vunpack.c.l.b16 %v865
  %v1385 = vunpack.c.l.b16 %v866
  %v1386 = vunpack.c.l.b16 %v867
  %v1387 = vunpack.c.l.b16 %v868
  %v1388 = vunpack.c.l.b16 %v869
  %v1389 = vunpack.c.l.b16 %v870
  %v1390 = vunpack.c.l.b16 %v871
  %v1391 = vunpack.c.l.b16 %v872
  %v1392 = vunpack.c.l.b16 %v873
  %v1393 = vunpack.c.l.b16 %v874
  %v1394 = vunpack.c.l.b16 %v875
  %v1395 = vunpack.c.l.b16 %v876
  %v1396 = vunpack.c.l.b16 %v877
  %v1397 = vunpack.c.l.b16 %v878
  %v1398 = vunpack.c.l.b16 %v879
  %v1399 = vunpack.c.l.b16 %v880
  %v1400 = vunpack.c.l.b16 %v881
  %v1401 = vunpack.c.l.b16 %v882
  %v1402 = vunpack.c.l.b16 %v883
  %v1403 = vunpack.c.l.b16 %v884
  %v1404 = vunpack.c.l.b16 %v885
  %v1405 = vunpack.c.l.b16 %v886
  %v1406 = vunpack.c.l.b16 %v887
  %v1407 = vunpack.c.l.b16 %v888
  %v1408 = vunpack.c.l.b16 %v889
  %v1409 = vunpack.c.l.b16 %v890
  %v1410 = vunpack.c.l.b16 %v891
  %v1411 = vunpack.c.l.b16 %v892
  %v1412 = vunpack.c.l.b16 %v893
  %v1413 = vunpack.c.l.b16 %v894
  %v1414 = vunpack.c.l.b16 %v895
  %v1415 = vunpack.c.l.b16 %v896
  %v1416 = vunpack.c.l.b16 %v897
  %v1417 = vunpack.c.l.b16 %v898
  %v1418 = vunpack.c.l.b16 %v899
  %v1419 = vunpack.c.l.b16 %v900
  %v1420 = vunpack.c.l.b16 %v901
  %v1421 = vunpack.c.l.b16 %v902
  %v1422 = vunpack.c.l.b16 %v903
  %v1423 = vunpack.c.l.b16 %v904
  %v1424 = vunpack.c.l.b16 %v905
  %v1425 = vunpack.c.l.b16 %v906
  %v1426 = vunpack.c.l.b16 %v907
  %v1427 = vunpack.c.l.b16 %v908
  %v1428 = vunpack.c.l.b16 %v909
  %v1429 = vunpack.c.l.b16 %v910
  %v1430 = vunpack.c.l.b16 %v911
  %v1431 = vunpack.c.l.b16 %v912
  %v1432 = vunpack.c.l.b16 %v913
  %v1433 = vunpack.c.l.b16 %v914
  %v1434 = vunpack.c.l.b16 %v915
  %v1435 = vunpack.c.l.b16 %v916
  %v1436 = vunpack.c.l.b16 %v917
  %v1437 = vunpack.c.l.b16 %v918
  %v1438 = vunpack.c.l.b16 %v919
  %v1439 = vunpack.c.l.b16 %v920
  %v1440 = vunpack.c.l.b16 %v921
  %v1441 = vunpack.c.l.b16 %v922
  %v1442 = vunpack.c.l.b16 %v923
  %v1443 = vunpack.c.l.b16 %v924
  %v1444 = vunpack.c.l.b16 %v925
  %v1445 = vunpack.c.l.b16 %v926
  %v1446 = vunpack.c.l.b16 %v927
  %v1447 = vunpack.c.l.b16 %v928
  %v1448 = vunpack.c.l.b16 %v929
  %v1449 = vunpack.c.l.b16 %v930
  %v1450 = vunpack.c.l.b16 %v931
  %v1451 = vunpack.c.l.b16 %v932
  %v1452 = vunpack.c.l.b16 %v933
  %v1453 = vunpack.c.l.b16 %v934
  %v1454 = vunpack.c.l.b16 %v935
  %v1455 = vunpack.c.l.b16 %v936
  %v1456 = vunpack.c.l.b16 %v937
  %v1457 = vunpack.c.l.b16 %v938
  %v1458 = vunpack.c.l.b16 %v939
  %v1459 = vunpack.c.l.b16 %v940
  %v1460 = vunpack.c.l.b16 %v941
  %v1461 = vunpack.c.l.b16 %v942
  %v1462 = vunpack.c.l.b16 %v943
  %v1463 = vunpack.c.l.b16 %v944
  %v1464 = vunpack.c.l.b16 %v945
  %v1465 = vunpack.c.l.b16 %v946
  %v1466 = vunpack.c.l.b16 %v947
  %v1467 = vunpack.c.l.b16 %v948
  %v1468 = vunpack.c.l.b16 %v949
  %v1469 = vunpack.c.l.b16 %v950
  %v1470 = vunpack.c.l.b16 %v951
  %v1471 = vpack.c.b16 %v1216, %v1215
  %v1472 = vpack.c.b16 %v1218, %v1217
  %v1473 = vpack.c.b16 %v1220, %v1219
  %v1474 = vpack.c.b16 %v1222, %v1221
  %v1475 = vpack.c.b16 %v1224, %v1223
  %v1476 = vpack.c.b16 %v1226, %v1225
  %v1477 = vpack.c.b16 %v1228, %v1227
  %v1478 = vpack.c.b16 %v1230, %v1229
  %v1479 = vpack.c.b16 %v1232, %v1231
  %v1480 = vpack.c.b16 %v1234, %v1233
  %v1481 = vpack.c.b16 %v1236, %v1235
  %v1482 = vpack.c.b16 %v1238, %v1237
  %v1483 = vpack.c.b16 %v1240, %v1239
  %v1484 = vpack.c.b16 %v1242, %v1241
  %v1485 = vpack.c.b16 %v1244, %v1243
  %v1486 = vpack.c.b16 %v1246, %v1245
  %v1487 = vpack.c.b16 %v1248, %v1247
  %v1488 = vpack.c.b16 %v1250, %v1249
  %v1489 = vpack.c.b16 %v1252, %v1251
  %v1490 = vpack.c.b16 %v1254, %v1253
  %v1491 = vpack.c.b16 %v1256, %v1255
  %v1492 = vpack.c.b16 %v1258, %v1257
  %v1493 = vpack.c.b16 %v1260, %v1259
  %v1494 = vpack.c.b16 %v1262, %v1261
  %v1495 = vpack.c.b16 %v1264, %v1263
  %v1496 = vpack.c.b16 %v1266, %v1265
  %v1497 = vpack.c.b16 %v1268, %v1267
  %v1498 = vpack.c.b16 %v1270, %v1269
  %v1499 = vpack.c.b16 %v1272, %v1271
  %v1500 = vpack.c.b16 %v1274, %v1273
  %v1501 = vpack.c.b16 %v1276, %v1275
  %v1502 = vpack.c.b16 %v1278, %v1277
  %v1503 = vpack.c.b16 %v1280, %v1279
  %v1504 = vpack.c.b16 %v1282, %v1281
  %v1505 = vpack.c.b16 %v1284, %v1283
  %v1506 = vpack.c.b16 %v1286, %v1285
  %v1507 = vpack.c.b16 %v1288, %v1287
  %v1508 = vpack.c.b16 %v1290, %v1289
  %v1509 = vpack.c.b16 %v1292, %v1291
  %v1510 = vpack.c.b16 %v1294, %v1293
  %v1511 = vpack.c.b16 %v1296, %v1295
  %v1512 = vpack.c.b16 %v1298, %v1297
  %v1513 = vpack.c.b16 %v1300, %v1299
  %v1514 = vpack.c.b16 %v1302, %v1301
  %v1515 = vpack.c.b16 %v1304, %v1303
  %v1516 = vpack.c.b16 %v1306, %v1305
  %v1517 = vpack.c.b16 %v1308, %v1307
  %v1518 = vpack.c.b16 %v1310, %v1309
  %v1519 = vpack.c.b16 %v1312, %v1311
  %v1520 = vpack.c.b16 %v1314, %v1313
  %v1521 = vpack.c.b16 %v1316, %v1315
  %v1522 = vpack.c.b16 %v1318, %v1317
  %v1523 = vpack.c.b16 %v1320, %v1319
  %v1524 = vpack.c.b16 %v1322, %v1321
  %v1525 = vpack.c.b16 %v1324, %v1323
  %v1526 = vpack.c.b16 %v1326, %v1325
  %v1527 = vpack.c.b16 %v1328, %v1327
  %v1528 = vpack.c.b16 %v1330, %v1329
  %v1529 = vpack.c.b16 %v1332, %v1331
  %v1530 = vpack.c.b16 %v1334, %v1333
  %v1531 = vpack.c.b16 %v1336, %v1335
  %v1532 = vpack.c.b16 %v1338, %v1337
  %v1533 = vpack.c.b16 %v1340, %v1339
  %v1534 = vpack.c.b16 %v1342, %v1341
  %v1535 = vpack.c.b16 %v1344, %v1343
  %v1536 = vpack.c.b16 %v1346, %v1345
  %v1537 = vpack.c.b16 %v1348, %v1347
  %v1538 = vpack.c.b16 %v1350, %v1349
  %v1539 = vpack.c.b16 %v1352, %v1351
  %v1540 = vpack.c.b16 %v1354, %v1353
  %v1541 = vpack.c.b16 %v1356, %v1355
  %v1542 = vpack.c.b16 %v1358, %v1357
  %v1543 = vpack.c.b16 %v1360, %v1359
  %v1544 = vpack.c.b16 %v1362, %v1361
  %v1545 = vpack.c.b16 %v1364, %v1363
  %v1546 = vpack.c.b16 %v1366, %v1365
  %v1547 = vpack.c.b16 %v1368, %v1367
  %v1548 = vpack.c.b16 %v1370, %v1369
  %v1549 = vpack.c.b16 %v1372, %v1371
  %v1550 = vpack.c.b16 %v1374, %v1373
  %v1551 = vpack.c.b16 %v1376, %v1375
  %v1552 = vpack.c.b16 %v1378, %v1377
  %v1553 = vpack.c.b16 %v1380, %v1379
  %v1554 = vpack.c.b16 %v1382, %v1381
  %v1555 = vpack.c.b16 %v1384, %v1383
  %v1556 = vpack.c.b16 %v1386, %v1385
  %v1557 = vpack.c.b16 %v1388, %v1387
  %v1558 = vpack.c.b16 %v1390, %v1389
  %v1559 = vpack.c.b16 %v1392, %v1391
  %v1560 = vpack.c.b16 %v1394, %v1393
  %v1561 = vpack.c.b16 %v1396, %v1395
  %v1562 = vpack.c.b16 %v1398, %v1397
  %v1563 = vpack.c.b16 %v1400, %v1399
  %v1564 = vpack.c.b16 %v1402, %v1401
  %v1565 = vpack.c.b16 %v1404, %v1403
  %v1566 = vpack.c.b16 %v1406, %v1405
  %v1567 = vpack.c.b16 %v1408, %v1407
  %v1568 = vpack.c.b16 %v1410, %v1409
  %v1569 = vpack.c.b16 %v1412, %v1411
  %v1570 = vpack.c.b16 %v1414, %v1413
  %v1571 = vpack.c.b16 %v1416, %v1415
  %v1572 = vpack.c.b16 %v1418, %v1417
  %v1573 = vpack.c.b16 %v1420, %v1419
  %v1574 = vpack.c.b16 %v1422, %v1421
  %v1575 = vpack.c.b16 %v1424, %v1423
  %v1576 = vpack.c.b16 %v1426, %v1425
  %v1577 = vpack.c.b16 %v1428, %v1427
  %v1578 = vpack.c.b16 %v1430, %v1429
  %v1579 = vpack.c.b16 %v1432, %v1431
  %v1580 = vpack.c.b16 %v1434, %v1433
  %v1581 = vpack.c.b16 %v1436, %v1435
  %v1582 = vpack.c.b16 %v1438, %v1437
  %v1583 = vpack.c.b16 %v1440, %v1439
  %v1584 = vpack.c.b16 %v1442, %v1441
  %v1585 = vpack.c.b16 %v1444, %v1443
  %v1586 = vpack.c.b16 %v1446, %v1445
  %v1587 = vpack.c.b16 %v1448, %v1447
  %v1588 = vpack.c.b16 %v1450, %v1449
  %v1589 = vpack.c.b16 %v1452, %v1451
  %v1590 = vpack.c.b16 %v1454, %v1453
  %v1591 = vpack.c.b16 %v1456, %v1455
  %v1592 = vpack.c.b16 %v1458, %v1457
  %v1593 = vpack.c.b16 %v1460, %v1459
  %v1594 = vpack.c.b16 %v1462, %v1461
  %v1595 = vpack.c.b16 %v1464, %v1463
  %v1596 = vpack.c.b16 %v1466, %v1465
  %v1597 = vpack.c.b16 %v1468, %v1467
  %v1598 = vpack.c.b16 %v1470, %v1469
  %1727 = vmatprep.subr.bf16.mxu0 0
  %1728 = vmatpush1.bf16.msra.mxu0 %v1471
  %1729 = vmatprep.subr.bf16.mxu0 0
  %1730 = vmatpush1.bf16.msra.mxu0 %v1472
  %1731 = vmatprep.subr.bf16.mxu0 0
  %1732 = vmatpush1.bf16.msra.mxu0 %v1473
  %1733 = vmatprep.subr.bf16.mxu0 0
  %1734 = vmatpush1.bf16.msra.mxu0 %v1474
  %1735 = vmatprep.subr.bf16.mxu0 0
  %1736 = vmatpush1.bf16.msra.mxu0 %v1475
  %1737 = vmatprep.subr.bf16.mxu0 0
  %1738 = vmatpush1.bf16.msra.mxu0 %v1476
  %1739 = vmatprep.subr.bf16.mxu0 0
  %1740 = vmatpush1.bf16.msra.mxu0 %v1477
  %1741 = vmatprep.subr.bf16.mxu0 0
  %1742 = vmatpush1.bf16.msra.mxu0 %v1478
  %1743 = vmatprep.subr.bf16.mxu0 0
  %1744 = vmatpush1.bf16.msra.mxu0 %v1479
  %1745 = vmatprep.subr.bf16.mxu0 0
  %1746 = vmatpush1.bf16.msra.mxu0 %v1480
  %1747 = vmatprep.subr.bf16.mxu0 0
  %1748 = vmatpush1.bf16.msra.mxu0 %v1481
  %1749 = vmatprep.subr.bf16.mxu0 0
  %1750 = vmatpush1.bf16.msra.mxu0 %v1482
  %1751 = vmatprep.subr.bf16.mxu0 0
  %1752 = vmatpush1.bf16.msra.mxu0 %v1483
  %1753 = vmatprep.subr.bf16.mxu0 0
  %1754 = vmatpush1.bf16.msra.mxu0 %v1484
  %1755 = vmatprep.subr.bf16.mxu0 0
  %1756 = vmatpush1.bf16.msra.mxu0 %v1485
  %1757 = vmatprep.subr.bf16.mxu0 0
  %1758 = vmatpush1.bf16.msra.mxu0 %v1486
  %1759 = vmatprep.mubr.bf16.mxu0 %v681
  %1760 = vmatmul.mubr.bf16.gmra.mrb[0].mxu0 %v680
  %v1761 = vpop.f32.mrb[0].mxu0
  %v1762 = vadd.f32 %v957, %v1761
  %v1763 = vpop.f32.mrb[0].mxu0
  %v1764 = vpop.f32.mrb[0].mxu0
  %v1765 = vadd.f32 %v957, %v1764
  %v1766 = vpop.f32.mrb[0].mxu0
  %1767 = vdwg.mxu0
  %1768 = vmatprep.subr.bf16.mxu0 0
  %1769 = vmatpush1.bf16.msra.mxu0 %v1487
  %1770 = vmatprep.subr.bf16.mxu0 0
  %1771 = vmatpush1.bf16.msra.mxu0 %v1488
  %1772 = vmatprep.subr.bf16.mxu0 0
  %1773 = vmatpush1.bf16.msra.mxu0 %v1489
  %1774 = vmatprep.subr.bf16.mxu0 0
  %1775 = vmatpush1.bf16.msra.mxu0 %v1490
  %1776 = vmatprep.subr.bf16.mxu0 0
  %1777 = vmatpush1.bf16.msra.mxu0 %v1491
  %1778 = vmatprep.subr.bf16.mxu0 0
  %1779 = vmatpush1.bf16.msra.mxu0 %v1492
  %1780 = vmatprep.subr.bf16.mxu0 0
  %1781 = vmatpush1.bf16.msra.mxu0 %v1493
  %1782 = vmatprep.subr.bf16.mxu0 0
  %1783 = vmatpush1.bf16.msra.mxu0 %v1494
  %1784 = vmatprep.subr.bf16.mxu0 0
  %1785 = vmatpush1.bf16.msra.mxu0 %v1495
  %1786 = vmatprep.subr.bf16.mxu0 0
  %1787 = vmatpush1.bf16.msra.mxu0 %v1496
  %1788 = vmatprep.subr.bf16.mxu0 0
  %1789 = vmatpush1.bf16.msra.mxu0 %v1497
  %1790 = vmatprep.subr.bf16.mxu0 0
  %1791 = vmatpush1.bf16.msra.mxu0 %v1498
  %1792 = vmatprep.subr.bf16.mxu0 0
  %1793 = vmatpush1.bf16.msra.mxu0 %v1499
  %1794 = vmatprep.subr.bf16.mxu0 0
  %1795 = vmatpush1.bf16.msra.mxu0 %v1500
  %1796 = vmatprep.subr.bf16.mxu0 0
  %1797 = vmatpush1.bf16.msra.mxu0 %v1501
  %1798 = vmatprep.subr.bf16.mxu0 0
  %1799 = vmatpush1.bf16.msra.mxu0 %v1502
  %1800 = vmatprep.mubr.bf16.mxu0 %v683
  %1801 = vmatmul.mubr.bf16.gmra.mrb[0].mxu0 %v682
  %v1802 = vpop.f32.mrb[0].mxu0
  %v1803 = vadd.f32 %v1762, %v1802
  %v1804 = vpop.f32.mrb[0].mxu0
  %v1805 = vpop.f32.mrb[0].mxu0
  %v1806 = vadd.f32 %v1765, %v1805
  %v1807 = vpop.f32.mrb[0].mxu0
  %1808 = vdwg.mxu0
  %1809 = vmatprep.subr.bf16.mxu0 0
  %1810 = vmatpush1.bf16.msra.mxu0 %v1503
  %1811 = vmatprep.subr.bf16.mxu0 0
  %1812 = vmatpush1.bf16.msra.mxu0 %v1504
  %1813 = vmatprep.subr.bf16.mxu0 0
  %1814 = vmatpush1.bf16.msra.mxu0 %v1505
  %1815 = vmatprep.subr.bf16.mxu0 0
  %1816 = vmatpush1.bf16.msra.mxu0 %v1506
  %1817 = vmatprep.subr.bf16.mxu0 0
  %1818 = vmatpush1.bf16.msra.mxu0 %v1507
  %1819 = vmatprep.subr.bf16.mxu0 0
  %1820 = vmatpush1.bf16.msra.mxu0 %v1508
  %1821 = vmatprep.subr.bf16.mxu0 0
  %1822 = vmatpush1.bf16.msra.mxu0 %v1509
  %1823 = vmatprep.subr.bf16.mxu0 0
  %1824 = vmatpush1.bf16.msra.mxu0 %v1510
  %1825 = vmatprep.subr.bf16.mxu0 0
  %1826 = vmatpush1.bf16.msra.mxu0 %v1511
  %1827 = vmatprep.subr.bf16.mxu0 0
  %1828 = vmatpush1.bf16.msra.mxu0 %v1512
  %1829 = vmatprep.subr.bf16.mxu0 0
  %1830 = vmatpush1.bf16.msra.mxu0 %v1513
  %1831 = vmatprep.subr.bf16.mxu0 0
  %1832 = vmatpush1.bf16.msra.mxu0 %v1514
  %1833 = vmatprep.subr.bf16.mxu0 0
  %1834 = vmatpush1.bf16.msra.mxu0 %v1515
  %1835 = vmatprep.subr.bf16.mxu0 0
  %1836 = vmatpush1.bf16.msra.mxu0 %v1516
  %1837 = vmatprep.subr.bf16.mxu0 0
  %1838 = vmatpush1.bf16.msra.mxu0 %v1517
  %1839 = vmatprep.subr.bf16.mxu0 0
  %1840 = vmatpush1.bf16.msra.mxu0 %v1518
  %1841 = vmatprep.mubr.bf16.mxu0 %v685
  %1842 = vmatmul.mubr.bf16.gmra.mrb[0].mxu0 %v684
  %v1843 = vpop.f32.mrb[0].mxu0
  %v1844 = vadd.f32 %v1803, %v1843
  %v1845 = vpop.f32.mrb[0].mxu0
  %v1846 = vpop.f32.mrb[0].mxu0
  %v1847 = vadd.f32 %v1806, %v1846
  %v1848 = vpop.f32.mrb[0].mxu0
  %1849 = vdwg.mxu0
  %1850 = vmatprep.subr.bf16.mxu0 0
  %1851 = vmatpush1.bf16.msra.mxu0 %v1519
  %1852 = vmatprep.subr.bf16.mxu0 0
  %1853 = vmatpush1.bf16.msra.mxu0 %v1520
  %1854 = vmatprep.subr.bf16.mxu0 0
  %1855 = vmatpush1.bf16.msra.mxu0 %v1521
  %1856 = vmatprep.subr.bf16.mxu0 0
  %1857 = vmatpush1.bf16.msra.mxu0 %v1522
  %1858 = vmatprep.subr.bf16.mxu0 0
  %1859 = vmatpush1.bf16.msra.mxu0 %v1523
  %1860 = vmatprep.subr.bf16.mxu0 0
  %1861 = vmatpush1.bf16.msra.mxu0 %v1524
  %1862 = vmatprep.subr.bf16.mxu0 0
  %1863 = vmatpush1.bf16.msra.mxu0 %v1525
  %1864 = vmatprep.subr.bf16.mxu0 0
  %1865 = vmatpush1.bf16.msra.mxu0 %v1526
  %1866 = vmatprep.subr.bf16.mxu0 0
  %1867 = vmatpush1.bf16.msra.mxu0 %v1527
  %1868 = vmatprep.subr.bf16.mxu0 0
  %1869 = vmatpush1.bf16.msra.mxu0 %v1528
  %1870 = vmatprep.subr.bf16.mxu0 0
  %1871 = vmatpush1.bf16.msra.mxu0 %v1529
  %1872 = vmatprep.subr.bf16.mxu0 0
  %1873 = vmatpush1.bf16.msra.mxu0 %v1530
  %1874 = vmatprep.subr.bf16.mxu0 0
  %1875 = vmatpush1.bf16.msra.mxu0 %v1531
  %1876 = vmatprep.subr.bf16.mxu0 0
  %1877 = vmatpush1.bf16.msra.mxu0 %v1532
  %1878 = vmatprep.subr.bf16.mxu0 0
  %1879 = vmatpush1.bf16.msra.mxu0 %v1533
  %1880 = vmatprep.subr.bf16.mxu0 0
  %1881 = vmatpush1.bf16.msra.mxu0 %v1534
  %1882 = vmatprep.mubr.bf16.mxu0 %v687
  %1883 = vmatmul.mubr.bf16.gmra.mrb[0].mxu0 %v686
  %v1884 = vpop.f32.mrb[0].mxu0
  %v1885 = vadd.f32 %v1844, %v1884
  %v1886 = vpop.f32.mrb[0].mxu0
  %v1887 = vpop.f32.mrb[0].mxu0
  %v1888 = vadd.f32 %v1847, %v1887
  %v1889 = vpop.f32.mrb[0].mxu0
  %1890 = vdwg.mxu0
  %1891 = vmatprep.subr.bf16.mxu0 0
  %1892 = vmatpush1.bf16.msra.mxu0 %v1535
  %1893 = vmatprep.subr.bf16.mxu0 0
  %1894 = vmatpush1.bf16.msra.mxu0 %v1536
  %1895 = vmatprep.subr.bf16.mxu0 0
  %1896 = vmatpush1.bf16.msra.mxu0 %v1537
  %1897 = vmatprep.subr.bf16.mxu0 0
  %1898 = vmatpush1.bf16.msra.mxu0 %v1538
  %1899 = vmatprep.subr.bf16.mxu0 0
  %1900 = vmatpush1.bf16.msra.mxu0 %v1539
  %1901 = vmatprep.subr.bf16.mxu0 0
  %1902 = vmatpush1.bf16.msra.mxu0 %v1540
  %1903 = vmatprep.subr.bf16.mxu0 0
  %1904 = vmatpush1.bf16.msra.mxu0 %v1541
  %1905 = vmatprep.subr.bf16.mxu0 0
  %1906 = vmatpush1.bf16.msra.mxu0 %v1542
  %1907 = vmatprep.subr.bf16.mxu0 0
  %1908 = vmatpush1.bf16.msra.mxu0 %v1543
  %1909 = vmatprep.subr.bf16.mxu0 0
  %1910 = vmatpush1.bf16.msra.mxu0 %v1544
  %1911 = vmatprep.subr.bf16.mxu0 0
  %1912 = vmatpush1.bf16.msra.mxu0 %v1545
  %1913 = vmatprep.subr.bf16.mxu0 0
  %1914 = vmatpush1.bf16.msra.mxu0 %v1546
  %1915 = vmatprep.subr.bf16.mxu0 0
  %1916 = vmatpush1.bf16.msra.mxu0 %v1547
  %1917 = vmatprep.subr.bf16.mxu0 0
  %1918 = vmatpush1.bf16.msra.mxu0 %v1548
  %1919 = vmatprep.subr.bf16.mxu0 0
  %1920 = vmatpush1.bf16.msra.mxu0 %v1549
  %1921 = vmatprep.subr.bf16.mxu0 0
  %1922 = vmatpush1.bf16.msra.mxu0 %v1550
  %1923 = vmatprep.mubr.bf16.mxu0 %v689
  %1924 = vmatmul.mubr.bf16.gmra.mrb[0].mxu0 %v688
  %v1925 = vpop.f32.mrb[0].mxu0
  %v1926 = vadd.f32 %v1885, %v1925
  %v1927 = vpop.f32.mrb[0].mxu0
  %v1928 = vpop.f32.mrb[0].mxu0
  %v1929 = vadd.f32 %v1888, %v1928
  %v1930 = vpop.f32.mrb[0].mxu0
  %1931 = vdwg.mxu0
  %1932 = vmatprep.subr.bf16.mxu0 0
  %1933 = vmatpush1.bf16.msra.mxu0 %v1551
  %1934 = vmatprep.subr.bf16.mxu0 0
  %1935 = vmatpush1.bf16.msra.mxu0 %v1552
  %1936 = vmatprep.subr.bf16.mxu0 0
  %1937 = vmatpush1.bf16.msra.mxu0 %v1553
  %1938 = vmatprep.subr.bf16.mxu0 0
  %1939 = vmatpush1.bf16.msra.mxu0 %v1554
  %1940 = vmatprep.subr.bf16.mxu0 0
  %1941 = vmatpush1.bf16.msra.mxu0 %v1555
  %1942 = vmatprep.subr.bf16.mxu0 0
  %1943 = vmatpush1.bf16.msra.mxu0 %v1556
  %1944 = vmatprep.subr.bf16.mxu0 0
  %1945 = vmatpush1.bf16.msra.mxu0 %v1557
  %1946 = vmatprep.subr.bf16.mxu0 0
  %1947 = vmatpush1.bf16.msra.mxu0 %v1558
  %1948 = vmatprep.subr.bf16.mxu0 0
  %1949 = vmatpush1.bf16.msra.mxu0 %v1559
  %1950 = vmatprep.subr.bf16.mxu0 0
  %1951 = vmatpush1.bf16.msra.mxu0 %v1560
  %1952 = vmatprep.subr.bf16.mxu0 0
  %1953 = vmatpush1.bf16.msra.mxu0 %v1561
  %1954 = vmatprep.subr.bf16.mxu0 0
  %1955 = vmatpush1.bf16.msra.mxu0 %v1562
  %1956 = vmatprep.subr.bf16.mxu0 0
  %1957 = vmatpush1.bf16.msra.mxu0 %v1563
  %1958 = vmatprep.subr.bf16.mxu0 0
  %1959 = vmatpush1.bf16.msra.mxu0 %v1564
  %1960 = vmatprep.subr.bf16.mxu0 0
  %1961 = vmatpush1.bf16.msra.mxu0 %v1565
  %1962 = vmatprep.subr.bf16.mxu0 0
  %1963 = vmatpush1.bf16.msra.mxu0 %v1566
  %1964 = vmatprep.mubr.bf16.mxu0 %v691
  %1965 = vmatmul.mubr.bf16.gmra.mrb[0].mxu0 %v690
  %v1966 = vpop.f32.mrb[0].mxu0
  %v1967 = vadd.f32 %v1926, %v1966
  %v1968 = vpop.f32.mrb[0].mxu0
  %v1969 = vpop.f32.mrb[0].mxu0
  %v1970 = vadd.f32 %v1929, %v1969
  %v1971 = vpop.f32.mrb[0].mxu0
  %1972 = vdwg.mxu0
  %1973 = vmatprep.subr.bf16.mxu0 0
  %1974 = vmatpush1.bf16.msra.mxu0 %v1567
  %1975 = vmatprep.subr.bf16.mxu0 0
  %1976 = vmatpush1.bf16.msra.mxu0 %v1568
  %1977 = vmatprep.subr.bf16.mxu0 0
  %1978 = vmatpush1.bf16.msra.mxu0 %v1569
  %1979 = vmatprep.subr.bf16.mxu0 0
  %1980 = vmatpush1.bf16.msra.mxu0 %v1570
  %1981 = vmatprep.subr.bf16.mxu0 0
  %1982 = vmatpush1.bf16.msra.mxu0 %v1571
  %1983 = vmatprep.subr.bf16.mxu0 0
  %1984 = vmatpush1.bf16.msra.mxu0 %v1572
  %1985 = vmatprep.subr.bf16.mxu0 0
  %1986 = vmatpush1.bf16.msra.mxu0 %v1573
  %1987 = vmatprep.subr.bf16.mxu0 0
  %1988 = vmatpush1.bf16.msra.mxu0 %v1574
  %1989 = vmatprep.subr.bf16.mxu0 0
  %1990 = vmatpush1.bf16.msra.mxu0 %v1575
  %1991 = vmatprep.subr.bf16.mxu0 0
  %1992 = vmatpush1.bf16.msra.mxu0 %v1576
  %1993 = vmatprep.subr.bf16.mxu0 0
  %1994 = vmatpush1.bf16.msra.mxu0 %v1577
  %1995 = vmatprep.subr.bf16.mxu0 0
  %1996 = vmatpush1.bf16.msra.mxu0 %v1578
  %1997 = vmatprep.subr.bf16.mxu0 0
  %1998 = vmatpush1.bf16.msra.mxu0 %v1579
  %1999 = vmatprep.subr.bf16.mxu0 0
  %2000 = vmatpush1.bf16.msra.mxu0 %v1580
  %2001 = vmatprep.subr.bf16.mxu0 0
  %2002 = vmatpush1.bf16.msra.mxu0 %v1581
  %2003 = vmatprep.subr.bf16.mxu0 0
  %2004 = vmatpush1.bf16.msra.mxu0 %v1582
  %2005 = vmatprep.mubr.bf16.mxu0 %v693
  %2006 = vmatmul.mubr.bf16.gmra.mrb[0].mxu0 %v692
  %v2007 = vpop.f32.mrb[0].mxu0
  %v2008 = vadd.f32 %v1967, %v2007
  %v2009 = vpop.f32.mrb[0].mxu0
  %v2010 = vpop.f32.mrb[0].mxu0
  %v2011 = vadd.f32 %v1970, %v2010
  %v2012 = vpop.f32.mrb[0].mxu0
  %2013 = vdwg.mxu0
  %2014 = vmatprep.subr.bf16.mxu0 0
  %2015 = vmatpush1.bf16.msra.mxu0 %v1583
  %2016 = vmatprep.subr.bf16.mxu0 0
  %2017 = vmatpush1.bf16.msra.mxu0 %v1584
  %2018 = vmatprep.subr.bf16.mxu0 0
  %2019 = vmatpush1.bf16.msra.mxu0 %v1585
  %2020 = vmatprep.subr.bf16.mxu0 0
  %2021 = vmatpush1.bf16.msra.mxu0 %v1586
  %2022 = vmatprep.subr.bf16.mxu0 0
  %2023 = vmatpush1.bf16.msra.mxu0 %v1587
  %2024 = vmatprep.subr.bf16.mxu0 0
  %2025 = vmatpush1.bf16.msra.mxu0 %v1588
  %2026 = vmatprep.subr.bf16.mxu0 0
  %2027 = vmatpush1.bf16.msra.mxu0 %v1589
  %2028 = vmatprep.subr.bf16.mxu0 0
  %2029 = vmatpush1.bf16.msra.mxu0 %v1590
  %2030 = vmatprep.subr.bf16.mxu0 0
  %2031 = vmatpush1.bf16.msra.mxu0 %v1591
  %2032 = vmatprep.subr.bf16.mxu0 0
  %2033 = vmatpush1.bf16.msra.mxu0 %v1592
  %2034 = vmatprep.subr.bf16.mxu0 0
  %2035 = vmatpush1.bf16.msra.mxu0 %v1593
  %2036 = vmatprep.subr.bf16.mxu0 0
  %2037 = vmatpush1.bf16.msra.mxu0 %v1594
  %2038 = vmatprep.subr.bf16.mxu0 0
  %2039 = vmatpush1.bf16.msra.mxu0 %v1595
  %2040 = vmatprep.subr.bf16.mxu0 0
  %2041 = vmatpush1.bf16.msra.mxu0 %v1596
  %2042 = vmatprep.subr.bf16.mxu0 0
  %2043 = vmatpush1.bf16.msra.mxu0 %v1597
  %2044 = vmatprep.subr.bf16.mxu0 0
  %2045 = vmatpush1.bf16.msra.mxu0 %v1598
  %2046 = vmatprep.mubr.bf16.mxu0 %v695
  %2047 = vmatmul.mubr.bf16.gmra.mrb[0].mxu0 %v694
  %v2048 = vpop.f32.mrb[0].mxu0
  %v2049 = vadd.f32 %v2008, %v2048
  %v2050 = vpop.f32.mrb[0].mxu0
  %v2051 = vpop.f32.mrb[0].mxu0
  %v2052 = vadd.f32 %v2011, %v2051
  %v2053 = vpop.f32.mrb[0].mxu0
  %2054 = vdwg.mxu0
  %2055 = vst [vmem:[%s5] sm:$0xff] %v2049
  %2056 = vst [vmem:[%s5 + $0x8] sm:$0xff] %v2052
  // Predicated region
  $region22: #{ffn_forward.1} parent=0 // pred_check
    _
  $region23: #{ffn_forward.1} parent=0 // pred_check_branch
    %2058 = sbr.rel (0) target = $region25
  $region24: #{ffn_forward.1} parent=0 // pred_region
    _
  $region25: #{ffn_forward.1} parent=0 // pred_fallthru
    _
  // Predicated region
  $region26: #{ffn_forward.1} parent=0 // pred_check
    _
  $region27: #{ffn_forward.1} parent=0 // pred_check_branch
    %2060 = sbr.rel (0) target = $region29
  $region28: #{ffn_forward.1} parent=0 // pred_region
    _
  $region29: #{ffn_forward.1} parent=0 // pred_fallthru
    _

</llo_original>
